<compile_context>
chip_gen: v6e
topology: v6e:2x2x1
jax: 0.10.0
libtpu: 0.0.40
codegen_flags: <defaults>
</compile_context>

<pallas_src>
import jax
import jax.numpy as jnp
from jax.experimental import pallas as pl
from jax.experimental.pallas import tpu as pltpu


def _round_up(n, m):
    return (n + m - 1) // m * m


# ----------------------------------------------------------------------------
# Fused Pallas kernel
# ----------------------------------------------------------------------------
def _make_fused_gru_kernel(num_layers, T, Bp, Hp, unroll):
    """Build the fused TimeGRU kernel body (static sizes closed over)."""
    G3 = 3 * Hp

    def kernel(*refs):
        # refs: x2d, (w_ih, w_hh, b_ih_comb, b_hn) * num_layers, w_out, b_out,
        #       out_ref, gi_scratch, hseq_scratch
        x_ref = refs[0]
        idx = 1
        layer_refs = []
        for _ in range(num_layers):
            layer_refs.append(refs[idx:idx + 4])
            idx += 4
        w_out_ref, b_out_ref = refs[idx], refs[idx + 1]
        out_ref = refs[idx + 2]
        gi_ref, hseq_ref = refs[idx + 3], refs[idx + 4]

        def run_layer(layer_idx, x2d_bf16, wih_ref, whh_ref, bih_ref, bhn_ref):
            # ---- hoisted input projection for the whole sequence -----------
            # one (T*Bp, D_in) @ (D_in, 3Hp) bf16 matmul, f32 accumulation,
            # off the sequential path.  r/z parts of b_hh are pre-folded into
            # b_ih, so gh needs no bias below.
            gi2d = (jnp.dot(x2d_bf16, wih_ref[...],
                            preferred_element_type=jnp.float32)
                    + bih_ref[...])
            gi_ref[...] = gi2d.reshape(T, Bp, G3)   # layout-preserving (Bp%8==0, G3%128==0)

            whh = whh_ref[...]                                   # bf16 (Hp, 3Hp)
            bhn = jnp.broadcast_to(bhn_ref[...], (Bp, Hp))       # hoisted broadcast
            write_seq = layer_idx < (num_layers - 1)             # last layer: only final h needed

            # ---- sequential recurrence: only h @ W_hh + gate math remain ---
            def step(t, h_prev):
                gi_t = gi_ref[t]                                 # (Bp, 3Hp) f32, lane-aligned
                gh = jnp.dot(h_prev.astype(jnp.bfloat16), whh,
                             preferred_element_type=jnp.float32)
                r = jax.nn.sigmoid(gi_t[:, :Hp] + gh[:, :Hp])
                z = jax.nn.sigmoid(gi_t[:, Hp:2 * Hp] + gh[:, Hp:2 * Hp])
                n = jnp.tanh(gi_t[:, 2 * Hp:] + r * (gh[:, 2 * Hp:] + bhn))
                h_new = n + z * (h_prev - n)                     # == (1-z)*n + z*h
                if write_seq:
                    hseq_ref[t] = h_new                          # whole-tile store
                return h_new

            h0 = jnp.zeros((Bp, Hp), jnp.float32)
            return jax.lax.fori_loop(0, T, step, h0, unroll=unroll)

        # layer 0 reads the (time-major, flattened, bf16) input directly
        h_last = run_layer(0, x_ref[...], *layer_refs[0])
        for layer in range(1, num_layers):
            x2d = hseq_ref[...].reshape(T * Bp, Hp).astype(jnp.bfloat16)
            h_last = run_layer(layer, x2d, *layer_refs[layer])

        # fused final Linear on the last timestep's hidden state (lane-dense out)
        out = (jnp.dot(h_last.astype(jnp.bfloat16), w_out_ref[...],
                       preferred_element_type=jnp.float32) + b_out_ref[...])
        out_ref[...] = out.astype(out_ref.dtype)

    return kernel


# ----------------------------------------------------------------------------
# Parameter prep: gate-aligned padding + bias folding (inside jit, cheap)
# ----------------------------------------------------------------------------
def _prep_layer_params(w_ih, w_hh, b_ih, b_hh, H, Hp, pad_in_rows):
    padw = Hp - H

    def pad_gate_lanes(a):
        # split [r|z|n] along the last axis and pad each gate to Hp lanes (zeros)
        cfg = [(0, 0)] * (a.ndim - 1) + [(0, padw)]
        return jnp.concatenate(
            [jnp.pad(a[..., :H], cfg),
             jnp.pad(a[..., H:2 * H], cfg),
             jnp.pad(a[..., 2 * H:], cfg)], axis=-1)

    # fold b_hr, b_hz into b_ih (they sit outside the r-gate multiply)
    b_comb = b_ih + jnp.concatenate(
        [b_hh[:, :2 * H], jnp.zeros((1, H), b_hh.dtype)], axis=-1)
    b_hn = b_hh[:, 2 * H:]

    w_ih_p = pad_gate_lanes(w_ih)
    if pad_in_rows:                                   # layers > 0: input rows H -> Hp
        w_ih_p = jnp.pad(w_ih_p, ((0, padw), (0, 0)))
    w_hh_p = jnp.pad(pad_gate_lanes(w_hh), ((0, padw), (0, 0)))
    b_comb_p = pad_gate_lanes(b_comb)
    b_hn_p = jnp.pad(b_hn, ((0, 0), (0, padw)))

    return (w_ih_p.astype(jnp.bfloat16), w_hh_p.astype(jnp.bfloat16),
            b_comb_p.astype(jnp.float32), b_hn_p.astype(jnp.float32))


# ----------------------------------------------------------------------------
# Wrapper
# ----------------------------------------------------------------------------
@jax.jit
def time_gru_forward(x, params):
    """x: (B, T, input_size) batch_first (like the PyTorch module) -> (B, output_size)."""
    B, T, D_in = x.shape
    layers = params["layers"]
    num_layers = len(layers)
    H = layers[0][1].shape[0]                 # w_hh: (H, 3H)
    O = params["w_out"].shape[-1]

    Bp = _round_up(max(B, 1), 8)              # pad batch to a full sublane tile
    Hp = _round_up(H, 128)                    # pad each gate to a 128-lane boundary
    Op = _round_up(O, 128)                    # lane-dense output store
    unroll = max(1, min(8, T))

    # batch_first (B,T,D) -> time-major, pad batch, flatten, cast to bf16 once
    # (no early f32 upcast; halves the x DMA when the input is narrow).
    x_tm = jnp.transpose(x, (1, 0, 2))                         # (T, B, D)
    x_tm = jnp.pad(x_tm, ((0, 0), (0, Bp - B), (0, 0)))
    x2d = x_tm.reshape(T * Bp, D_in).astype(jnp.bfloat16)

    kernel = _make_fused_gru_kernel(num_layers, T, Bp, Hp, unroll)

    in_arrays = [x2d]
    in_specs = [pl.BlockSpec((T * Bp, D_in), lambda i: (0, 0))]
    for layer_idx, (w_ih, w_hh, b_ih, b_hh) in enumerate(layers):
        w_ih_p, w_hh_p, b_ih_p, b_hn_p = _prep_layer_params(
            w_ih, w_hh, b_ih, b_hh, H, Hp, pad_in_rows=(layer_idx > 0))
        d_in_l = w_ih_p.shape[0]
        in_arrays += [w_ih_p, w_hh_p, b_ih_p, b_hn_p]
        in_specs += [
            pl.BlockSpec((d_in_l, 3 * Hp), lambda i: (0, 0)),
            pl.BlockSpec((Hp, 3 * Hp), lambda i: (0, 0)),
            pl.BlockSpec((1, 3 * Hp), lambda i: (0, 0)),
            pl.BlockSpec((1, Hp), lambda i: (0, 0)),
        ]
    w_out_p = jnp.pad(params["w_out"], ((0, Hp - H), (0, Op - O))).astype(jnp.bfloat16)
    b_out_p = jnp.pad(params["b_out"], ((0, 0), (0, Op - O))).astype(jnp.float32)
    in_arrays += [w_out_p, b_out_p]
    in_specs += [pl.BlockSpec((Hp, Op), lambda i: (0, 0)),
                 pl.BlockSpec((1, Op), lambda i: (0, 0))]

    hseq_T = T if num_layers > 1 else 1

    # explicit VMEM budget: inputs/outputs (double-buffered) + scratch + headroom
    def _nbytes(a):
        return int(a.size) * jnp.dtype(a.dtype).itemsize
    io_bytes = sum(_nbytes(a) for a in in_arrays) + Bp * Op * 4
    scratch_bytes = T * Bp * 3 * Hp * 4 + hseq_T * Bp * Hp * 4
    vmem_limit = min(128 * 1024 * 1024,
                     int(2 * io_bytes + scratch_bytes) + (8 << 20))

    out_padded = pl.pallas_call(
        kernel,
        out_shape=jax.ShapeDtypeStruct((Bp, Op), jnp.float32),
        grid_spec=pltpu.PrefetchScalarGridSpec(
            num_scalar_prefetch=0,
            grid=(1,),                                      # single fused program
            in_specs=in_specs,
            out_specs=pl.BlockSpec((Bp, Op), lambda i: (0, 0)),
            scratch_shapes=[
                pltpu.VMEM((T, Bp, 3 * Hp), jnp.float32),   # hoisted input projections
                pltpu.VMEM((hseq_T, Bp, Hp), jnp.float32),  # inter-layer hidden sequence
            ],
        ),
        compiler_params=pltpu.CompilerParams(
            dimension_semantics=("arbitrary",),
            vmem_limit_bytes=vmem_limit),
    )(*in_arrays)
    return out_padded[:B, :O]


# ----------------------------------------------------------------------------
# Parameters (PyTorch-shaped, stored pre-transposed & gate-concatenated [r|z|n])
# ----------------------------------------------------------------------------
def init_time_gru_params(key, input_size, hidden_size, num_layers, output_size):
    k = 1.0 / jnp.sqrt(jnp.float32(hidden_size))
    layers = []
    for layer in range(num_layers):
        d_in = input_size if layer == 0 else hidden_size
        key, k1, k2, k3, k4 = jax.random.split(key, 5)
        # PyTorch weight_ih_l{k}: (3H, d_in) rows [r; z; n] -> here (d_in, 3H) cols [r|z|n]
        w_ih = jax.random.uniform(k1, (d_in, 3 * hidden_size), jnp.float32, -k, k)
        w_hh = jax.random.uniform(k2, (hidden_size, 3 * hidden_size), jnp.float32, -k, k)
        b_ih = jax.random.uniform(k3, (1, 3 * hidden_size), jnp.float32, -k, k)
        b_hh = jax.random.uniform(k4, (1, 3 * hidden_size), jnp.float32, -k, k)
        layers.append((w_ih, w_hh, b_ih, b_hh))
    key, k5, k6 = jax.random.split(key, 3)
    w_out = jax.random.uniform(k5, (hidden_size, output_size), jnp.float32, -k, k)
    b_out = jax.random.uniform(k6, (1, output_size), jnp.float32, -k, k)
    return {"layers": layers, "w_out": w_out, "b_out": b_out}


def time_gru_reference(x, params):
    """Pure-JAX (non-Pallas, f32) reference of the same forward, for a numerics check."""
    x_tm = jnp.transpose(x.astype(jnp.float32), (1, 0, 2))       # (T, B, D)
    B = x.shape[0]
    seq = x_tm
    for (w_ih, w_hh, b_ih, b_hh) in params["layers"]:
        H = w_hh.shape[0]

        def step(h, x_t):
            gi = x_t @ w_ih + b_ih
            gh = h @ w_hh + b_hh
            r = jax.nn.sigmoid(gi[:, :H] + gh[:, :H])
            z = jax.nn.sigmoid(gi[:, H:2 * H] + gh[:, H:2 * H])
            n = jnp.tanh(gi[:, 2 * H:] + r * gh[:, 2 * H:])
            h_new = (1.0 - z) * n + z * h
            return h_new, h_new

        h0 = jnp.zeros((B, H), jnp.float32)
        _, seq = jax.lax.scan(step, h0, seq)
    return seq[-1] @ params["w_out"] + params["b_out"]


if __name__ == "__main__":
    # Small shapes consistent with the module's forward: x (batch, seq_len, input_size)
    batch, seq_len = 2, 8
    input_size, hidden_size, num_layers, output_size = 4, 32, 2, 1

    key = jax.random.PRNGKey(0)
    key, xkey = jax.random.split(key)
    x = jax.random.normal(xkey, (batch, seq_len, input_size), jnp.float32)

    params = init_time_gru_params(key, input_size, hidden_size,
                                  num_layers, output_size)

    out = time_gru_forward(x, params)
    jax.block_until_ready(out)
    assert out.shape == (batch, output_size), out.shape

    ref = time_gru_reference(x, params)
    max_err = float(jnp.max(jnp.abs(out - ref)))
    # bf16 MXU operands (f32 accumulation) -> tolerance loosened vs pure-f32 reference
    assert max_err < 3e-2, f"mismatch vs reference: max_err={max_err}"

    print("KERNEL_OK")
</pallas_src>

<mosaic_0001>
module attributes {stable_mosaic.version = 11 : i64} {
  func.func @kernel(%arg0: i32, %arg1: memref<64x4xbf16, #tpu.memory_space<vmem>>, %arg2: memref<4x384xbf16, #tpu.memory_space<vmem>>, %arg3: memref<128x384xbf16, #tpu.memory_space<vmem>>, %arg4: memref<1x384xf32, #tpu.memory_space<vmem>>, %arg5: memref<1x128xf32, #tpu.memory_space<vmem>>, %arg6: memref<128x384xbf16, #tpu.memory_space<vmem>>, %arg7: memref<128x384xbf16, #tpu.memory_space<vmem>>, %arg8: memref<1x384xf32, #tpu.memory_space<vmem>>, %arg9: memref<1x128xf32, #tpu.memory_space<vmem>>, %arg10: memref<128x128xbf16, #tpu.memory_space<vmem>>, %arg11: memref<1x128xf32, #tpu.memory_space<vmem>>, %arg12: memref<8x128xf32, #tpu.memory_space<vmem>>, %arg13: memref<8x8x384xf32, #tpu.memory_space<vmem>>, %arg14: memref<8x8x128xf32, #tpu.memory_space<vmem>>) attributes {dimension_semantics = [#tpu.dimension_semantics<arbitrary>], iteration_bounds = array<i64: 1>, scalar_prefetch = 0 : i64, scratch_operands = 2 : i64, tpu.core_type = #tpu.core_type<tc>, window_params = [{pipeline_mode = #tpu.pipeline_mode<synchronous>, transform_indices = @transform_0, window_bounds = array<i64: 64, 4>}, {pipeline_mode = #tpu.pipeline_mode<synchronous>, transform_indices = @transform_1, window_bounds = array<i64: 4, 384>}, {pipeline_mode = #tpu.pipeline_mode<synchronous>, transform_indices = @transform_2, window_bounds = array<i64: 128, 384>}, {pipeline_mode = #tpu.pipeline_mode<synchronous>, transform_indices = @transform_3, window_bounds = array<i64: 1, 384>}, {pipeline_mode = #tpu.pipeline_mode<synchronous>, transform_indices = @transform_4, window_bounds = array<i64: 1, 128>}, {pipeline_mode = #tpu.pipeline_mode<synchronous>, transform_indices = @transform_5, window_bounds = array<i64: 128, 384>}, {pipeline_mode = #tpu.pipeline_mode<synchronous>, transform_indices = @transform_6, window_bounds = array<i64: 128, 384>}, {pipeline_mode = #tpu.pipeline_mode<synchronous>, transform_indices = @transform_7, window_bounds = array<i64: 1, 384>}, {pipeline_mode = #tpu.pipeline_mode<synchronous>, transform_indices = @transform_8, window_bounds = array<i64: 1, 128>}, {pipeline_mode = #tpu.pipeline_mode<synchronous>, transform_indices = @transform_9, window_bounds = array<i64: 128, 128>}, {pipeline_mode = #tpu.pipeline_mode<synchronous>, transform_indices = @transform_10, window_bounds = array<i64: 1, 128>}, {pipeline_mode = #tpu.pipeline_mode<synchronous>, transform_indices = @transform_11, window_bounds = array<i64: 8, 128>}]} {
    %c0 = arith.constant 0 : index
    %c0_0 = arith.constant 0 : index
    %0 = vector.load %arg1[%c0, %c0_0] : memref<64x4xbf16, #tpu.memory_space<vmem>>, vector<64x4xbf16>
    %c0_1 = arith.constant 0 : index
    %c0_2 = arith.constant 0 : index
    %1 = vector.load %arg2[%c0_1, %c0_2] : memref<4x384xbf16, #tpu.memory_space<vmem>>, vector<4x384xbf16>
    %cst = arith.constant dense<0.000000e+00> : vector<64x384xf32>
    %2 = tpu.matmul %0, %1, %cst {dimension_numbers = #tpu.dot_dimension_numbers<[1], [0], [0], [1], [0, 0, 1, 1], [], []>} : vector<64x4xbf16>, vector<4x384xbf16>, vector<64x384xf32> -> vector<64x384xf32>
    %c0_3 = arith.constant 0 : index
    %c0_4 = arith.constant 0 : index
    %3 = vector.load %arg4[%c0_3, %c0_4] : memref<1x384xf32, #tpu.memory_space<vmem>>, vector<1x384xf32>
    %4 = vector.broadcast %3 : vector<1x384xf32> to vector<64x384xf32>
    %5 = arith.addf %2, %4 : vector<64x384xf32>
    %6 = vector.shape_cast %5 : vector<64x384xf32> to vector<8x8x384xf32>
    %c0_5 = arith.constant 0 : index
    %c0_6 = arith.constant 0 : index
    %c0_7 = arith.constant 0 : index
    %7 = vector.load %arg13[%c0_5, %c0_6, %c0_7] : memref<8x8x384xf32, #tpu.memory_space<vmem>>, vector<8x8x384xf32>
    tpu.vector_store %arg13[%c0_5, %c0_6, %c0_7], %6 {strides = array<i32>} : memref<8x8x384xf32, #tpu.memory_space<vmem>>, vector<8x8x384xf32>,
    %c0_8 = arith.constant 0 : index
    %c0_9 = arith.constant 0 : index
    %8 = vector.load %arg3[%c0_8, %c0_9] : memref<128x384xbf16, #tpu.memory_space<vmem>>, vector<128x384xbf16>
    %c0_10 = arith.constant 0 : index
    %c0_11 = arith.constant 0 : index
    %9 = vector.load %arg5[%c0_10, %c0_11] : memref<1x128xf32, #tpu.memory_space<vmem>>, vector<1x128xf32>
    %10 = vector.shape_cast %9 : vector<1x128xf32> to vector<1x128xf32>
    %11 = vector.broadcast %10 : vector<1x128xf32> to vector<8x128xf32>
    %cst_12 = arith.constant 0.000000e+00 : f32
    %12 = vector.broadcast %cst_12 : f32 to vector<8x128xf32>
    %c0_i32 = arith.constant 0 : i32
    %13 = arith.index_cast %c0_i32 : i32 to index
    %c0_13 = arith.constant 0 : index
    %c0_14 = arith.constant 0 : index
    %14 = vector.load %arg13[%13, %c0_13, %c0_14] : memref<8x8x384xf32, #tpu.memory_space<vmem>>, vector<1x8x384xf32>
    %15 = vector.shape_cast %14 : vector<1x8x384xf32> to vector<8x384xf32>
    %16 = arith.truncf %12 : vector<8x128xf32> to vector<8x128xbf16>
    %cst_15 = arith.constant dense<0.000000e+00> : vector<8x384xf32>
    %17 = tpu.matmul %16, %8, %cst_15 {dimension_numbers = #tpu.dot_dimension_numbers<[1], [0], [0], [1], [0, 0, 1, 1], [], []>} : vector<8x128xbf16>, vector<128x384xbf16>, vector<8x384xf32> -> vector<8x384xf32>
    %18 = vector.extract_strided_slice %15 {offsets = [0, 0], sizes = [8, 128], strides = [1, 1]} : vector<8x384xf32> to vector<8x128xf32>
    %19 = vector.extract_strided_slice %17 {offsets = [0, 0], sizes = [8, 128], strides = [1, 1]} : vector<8x384xf32> to vector<8x128xf32>
    %20 = arith.addf %18, %19 : vector<8x128xf32>
    %21 = arith.negf %20 : vector<8x128xf32>
    %22 = math.exp %21 : vector<8x128xf32>
    %cst_16 = arith.constant 1.000000e+00 : f32
    %23 = vector.broadcast %cst_16 : f32 to vector<8x128xf32>
    %24 = arith.addf %23, %22 : vector<8x128xf32>
    %25 = arith.divf %23, %24 : vector<8x128xf32>
    %26 = vector.extract_strided_slice %15 {offsets = [0, 128], sizes = [8, 128], strides = [1, 1]} : vector<8x384xf32> to vector<8x128xf32>
    %27 = vector.extract_strided_slice %17 {offsets = [0, 128], sizes = [8, 128], strides = [1, 1]} : vector<8x384xf32> to vector<8x128xf32>
    %28 = arith.addf %26, %27 : vector<8x128xf32>
    %29 = arith.negf %28 : vector<8x128xf32>
    %30 = math.exp %29 : vector<8x128xf32>
    %cst_17 = arith.constant 1.000000e+00 : f32
    %31 = vector.broadcast %cst_17 : f32 to vector<8x128xf32>
    %32 = arith.addf %31, %30 : vector<8x128xf32>
    %33 = arith.divf %31, %32 : vector<8x128xf32>
    %34 = vector.extract_strided_slice %15 {offsets = [0, 256], sizes = [8, 128], strides = [1, 1]} : vector<8x384xf32> to vector<8x128xf32>
    %35 = vector.extract_strided_slice %17 {offsets = [0, 256], sizes = [8, 128], strides = [1, 1]} : vector<8x384xf32> to vector<8x128xf32>
    %36 = arith.addf %35, %11 : vector<8x128xf32>
    %37 = arith.mulf %25, %36 : vector<8x128xf32>
    %38 = arith.addf %34, %37 : vector<8x128xf32>
    %39 = math.tanh %38 : vector<8x128xf32>
    %40 = arith.subf %12, %39 : vector<8x128xf32>
    %41 = arith.mulf %33, %40 : vector<8x128xf32>
    %42 = arith.addf %39, %41 : vector<8x128xf32>
    %43 = arith.index_cast %c0_i32 : i32 to index
    %c0_18 = arith.constant 0 : index
    %c0_19 = arith.constant 0 : index
    %44 = vector.load %arg14[%43, %c0_18, %c0_19] : memref<8x8x128xf32, #tpu.memory_space<vmem>>, vector<1x8x128xf32>
    %45 = vector.shape_cast %44 : vector<1x8x128xf32> to vector<8x128xf32>
    %46 = vector.shape_cast %42 : vector<8x128xf32> to vector<1x8x128xf32>
    tpu.vector_store %arg14[%43, %c0_18, %c0_19], %46 {strides = array<i32>} : memref<8x8x128xf32, #tpu.memory_space<vmem>>, vector<1x8x128xf32>,
    %c1_i32 = arith.constant 1 : i32
    %47 = arith.index_cast %c1_i32 : i32 to index
    %c0_20 = arith.constant 0 : index
    %c0_21 = arith.constant 0 : index
    %48 = vector.load %arg13[%47, %c0_20, %c0_21] : memref<8x8x384xf32, #tpu.memory_space<vmem>>, vector<1x8x384xf32>
    %49 = vector.shape_cast %48 : vector<1x8x384xf32> to vector<8x384xf32>
    %50 = arith.truncf %42 : vector<8x128xf32> to vector<8x128xbf16>
    %cst_22 = arith.constant dense<0.000000e+00> : vector<8x384xf32>
    %51 = tpu.matmul %50, %8, %cst_22 {dimension_numbers = #tpu.dot_dimension_numbers<[1], [0], [0], [1], [0, 0, 1, 1], [], []>} : vector<8x128xbf16>, vector<128x384xbf16>, vector<8x384xf32> -> vector<8x384xf32>
    %52 = vector.extract_strided_slice %49 {offsets = [0, 0], sizes = [8, 128], strides = [1, 1]} : vector<8x384xf32> to vector<8x128xf32>
    %53 = vector.extract_strided_slice %51 {offsets = [0, 0], sizes = [8, 128], strides = [1, 1]} : vector<8x384xf32> to vector<8x128xf32>
    %54 = arith.addf %52, %53 : vector<8x128xf32>
    %55 = arith.negf %54 : vector<8x128xf32>
    %56 = math.exp %55 : vector<8x128xf32>
    %cst_23 = arith.constant 1.000000e+00 : f32
    %57 = vector.broadcast %cst_23 : f32 to vector<8x128xf32>
    %58 = arith.addf %57, %56 : vector<8x128xf32>
    %59 = arith.divf %57, %58 : vector<8x128xf32>
    %60 = vector.extract_strided_slice %49 {offsets = [0, 128], sizes = [8, 128], strides = [1, 1]} : vector<8x384xf32> to vector<8x128xf32>
    %61 = vector.extract_strided_slice %51 {offsets = [0, 128], sizes = [8, 128], strides = [1, 1]} : vector<8x384xf32> to vector<8x128xf32>
    %62 = arith.addf %60, %61 : vector<8x128xf32>
    %63 = arith.negf %62 : vector<8x128xf32>
    %64 = math.exp %63 : vector<8x128xf32>
    %cst_24 = arith.constant 1.000000e+00 : f32
    %65 = vector.broadcast %cst_24 : f32 to vector<8x128xf32>
    %66 = arith.addf %65, %64 : vector<8x128xf32>
    %67 = arith.divf %65, %66 : vector<8x128xf32>
    %68 = vector.extract_strided_slice %49 {offsets = [0, 256], sizes = [8, 128], strides = [1, 1]} : vector<8x384xf32> to vector<8x128xf32>
    %69 = vector.extract_strided_slice %51 {offsets = [0, 256], sizes = [8, 128], strides = [1, 1]} : vector<8x384xf32> to vector<8x128xf32>
    %70 = arith.addf %69, %11 : vector<8x128xf32>
    %71 = arith.mulf %59, %70 : vector<8x128xf32>
    %72 = arith.addf %68, %71 : vector<8x128xf32>
    %73 = math.tanh %72 : vector<8x128xf32>
    %74 = arith.subf %42, %73 : vector<8x128xf32>
    %75 = arith.mulf %67, %74 : vector<8x128xf32>
    %76 = arith.addf %73, %75 : vector<8x128xf32>
    %77 = arith.index_cast %c1_i32 : i32 to index
    %c0_25 = arith.constant 0 : index
    %c0_26 = arith.constant 0 : index
    %78 = vector.load %arg14[%77, %c0_25, %c0_26] : memref<8x8x128xf32, #tpu.memory_space<vmem>>, vector<1x8x128xf32>
    %79 = vector.shape_cast %78 : vector<1x8x128xf32> to vector<8x128xf32>
    %80 = vector.shape_cast %76 : vector<8x128xf32> to vector<1x8x128xf32>
    tpu.vector_store %arg14[%77, %c0_25, %c0_26], %80 {strides = array<i32>} : memref<8x8x128xf32, #tpu.memory_space<vmem>>, vector<1x8x128xf32>,
    %c2_i32 = arith.constant 2 : i32
    %81 = arith.index_cast %c2_i32 : i32 to index
    %c0_27 = arith.constant 0 : index
    %c0_28 = arith.constant 0 : index
    %82 = vector.load %arg13[%81, %c0_27, %c0_28] : memref<8x8x384xf32, #tpu.memory_space<vmem>>, vector<1x8x384xf32>
    %83 = vector.shape_cast %82 : vector<1x8x384xf32> to vector<8x384xf32>
    %84 = arith.truncf %76 : vector<8x128xf32> to vector<8x128xbf16>
    %cst_29 = arith.constant dense<0.000000e+00> : vector<8x384xf32>
    %85 = tpu.matmul %84, %8, %cst_29 {dimension_numbers = #tpu.dot_dimension_numbers<[1], [0], [0], [1], [0, 0, 1, 1], [], []>} : vector<8x128xbf16>, vector<128x384xbf16>, vector<8x384xf32> -> vector<8x384xf32>
    %86 = vector.extract_strided_slice %83 {offsets = [0, 0], sizes = [8, 128], strides = [1, 1]} : vector<8x384xf32> to vector<8x128xf32>
    %87 = vector.extract_strided_slice %85 {offsets = [0, 0], sizes = [8, 128], strides = [1, 1]} : vector<8x384xf32> to vector<8x128xf32>
    %88 = arith.addf %86, %87 : vector<8x128xf32>
    %89 = arith.negf %88 : vector<8x128xf32>
    %90 = math.exp %89 : vector<8x128xf32>
    %cst_30 = arith.constant 1.000000e+00 : f32
    %91 = vector.broadcast %cst_30 : f32 to vector<8x128xf32>
    %92 = arith.addf %91, %90 : vector<8x128xf32>
    %93 = arith.divf %91, %92 : vector<8x128xf32>
    %94 = vector.extract_strided_slice %83 {offsets = [0, 128], sizes = [8, 128], strides = [1, 1]} : vector<8x384xf32> to vector<8x128xf32>
    %95 = vector.extract_strided_slice %85 {offsets = [0, 128], sizes = [8, 128], strides = [1, 1]} : vector<8x384xf32> to vector<8x128xf32>
    %96 = arith.addf %94, %95 : vector<8x128xf32>
    %97 = arith.negf %96 : vector<8x128xf32>
    %98 = math.exp %97 : vector<8x128xf32>
    %cst_31 = arith.constant 1.000000e+00 : f32
    %99 = vector.broadcast %cst_31 : f32 to vector<8x128xf32>
    %100 = arith.addf %99, %98 : vector<8x128xf32>
    %101 = arith.divf %99, %100 : vector<8x128xf32>
    %102 = vector.extract_strided_slice %83 {offsets = [0, 256], sizes = [8, 128], strides = [1, 1]} : vector<8x384xf32> to vector<8x128xf32>
    %103 = vector.extract_strided_slice %85 {offsets = [0, 256], sizes = [8, 128], strides = [1, 1]} : vector<8x384xf32> to vector<8x128xf32>
    %104 = arith.addf %103, %11 : vector<8x128xf32>
    %105 = arith.mulf %93, %104 : vector<8x128xf32>
    %106 = arith.addf %102, %105 : vector<8x128xf32>
    %107 = math.tanh %106 : vector<8x128xf32>
    %108 = arith.subf %76, %107 : vector<8x128xf32>
    %109 = arith.mulf %101, %108 : vector<8x128xf32>
    %110 = arith.addf %107, %109 : vector<8x128xf32>
    %111 = arith.index_cast %c2_i32 : i32 to index
    %c0_32 = arith.constant 0 : index
    %c0_33 = arith.constant 0 : index
    %112 = vector.load %arg14[%111, %c0_32, %c0_33] : memref<8x8x128xf32, #tpu.memory_space<vmem>>, vector<1x8x128xf32>
    %113 = vector.shape_cast %112 : vector<1x8x128xf32> to vector<8x128xf32>
    %114 = vector.shape_cast %110 : vector<8x128xf32> to vector<1x8x128xf32>
    tpu.vector_store %arg14[%111, %c0_32, %c0_33], %114 {strides = array<i32>} : memref<8x8x128xf32, #tpu.memory_space<vmem>>, vector<1x8x128xf32>,
    %c3_i32 = arith.constant 3 : i32
    %115 = arith.index_cast %c3_i32 : i32 to index
    %c0_34 = arith.constant 0 : index
    %c0_35 = arith.constant 0 : index
    %116 = vector.load %arg13[%115, %c0_34, %c0_35] : memref<8x8x384xf32, #tpu.memory_space<vmem>>, vector<1x8x384xf32>
    %117 = vector.shape_cast %116 : vector<1x8x384xf32> to vector<8x384xf32>
    %118 = arith.truncf %110 : vector<8x128xf32> to vector<8x128xbf16>
    %cst_36 = arith.constant dense<0.000000e+00> : vector<8x384xf32>
    %119 = tpu.matmul %118, %8, %cst_36 {dimension_numbers = #tpu.dot_dimension_numbers<[1], [0], [0], [1], [0, 0, 1, 1], [], []>} : vector<8x128xbf16>, vector<128x384xbf16>, vector<8x384xf32> -> vector<8x384xf32>
    %120 = vector.extract_strided_slice %117 {offsets = [0, 0], sizes = [8, 128], strides = [1, 1]} : vector<8x384xf32> to vector<8x128xf32>
    %121 = vector.extract_strided_slice %119 {offsets = [0, 0], sizes = [8, 128], strides = [1, 1]} : vector<8x384xf32> to vector<8x128xf32>
    %122 = arith.addf %120, %121 : vector<8x128xf32>
    %123 = arith.negf %122 : vector<8x128xf32>
    %124 = math.exp %123 : vector<8x128xf32>
    %cst_37 = arith.constant 1.000000e+00 : f32
    %125 = vector.broadcast %cst_37 : f32 to vector<8x128xf32>
    %126 = arith.addf %125, %124 : vector<8x128xf32>
    %127 = arith.divf %125, %126 : vector<8x128xf32>
    %128 = vector.extract_strided_slice %117 {offsets = [0, 128], sizes = [8, 128], strides = [1, 1]} : vector<8x384xf32> to vector<8x128xf32>
    %129 = vector.extract_strided_slice %119 {offsets = [0, 128], sizes = [8, 128], strides = [1, 1]} : vector<8x384xf32> to vector<8x128xf32>
    %130 = arith.addf %128, %129 : vector<8x128xf32>
    %131 = arith.negf %130 : vector<8x128xf32>
    %132 = math.exp %131 : vector<8x128xf32>
    %cst_38 = arith.constant 1.000000e+00 : f32
    %133 = vector.broadcast %cst_38 : f32 to vector<8x128xf32>
    %134 = arith.addf %133, %132 : vector<8x128xf32>
    %135 = arith.divf %133, %134 : vector<8x128xf32>
    %136 = vector.extract_strided_slice %117 {offsets = [0, 256], sizes = [8, 128], strides = [1, 1]} : vector<8x384xf32> to vector<8x128xf32>
    %137 = vector.extract_strided_slice %119 {offsets = [0, 256], sizes = [8, 128], strides = [1, 1]} : vector<8x384xf32> to vector<8x128xf32>
    %138 = arith.addf %137, %11 : vector<8x128xf32>
    %139 = arith.mulf %127, %138 : vector<8x128xf32>
    %140 = arith.addf %136, %139 : vector<8x128xf32>
    %141 = math.tanh %140 : vector<8x128xf32>
    %142 = arith.subf %110, %141 : vector<8x128xf32>
    %143 = arith.mulf %135, %142 : vector<8x128xf32>
    %144 = arith.addf %141, %143 : vector<8x128xf32>
    %145 = arith.index_cast %c3_i32 : i32 to index
    %c0_39 = arith.constant 0 : index
    %c0_40 = arith.constant 0 : index
    %146 = vector.load %arg14[%145, %c0_39, %c0_40] : memref<8x8x128xf32, #tpu.memory_space<vmem>>, vector<1x8x128xf32>
    %147 = vector.shape_cast %146 : vector<1x8x128xf32> to vector<8x128xf32>
    %148 = vector.shape_cast %144 : vector<8x128xf32> to vector<1x8x128xf32>
    tpu.vector_store %arg14[%145, %c0_39, %c0_40], %148 {strides = array<i32>} : memref<8x8x128xf32, #tpu.memory_space<vmem>>, vector<1x8x128xf32>,
    %c4_i32 = arith.constant 4 : i32
    %149 = arith.index_cast %c4_i32 : i32 to index
    %c0_41 = arith.constant 0 : index
    %c0_42 = arith.constant 0 : index
    %150 = vector.load %arg13[%149, %c0_41, %c0_42] : memref<8x8x384xf32, #tpu.memory_space<vmem>>, vector<1x8x384xf32>
    %151 = vector.shape_cast %150 : vector<1x8x384xf32> to vector<8x384xf32>
    %152 = arith.truncf %144 : vector<8x128xf32> to vector<8x128xbf16>
    %cst_43 = arith.constant dense<0.000000e+00> : vector<8x384xf32>
    %153 = tpu.matmul %152, %8, %cst_43 {dimension_numbers = #tpu.dot_dimension_numbers<[1], [0], [0], [1], [0, 0, 1, 1], [], []>} : vector<8x128xbf16>, vector<128x384xbf16>, vector<8x384xf32> -> vector<8x384xf32>
    %154 = vector.extract_strided_slice %151 {offsets = [0, 0], sizes = [8, 128], strides = [1, 1]} : vector<8x384xf32> to vector<8x128xf32>
    %155 = vector.extract_strided_slice %153 {offsets = [0, 0], sizes = [8, 128], strides = [1, 1]} : vector<8x384xf32> to vector<8x128xf32>
    %156 = arith.addf %154, %155 : vector<8x128xf32>
    %157 = arith.negf %156 : vector<8x128xf32>
    %158 = math.exp %157 : vector<8x128xf32>
    %cst_44 = arith.constant 1.000000e+00 : f32
    %159 = vector.broadcast %cst_44 : f32 to vector<8x128xf32>
    %160 = arith.addf %159, %158 : vector<8x128xf32>
    %161 = arith.divf %159, %160 : vector<8x128xf32>
    %162 = vector.extract_strided_slice %151 {offsets = [0, 128], sizes = [8, 128], strides = [1, 1]} : vector<8x384xf32> to vector<8x128xf32>
    %163 = vector.extract_strided_slice %153 {offsets = [0, 128], sizes = [8, 128], strides = [1, 1]} : vector<8x384xf32> to vector<8x128xf32>
    %164 = arith.addf %162, %163 : vector<8x128xf32>
    %165 = arith.negf %164 : vector<8x128xf32>
    %166 = math.exp %165 : vector<8x128xf32>
    %cst_45 = arith.constant 1.000000e+00 : f32
    %167 = vector.broadcast %cst_45 : f32 to vector<8x128xf32>
    %168 = arith.addf %167, %166 : vector<8x128xf32>
    %169 = arith.divf %167, %168 : vector<8x128xf32>
    %170 = vector.extract_strided_slice %151 {offsets = [0, 256], sizes = [8, 128], strides = [1, 1]} : vector<8x384xf32> to vector<8x128xf32>
    %171 = vector.extract_strided_slice %153 {offsets = [0, 256], sizes = [8, 128], strides = [1, 1]} : vector<8x384xf32> to vector<8x128xf32>
    %172 = arith.addf %171, %11 : vector<8x128xf32>
    %173 = arith.mulf %161, %172 : vector<8x128xf32>
    %174 = arith.addf %170, %173 : vector<8x128xf32>
    %175 = math.tanh %174 : vector<8x128xf32>
    %176 = arith.subf %144, %175 : vector<8x128xf32>
    %177 = arith.mulf %169, %176 : vector<8x128xf32>
    %178 = arith.addf %175, %177 : vector<8x128xf32>
    %179 = arith.index_cast %c4_i32 : i32 to index
    %c0_46 = arith.constant 0 : index
    %c0_47 = arith.constant 0 : index
    %180 = vector.load %arg14[%179, %c0_46, %c0_47] : memref<8x8x128xf32, #tpu.memory_space<vmem>>, vector<1x8x128xf32>
    %181 = vector.shape_cast %180 : vector<1x8x128xf32> to vector<8x128xf32>
    %182 = vector.shape_cast %178 : vector<8x128xf32> to vector<1x8x128xf32>
    tpu.vector_store %arg14[%179, %c0_46, %c0_47], %182 {strides = array<i32>} : memref<8x8x128xf32, #tpu.memory_space<vmem>>, vector<1x8x128xf32>,
    %c5_i32 = arith.constant 5 : i32
    %183 = arith.index_cast %c5_i32 : i32 to index
    %c0_48 = arith.constant 0 : index
    %c0_49 = arith.constant 0 : index
    %184 = vector.load %arg13[%183, %c0_48, %c0_49] : memref<8x8x384xf32, #tpu.memory_space<vmem>>, vector<1x8x384xf32>
    %185 = vector.shape_cast %184 : vector<1x8x384xf32> to vector<8x384xf32>
    %186 = arith.truncf %178 : vector<8x128xf32> to vector<8x128xbf16>
    %cst_50 = arith.constant dense<0.000000e+00> : vector<8x384xf32>
    %187 = tpu.matmul %186, %8, %cst_50 {dimension_numbers = #tpu.dot_dimension_numbers<[1], [0], [0], [1], [0, 0, 1, 1], [], []>} : vector<8x128xbf16>, vector<128x384xbf16>, vector<8x384xf32> -> vector<8x384xf32>
    %188 = vector.extract_strided_slice %185 {offsets = [0, 0], sizes = [8, 128], strides = [1, 1]} : vector<8x384xf32> to vector<8x128xf32>
    %189 = vector.extract_strided_slice %187 {offsets = [0, 0], sizes = [8, 128], strides = [1, 1]} : vector<8x384xf32> to vector<8x128xf32>
    %190 = arith.addf %188, %189 : vector<8x128xf32>
    %191 = arith.negf %190 : vector<8x128xf32>
    %192 = math.exp %191 : vector<8x128xf32>
    %cst_51 = arith.constant 1.000000e+00 : f32
    %193 = vector.broadcast %cst_51 : f32 to vector<8x128xf32>
    %194 = arith.addf %193, %192 : vector<8x128xf32>
    %195 = arith.divf %193, %194 : vector<8x128xf32>
    %196 = vector.extract_strided_slice %185 {offsets = [0, 128], sizes = [8, 128], strides = [1, 1]} : vector<8x384xf32> to vector<8x128xf32>
    %197 = vector.extract_strided_slice %187 {offsets = [0, 128], sizes = [8, 128], strides = [1, 1]} : vector<8x384xf32> to vector<8x128xf32>
    %198 = arith.addf %196, %197 : vector<8x128xf32>
    %199 = arith.negf %198 : vector<8x128xf32>
    %200 = math.exp %199 : vector<8x128xf32>
    %cst_52 = arith.constant 1.000000e+00 : f32
    %201 = vector.broadcast %cst_52 : f32 to vector<8x128xf32>
    %202 = arith.addf %201, %200 : vector<8x128xf32>
    %203 = arith.divf %201, %202 : vector<8x128xf32>
    %204 = vector.extract_strided_slice %185 {offsets = [0, 256], sizes = [8, 128], strides = [1, 1]} : vector<8x384xf32> to vector<8x128xf32>
    %205 = vector.extract_strided_slice %187 {offsets = [0, 256], sizes = [8, 128], strides = [1, 1]} : vector<8x384xf32> to vector<8x128xf32>
    %206 = arith.addf %205, %11 : vector<8x128xf32>
    %207 = arith.mulf %195, %206 : vector<8x128xf32>
    %208 = arith.addf %204, %207 : vector<8x128xf32>
    %209 = math.tanh %208 : vector<8x128xf32>
    %210 = arith.subf %178, %209 : vector<8x128xf32>
    %211 = arith.mulf %203, %210 : vector<8x128xf32>
    %212 = arith.addf %209, %211 : vector<8x128xf32>
    %213 = arith.index_cast %c5_i32 : i32 to index
    %c0_53 = arith.constant 0 : index
    %c0_54 = arith.constant 0 : index
    %214 = vector.load %arg14[%213, %c0_53, %c0_54] : memref<8x8x128xf32, #tpu.memory_space<vmem>>, vector<1x8x128xf32>
    %215 = vector.shape_cast %214 : vector<1x8x128xf32> to vector<8x128xf32>
    %216 = vector.shape_cast %212 : vector<8x128xf32> to vector<1x8x128xf32>
    tpu.vector_store %arg14[%213, %c0_53, %c0_54], %216 {strides = array<i32>} : memref<8x8x128xf32, #tpu.memory_space<vmem>>, vector<1x8x128xf32>,
    %c6_i32 = arith.constant 6 : i32
    %217 = arith.index_cast %c6_i32 : i32 to index
    %c0_55 = arith.constant 0 : index
    %c0_56 = arith.constant 0 : index
    %218 = vector.load %arg13[%217, %c0_55, %c0_56] : memref<8x8x384xf32, #tpu.memory_space<vmem>>, vector<1x8x384xf32>
    %219 = vector.shape_cast %218 : vector<1x8x384xf32> to vector<8x384xf32>
    %220 = arith.truncf %212 : vector<8x128xf32> to vector<8x128xbf16>
    %cst_57 = arith.constant dense<0.000000e+00> : vector<8x384xf32>
    %221 = tpu.matmul %220, %8, %cst_57 {dimension_numbers = #tpu.dot_dimension_numbers<[1], [0], [0], [1], [0, 0, 1, 1], [], []>} : vector<8x128xbf16>, vector<128x384xbf16>, vector<8x384xf32> -> vector<8x384xf32>
    %222 = vector.extract_strided_slice %219 {offsets = [0, 0], sizes = [8, 128], strides = [1, 1]} : vector<8x384xf32> to vector<8x128xf32>
    %223 = vector.extract_strided_slice %221 {offsets = [0, 0], sizes = [8, 128], strides = [1, 1]} : vector<8x384xf32> to vector<8x128xf32>
    %224 = arith.addf %222, %223 : vector<8x128xf32>
    %225 = arith.negf %224 : vector<8x128xf32>
    %226 = math.exp %225 : vector<8x128xf32>
    %cst_58 = arith.constant 1.000000e+00 : f32
    %227 = vector.broadcast %cst_58 : f32 to vector<8x128xf32>
    %228 = arith.addf %227, %226 : vector<8x128xf32>
    %229 = arith.divf %227, %228 : vector<8x128xf32>
    %230 = vector.extract_strided_slice %219 {offsets = [0, 128], sizes = [8, 128], strides = [1, 1]} : vector<8x384xf32> to vector<8x128xf32>
    %231 = vector.extract_strided_slice %221 {offsets = [0, 128], sizes = [8, 128], strides = [1, 1]} : vector<8x384xf32> to vector<8x128xf32>
    %232 = arith.addf %230, %231 : vector<8x128xf32>
    %233 = arith.negf %232 : vector<8x128xf32>
    %234 = math.exp %233 : vector<8x128xf32>
    %cst_59 = arith.constant 1.000000e+00 : f32
    %235 = vector.broadcast %cst_59 : f32 to vector<8x128xf32>
    %236 = arith.addf %235, %234 : vector<8x128xf32>
    %237 = arith.divf %235, %236 : vector<8x128xf32>
    %238 = vector.extract_strided_slice %219 {offsets = [0, 256], sizes = [8, 128], strides = [1, 1]} : vector<8x384xf32> to vector<8x128xf32>
    %239 = vector.extract_strided_slice %221 {offsets = [0, 256], sizes = [8, 128], strides = [1, 1]} : vector<8x384xf32> to vector<8x128xf32>
    %240 = arith.addf %239, %11 : vector<8x128xf32>
    %241 = arith.mulf %229, %240 : vector<8x128xf32>
    %242 = arith.addf %238, %241 : vector<8x128xf32>
    %243 = math.tanh %242 : vector<8x128xf32>
    %244 = arith.subf %212, %243 : vector<8x128xf32>
    %245 = arith.mulf %237, %244 : vector<8x128xf32>
    %246 = arith.addf %243, %245 : vector<8x128xf32>
    %247 = arith.index_cast %c6_i32 : i32 to index
    %c0_60 = arith.constant 0 : index
    %c0_61 = arith.constant 0 : index
    %248 = vector.load %arg14[%247, %c0_60, %c0_61] : memref<8x8x128xf32, #tpu.memory_space<vmem>>, vector<1x8x128xf32>
    %249 = vector.shape_cast %248 : vector<1x8x128xf32> to vector<8x128xf32>
    %250 = vector.shape_cast %246 : vector<8x128xf32> to vector<1x8x128xf32>
    tpu.vector_store %arg14[%247, %c0_60, %c0_61], %250 {strides = array<i32>} : memref<8x8x128xf32, #tpu.memory_space<vmem>>, vector<1x8x128xf32>,
    %c7_i32 = arith.constant 7 : i32
    %251 = arith.index_cast %c7_i32 : i32 to index
    %c0_62 = arith.constant 0 : index
    %c0_63 = arith.constant 0 : index
    %252 = vector.load %arg13[%251, %c0_62, %c0_63] : memref<8x8x384xf32, #tpu.memory_space<vmem>>, vector<1x8x384xf32>
    %253 = vector.shape_cast %252 : vector<1x8x384xf32> to vector<8x384xf32>
    %254 = arith.truncf %246 : vector<8x128xf32> to vector<8x128xbf16>
    %cst_64 = arith.constant dense<0.000000e+00> : vector<8x384xf32>
    %255 = tpu.matmul %254, %8, %cst_64 {dimension_numbers = #tpu.dot_dimension_numbers<[1], [0], [0], [1], [0, 0, 1, 1], [], []>} : vector<8x128xbf16>, vector<128x384xbf16>, vector<8x384xf32> -> vector<8x384xf32>
    %256 = vector.extract_strided_slice %253 {offsets = [0, 0], sizes = [8, 128], strides = [1, 1]} : vector<8x384xf32> to vector<8x128xf32>
    %257 = vector.extract_strided_slice %255 {offsets = [0, 0], sizes = [8, 128], strides = [1, 1]} : vector<8x384xf32> to vector<8x128xf32>
    %258 = arith.addf %256, %257 : vector<8x128xf32>
    %259 = arith.negf %258 : vector<8x128xf32>
    %260 = math.exp %259 : vector<8x128xf32>
    %cst_65 = arith.constant 1.000000e+00 : f32
    %261 = vector.broadcast %cst_65 : f32 to vector<8x128xf32>
    %262 = arith.addf %261, %260 : vector<8x128xf32>
    %263 = arith.divf %261, %262 : vector<8x128xf32>
    %264 = vector.extract_strided_slice %253 {offsets = [0, 128], sizes = [8, 128], strides = [1, 1]} : vector<8x384xf32> to vector<8x128xf32>
    %265 = vector.extract_strided_slice %255 {offsets = [0, 128], sizes = [8, 128], strides = [1, 1]} : vector<8x384xf32> to vector<8x128xf32>
    %266 = arith.addf %264, %265 : vector<8x128xf32>
    %267 = arith.negf %266 : vector<8x128xf32>
    %268 = math.exp %267 : vector<8x128xf32>
    %cst_66 = arith.constant 1.000000e+00 : f32
    %269 = vector.broadcast %cst_66 : f32 to vector<8x128xf32>
    %270 = arith.addf %269, %268 : vector<8x128xf32>
    %271 = arith.divf %269, %270 : vector<8x128xf32>
    %272 = vector.extract_strided_slice %253 {offsets = [0, 256], sizes = [8, 128], strides = [1, 1]} : vector<8x384xf32> to vector<8x128xf32>
    %273 = vector.extract_strided_slice %255 {offsets = [0, 256], sizes = [8, 128], strides = [1, 1]} : vector<8x384xf32> to vector<8x128xf32>
    %274 = arith.addf %273, %11 : vector<8x128xf32>
    %275 = arith.mulf %263, %274 : vector<8x128xf32>
    %276 = arith.addf %272, %275 : vector<8x128xf32>
    %277 = math.tanh %276 : vector<8x128xf32>
    %278 = arith.subf %246, %277 : vector<8x128xf32>
    %279 = arith.mulf %271, %278 : vector<8x128xf32>
    %280 = arith.addf %277, %279 : vector<8x128xf32>
    %281 = arith.index_cast %c7_i32 : i32 to index
    %c0_67 = arith.constant 0 : index
    %c0_68 = arith.constant 0 : index
    %282 = vector.load %arg14[%281, %c0_67, %c0_68] : memref<8x8x128xf32, #tpu.memory_space<vmem>>, vector<1x8x128xf32>
    %283 = vector.shape_cast %282 : vector<1x8x128xf32> to vector<8x128xf32>
    %284 = vector.shape_cast %280 : vector<8x128xf32> to vector<1x8x128xf32>
    tpu.vector_store %arg14[%281, %c0_67, %c0_68], %284 {strides = array<i32>} : memref<8x8x128xf32, #tpu.memory_space<vmem>>, vector<1x8x128xf32>,
    %c8_i32 = arith.constant 8 : i32
    %c0_69 = arith.constant 0 : index
    %c0_70 = arith.constant 0 : index
    %c0_71 = arith.constant 0 : index
    %285 = vector.load %arg14[%c0_69, %c0_70, %c0_71] : memref<8x8x128xf32, #tpu.memory_space<vmem>>, vector<8x8x128xf32>
    %286 = vector.shape_cast %285 : vector<8x8x128xf32> to vector<64x128xf32>
    %287 = arith.truncf %286 : vector<64x128xf32> to vector<64x128xbf16>
    %c0_72 = arith.constant 0 : index
    %c0_73 = arith.constant 0 : index
    %288 = vector.load %arg6[%c0_72, %c0_73] : memref<128x384xbf16, #tpu.memory_space<vmem>>, vector<128x384xbf16>
    %cst_74 = arith.constant dense<0.000000e+00> : vector<64x384xf32>
    %289 = tpu.matmul %287, %288, %cst_74 {dimension_numbers = #tpu.dot_dimension_numbers<[1], [0], [0], [1], [0, 0, 1, 1], [], []>} : vector<64x128xbf16>, vector<128x384xbf16>, vector<64x384xf32> -> vector<64x384xf32>
    %c0_75 = arith.constant 0 : index
    %c0_76 = arith.constant 0 : index
    %290 = vector.load %arg8[%c0_75, %c0_76] : memref<1x384xf32, #tpu.memory_space<vmem>>, vector<1x384xf32>
    %291 = vector.broadcast %290 : vector<1x384xf32> to vector<64x384xf32>
    %292 = arith.addf %289, %291 : vector<64x384xf32>
    %293 = vector.shape_cast %292 : vector<64x384xf32> to vector<8x8x384xf32>
    %c0_77 = arith.constant 0 : index
    %c0_78 = arith.constant 0 : index
    %c0_79 = arith.constant 0 : index
    %294 = vector.load %arg13[%c0_77, %c0_78, %c0_79] : memref<8x8x384xf32, #tpu.memory_space<vmem>>, vector<8x8x384xf32>
    tpu.vector_store %arg13[%c0_77, %c0_78, %c0_79], %293 {strides = array<i32>} : memref<8x8x384xf32, #tpu.memory_space<vmem>>, vector<8x8x384xf32>,
    %c0_80 = arith.constant 0 : index
    %c0_81 = arith.constant 0 : index
    %295 = vector.load %arg7[%c0_80, %c0_81] : memref<128x384xbf16, #tpu.memory_space<vmem>>, vector<128x384xbf16>
    %c0_82 = arith.constant 0 : index
    %c0_83 = arith.constant 0 : index
    %296 = vector.load %arg9[%c0_82, %c0_83] : memref<1x128xf32, #tpu.memory_space<vmem>>, vector<1x128xf32>
    %297 = vector.shape_cast %296 : vector<1x128xf32> to vector<1x128xf32>
    %298 = vector.broadcast %297 : vector<1x128xf32> to vector<8x128xf32>
    %cst_84 = arith.constant 0.000000e+00 : f32
    %299 = vector.broadcast %cst_84 : f32 to vector<8x128xf32>
    %c0_i32_85 = arith.constant 0 : i32
    %300 = arith.index_cast %c0_i32_85 : i32 to index
    %c0_86 = arith.constant 0 : index
    %c0_87 = arith.constant 0 : index
    %301 = vector.load %arg13[%300, %c0_86, %c0_87] : memref<8x8x384xf32, #tpu.memory_space<vmem>>, vector<1x8x384xf32>
    %302 = vector.shape_cast %301 : vector<1x8x384xf32> to vector<8x384xf32>
    %303 = arith.truncf %299 : vector<8x128xf32> to vector<8x128xbf16>
    %cst_88 = arith.constant dense<0.000000e+00> : vector<8x384xf32>
    %304 = tpu.matmul %303, %295, %cst_88 {dimension_numbers = #tpu.dot_dimension_numbers<[1], [0], [0], [1], [0, 0, 1, 1], [], []>} : vector<8x128xbf16>, vector<128x384xbf16>, vector<8x384xf32> -> vector<8x384xf32>
    %305 = vector.extract_strided_slice %302 {offsets = [0, 0], sizes = [8, 128], strides = [1, 1]} : vector<8x384xf32> to vector<8x128xf32>
    %306 = vector.extract_strided_slice %304 {offsets = [0, 0], sizes = [8, 128], strides = [1, 1]} : vector<8x384xf32> to vector<8x128xf32>
    %307 = arith.addf %305, %306 : vector<8x128xf32>
    %308 = arith.negf %307 : vector<8x128xf32>
    %309 = math.exp %308 : vector<8x128xf32>
    %cst_89 = arith.constant 1.000000e+00 : f32
    %310 = vector.broadcast %cst_89 : f32 to vector<8x128xf32>
    %311 = arith.addf %310, %309 : vector<8x128xf32>
    %312 = arith.divf %310, %311 : vector<8x128xf32>
    %313 = vector.extract_strided_slice %302 {offsets = [0, 128], sizes = [8, 128], strides = [1, 1]} : vector<8x384xf32> to vector<8x128xf32>
    %314 = vector.extract_strided_slice %304 {offsets = [0, 128], sizes = [8, 128], strides = [1, 1]} : vector<8x384xf32> to vector<8x128xf32>
    %315 = arith.addf %313, %314 : vector<8x128xf32>
    %316 = arith.negf %315 : vector<8x128xf32>
    %317 = math.exp %316 : vector<8x128xf32>
    %cst_90 = arith.constant 1.000000e+00 : f32
    %318 = vector.broadcast %cst_90 : f32 to vector<8x128xf32>
    %319 = arith.addf %318, %317 : vector<8x128xf32>
    %320 = arith.divf %318, %319 : vector<8x128xf32>
    %321 = vector.extract_strided_slice %302 {offsets = [0, 256], sizes = [8, 128], strides = [1, 1]} : vector<8x384xf32> to vector<8x128xf32>
    %322 = vector.extract_strided_slice %304 {offsets = [0, 256], sizes = [8, 128], strides = [1, 1]} : vector<8x384xf32> to vector<8x128xf32>
    %323 = arith.addf %322, %298 : vector<8x128xf32>
    %324 = arith.mulf %312, %323 : vector<8x128xf32>
    %325 = arith.addf %321, %324 : vector<8x128xf32>
    %326 = math.tanh %325 : vector<8x128xf32>
    %327 = arith.subf %299, %326 : vector<8x128xf32>
    %328 = arith.mulf %320, %327 : vector<8x128xf32>
    %329 = arith.addf %326, %328 : vector<8x128xf32>
    %c1_i32_91 = arith.constant 1 : i32
    %330 = arith.index_cast %c1_i32_91 : i32 to index
    %c0_92 = arith.constant 0 : index
    %c0_93 = arith.constant 0 : index
    %331 = vector.load %arg13[%330, %c0_92, %c0_93] : memref<8x8x384xf32, #tpu.memory_space<vmem>>, vector<1x8x384xf32>
    %332 = vector.shape_cast %331 : vector<1x8x384xf32> to vector<8x384xf32>
    %333 = arith.truncf %329 : vector<8x128xf32> to vector<8x128xbf16>
    %cst_94 = arith.constant dense<0.000000e+00> : vector<8x384xf32>
    %334 = tpu.matmul %333, %295, %cst_94 {dimension_numbers = #tpu.dot_dimension_numbers<[1], [0], [0], [1], [0, 0, 1, 1], [], []>} : vector<8x128xbf16>, vector<128x384xbf16>, vector<8x384xf32> -> vector<8x384xf32>
    %335 = vector.extract_strided_slice %332 {offsets = [0, 0], sizes = [8, 128], strides = [1, 1]} : vector<8x384xf32> to vector<8x128xf32>
    %336 = vector.extract_strided_slice %334 {offsets = [0, 0], sizes = [8, 128], strides = [1, 1]} : vector<8x384xf32> to vector<8x128xf32>
    %337 = arith.addf %335, %336 : vector<8x128xf32>
    %338 = arith.negf %337 : vector<8x128xf32>
    %339 = math.exp %338 : vector<8x128xf32>
    %cst_95 = arith.constant 1.000000e+00 : f32
    %340 = vector.broadcast %cst_95 : f32 to vector<8x128xf32>
    %341 = arith.addf %340, %339 : vector<8x128xf32>
    %342 = arith.divf %340, %341 : vector<8x128xf32>
    %343 = vector.extract_strided_slice %332 {offsets = [0, 128], sizes = [8, 128], strides = [1, 1]} : vector<8x384xf32> to vector<8x128xf32>
    %344 = vector.extract_strided_slice %334 {offsets = [0, 128], sizes = [8, 128], strides = [1, 1]} : vector<8x384xf32> to vector<8x128xf32>
    %345 = arith.addf %343, %344 : vector<8x128xf32>
    %346 = arith.negf %345 : vector<8x128xf32>
    %347 = math.exp %346 : vector<8x128xf32>
    %cst_96 = arith.constant 1.000000e+00 : f32
    %348 = vector.broadcast %cst_96 : f32 to vector<8x128xf32>
    %349 = arith.addf %348, %347 : vector<8x128xf32>
    %350 = arith.divf %348, %349 : vector<8x128xf32>
    %351 = vector.extract_strided_slice %332 {offsets = [0, 256], sizes = [8, 128], strides = [1, 1]} : vector<8x384xf32> to vector<8x128xf32>
    %352 = vector.extract_strided_slice %334 {offsets = [0, 256], sizes = [8, 128], strides = [1, 1]} : vector<8x384xf32> to vector<8x128xf32>
    %353 = arith.addf %352, %298 : vector<8x128xf32>
    %354 = arith.mulf %342, %353 : vector<8x128xf32>
    %355 = arith.addf %351, %354 : vector<8x128xf32>
    %356 = math.tanh %355 : vector<8x128xf32>
    %357 = arith.subf %329, %356 : vector<8x128xf32>
    %358 = arith.mulf %350, %357 : vector<8x128xf32>
    %359 = arith.addf %356, %358 : vector<8x128xf32>
    %c2_i32_97 = arith.constant 2 : i32
    %360 = arith.index_cast %c2_i32_97 : i32 to index
    %c0_98 = arith.constant 0 : index
    %c0_99 = arith.constant 0 : index
    %361 = vector.load %arg13[%360, %c0_98, %c0_99] : memref<8x8x384xf32, #tpu.memory_space<vmem>>, vector<1x8x384xf32>
    %362 = vector.shape_cast %361 : vector<1x8x384xf32> to vector<8x384xf32>
    %363 = arith.truncf %359 : vector<8x128xf32> to vector<8x128xbf16>
    %cst_100 = arith.constant dense<0.000000e+00> : vector<8x384xf32>
    %364 = tpu.matmul %363, %295, %cst_100 {dimension_numbers = #tpu.dot_dimension_numbers<[1], [0], [0], [1], [0, 0, 1, 1], [], []>} : vector<8x128xbf16>, vector<128x384xbf16>, vector<8x384xf32> -> vector<8x384xf32>
    %365 = vector.extract_strided_slice %362 {offsets = [0, 0], sizes = [8, 128], strides = [1, 1]} : vector<8x384xf32> to vector<8x128xf32>
    %366 = vector.extract_strided_slice %364 {offsets = [0, 0], sizes = [8, 128], strides = [1, 1]} : vector<8x384xf32> to vector<8x128xf32>
    %367 = arith.addf %365, %366 : vector<8x128xf32>
    %368 = arith.negf %367 : vector<8x128xf32>
    %369 = math.exp %368 : vector<8x128xf32>
    %cst_101 = arith.constant 1.000000e+00 : f32
    %370 = vector.broadcast %cst_101 : f32 to vector<8x128xf32>
    %371 = arith.addf %370, %369 : vector<8x128xf32>
    %372 = arith.divf %370, %371 : vector<8x128xf32>
    %373 = vector.extract_strided_slice %362 {offsets = [0, 128], sizes = [8, 128], strides = [1, 1]} : vector<8x384xf32> to vector<8x128xf32>
    %374 = vector.extract_strided_slice %364 {offsets = [0, 128], sizes = [8, 128], strides = [1, 1]} : vector<8x384xf32> to vector<8x128xf32>
    %375 = arith.addf %373, %374 : vector<8x128xf32>
    %376 = arith.negf %375 : vector<8x128xf32>
    %377 = math.exp %376 : vector<8x128xf32>
    %cst_102 = arith.constant 1.000000e+00 : f32
    %378 = vector.broadcast %cst_102 : f32 to vector<8x128xf32>
    %379 = arith.addf %378, %377 : vector<8x128xf32>
    %380 = arith.divf %378, %379 : vector<8x128xf32>
    %381 = vector.extract_strided_slice %362 {offsets = [0, 256], sizes = [8, 128], strides = [1, 1]} : vector<8x384xf32> to vector<8x128xf32>
    %382 = vector.extract_strided_slice %364 {offsets = [0, 256], sizes = [8, 128], strides = [1, 1]} : vector<8x384xf32> to vector<8x128xf32>
    %383 = arith.addf %382, %298 : vector<8x128xf32>
    %384 = arith.mulf %372, %383 : vector<8x128xf32>
    %385 = arith.addf %381, %384 : vector<8x128xf32>
    %386 = math.tanh %385 : vector<8x128xf32>
    %387 = arith.subf %359, %386 : vector<8x128xf32>
    %388 = arith.mulf %380, %387 : vector<8x128xf32>
    %389 = arith.addf %386, %388 : vector<8x128xf32>
    %c3_i32_103 = arith.constant 3 : i32
    %390 = arith.index_cast %c3_i32_103 : i32 to index
    %c0_104 = arith.constant 0 : index
    %c0_105 = arith.constant 0 : index
    %391 = vector.load %arg13[%390, %c0_104, %c0_105] : memref<8x8x384xf32, #tpu.memory_space<vmem>>, vector<1x8x384xf32>
    %392 = vector.shape_cast %391 : vector<1x8x384xf32> to vector<8x384xf32>
    %393 = arith.truncf %389 : vector<8x128xf32> to vector<8x128xbf16>
    %cst_106 = arith.constant dense<0.000000e+00> : vector<8x384xf32>
    %394 = tpu.matmul %393, %295, %cst_106 {dimension_numbers = #tpu.dot_dimension_numbers<[1], [0], [0], [1], [0, 0, 1, 1], [], []>} : vector<8x128xbf16>, vector<128x384xbf16>, vector<8x384xf32> -> vector<8x384xf32>
    %395 = vector.extract_strided_slice %392 {offsets = [0, 0], sizes = [8, 128], strides = [1, 1]} : vector<8x384xf32> to vector<8x128xf32>
    %396 = vector.extract_strided_slice %394 {offsets = [0, 0], sizes = [8, 128], strides = [1, 1]} : vector<8x384xf32> to vector<8x128xf32>
    %397 = arith.addf %395, %396 : vector<8x128xf32>
    %398 = arith.negf %397 : vector<8x128xf32>
    %399 = math.exp %398 : vector<8x128xf32>
    %cst_107 = arith.constant 1.000000e+00 : f32
    %400 = vector.broadcast %cst_107 : f32 to vector<8x128xf32>
    %401 = arith.addf %400, %399 : vector<8x128xf32>
    %402 = arith.divf %400, %401 : vector<8x128xf32>
    %403 = vector.extract_strided_slice %392 {offsets = [0, 128], sizes = [8, 128], strides = [1, 1]} : vector<8x384xf32> to vector<8x128xf32>
    %404 = vector.extract_strided_slice %394 {offsets = [0, 128], sizes = [8, 128], strides = [1, 1]} : vector<8x384xf32> to vector<8x128xf32>
    %405 = arith.addf %403, %404 : vector<8x128xf32>
    %406 = arith.negf %405 : vector<8x128xf32>
    %407 = math.exp %406 : vector<8x128xf32>
    %cst_108 = arith.constant 1.000000e+00 : f32
    %408 = vector.broadcast %cst_108 : f32 to vector<8x128xf32>
    %409 = arith.addf %408, %407 : vector<8x128xf32>
    %410 = arith.divf %408, %409 : vector<8x128xf32>
    %411 = vector.extract_strided_slice %392 {offsets = [0, 256], sizes = [8, 128], strides = [1, 1]} : vector<8x384xf32> to vector<8x128xf32>
    %412 = vector.extract_strided_slice %394 {offsets = [0, 256], sizes = [8, 128], strides = [1, 1]} : vector<8x384xf32> to vector<8x128xf32>
    %413 = arith.addf %412, %298 : vector<8x128xf32>
    %414 = arith.mulf %402, %413 : vector<8x128xf32>
    %415 = arith.addf %411, %414 : vector<8x128xf32>
    %416 = math.tanh %415 : vector<8x128xf32>
    %417 = arith.subf %389, %416 : vector<8x128xf32>
    %418 = arith.mulf %410, %417 : vector<8x128xf32>
    %419 = arith.addf %416, %418 : vector<8x128xf32>
    %c4_i32_109 = arith.constant 4 : i32
    %420 = arith.index_cast %c4_i32_109 : i32 to index
    %c0_110 = arith.constant 0 : index
    %c0_111 = arith.constant 0 : index
    %421 = vector.load %arg13[%420, %c0_110, %c0_111] : memref<8x8x384xf32, #tpu.memory_space<vmem>>, vector<1x8x384xf32>
    %422 = vector.shape_cast %421 : vector<1x8x384xf32> to vector<8x384xf32>
    %423 = arith.truncf %419 : vector<8x128xf32> to vector<8x128xbf16>
    %cst_112 = arith.constant dense<0.000000e+00> : vector<8x384xf32>
    %424 = tpu.matmul %423, %295, %cst_112 {dimension_numbers = #tpu.dot_dimension_numbers<[1], [0], [0], [1], [0, 0, 1, 1], [], []>} : vector<8x128xbf16>, vector<128x384xbf16>, vector<8x384xf32> -> vector<8x384xf32>
    %425 = vector.extract_strided_slice %422 {offsets = [0, 0], sizes = [8, 128], strides = [1, 1]} : vector<8x384xf32> to vector<8x128xf32>
    %426 = vector.extract_strided_slice %424 {offsets = [0, 0], sizes = [8, 128], strides = [1, 1]} : vector<8x384xf32> to vector<8x128xf32>
    %427 = arith.addf %425, %426 : vector<8x128xf32>
    %428 = arith.negf %427 : vector<8x128xf32>
    %429 = math.exp %428 : vector<8x128xf32>
    %cst_113 = arith.constant 1.000000e+00 : f32
    %430 = vector.broadcast %cst_113 : f32 to vector<8x128xf32>
    %431 = arith.addf %430, %429 : vector<8x128xf32>
    %432 = arith.divf %430, %431 : vector<8x128xf32>
    %433 = vector.extract_strided_slice %422 {offsets = [0, 128], sizes = [8, 128], strides = [1, 1]} : vector<8x384xf32> to vector<8x128xf32>
    %434 = vector.extract_strided_slice %424 {offsets = [0, 128], sizes = [8, 128], strides = [1, 1]} : vector<8x384xf32> to vector<8x128xf32>
    %435 = arith.addf %433, %434 : vector<8x128xf32>
    %436 = arith.negf %435 : vector<8x128xf32>
    %437 = math.exp %436 : vector<8x128xf32>
    %cst_114 = arith.constant 1.000000e+00 : f32
    %438 = vector.broadcast %cst_114 : f32 to vector<8x128xf32>
    %439 = arith.addf %438, %437 : vector<8x128xf32>
    %440 = arith.divf %438, %439 : vector<8x128xf32>
    %441 = vector.extract_strided_slice %422 {offsets = [0, 256], sizes = [8, 128], strides = [1, 1]} : vector<8x384xf32> to vector<8x128xf32>
    %442 = vector.extract_strided_slice %424 {offsets = [0, 256], sizes = [8, 128], strides = [1, 1]} : vector<8x384xf32> to vector<8x128xf32>
    %443 = arith.addf %442, %298 : vector<8x128xf32>
    %444 = arith.mulf %432, %443 : vector<8x128xf32>
    %445 = arith.addf %441, %444 : vector<8x128xf32>
    %446 = math.tanh %445 : vector<8x128xf32>
    %447 = arith.subf %419, %446 : vector<8x128xf32>
    %448 = arith.mulf %440, %447 : vector<8x128xf32>
    %449 = arith.addf %446, %448 : vector<8x128xf32>
    %c5_i32_115 = arith.constant 5 : i32
    %450 = arith.index_cast %c5_i32_115 : i32 to index
    %c0_116 = arith.constant 0 : index
    %c0_117 = arith.constant 0 : index
    %451 = vector.load %arg13[%450, %c0_116, %c0_117] : memref<8x8x384xf32, #tpu.memory_space<vmem>>, vector<1x8x384xf32>
    %452 = vector.shape_cast %451 : vector<1x8x384xf32> to vector<8x384xf32>
    %453 = arith.truncf %449 : vector<8x128xf32> to vector<8x128xbf16>
    %cst_118 = arith.constant dense<0.000000e+00> : vector<8x384xf32>
    %454 = tpu.matmul %453, %295, %cst_118 {dimension_numbers = #tpu.dot_dimension_numbers<[1], [0], [0], [1], [0, 0, 1, 1], [], []>} : vector<8x128xbf16>, vector<128x384xbf16>, vector<8x384xf32> -> vector<8x384xf32>
    %455 = vector.extract_strided_slice %452 {offsets = [0, 0], sizes = [8, 128], strides = [1, 1]} : vector<8x384xf32> to vector<8x128xf32>
    %456 = vector.extract_strided_slice %454 {offsets = [0, 0], sizes = [8, 128], strides = [1, 1]} : vector<8x384xf32> to vector<8x128xf32>
    %457 = arith.addf %455, %456 : vector<8x128xf32>
    %458 = arith.negf %457 : vector<8x128xf32>
    %459 = math.exp %458 : vector<8x128xf32>
    %cst_119 = arith.constant 1.000000e+00 : f32
    %460 = vector.broadcast %cst_119 : f32 to vector<8x128xf32>
    %461 = arith.addf %460, %459 : vector<8x128xf32>
    %462 = arith.divf %460, %461 : vector<8x128xf32>
    %463 = vector.extract_strided_slice %452 {offsets = [0, 128], sizes = [8, 128], strides = [1, 1]} : vector<8x384xf32> to vector<8x128xf32>
    %464 = vector.extract_strided_slice %454 {offsets = [0, 128], sizes = [8, 128], strides = [1, 1]} : vector<8x384xf32> to vector<8x128xf32>
    %465 = arith.addf %463, %464 : vector<8x128xf32>
    %466 = arith.negf %465 : vector<8x128xf32>
    %467 = math.exp %466 : vector<8x128xf32>
    %cst_120 = arith.constant 1.000000e+00 : f32
    %468 = vector.broadcast %cst_120 : f32 to vector<8x128xf32>
    %469 = arith.addf %468, %467 : vector<8x128xf32>
    %470 = arith.divf %468, %469 : vector<8x128xf32>
    %471 = vector.extract_strided_slice %452 {offsets = [0, 256], sizes = [8, 128], strides = [1, 1]} : vector<8x384xf32> to vector<8x128xf32>
    %472 = vector.extract_strided_slice %454 {offsets = [0, 256], sizes = [8, 128], strides = [1, 1]} : vector<8x384xf32> to vector<8x128xf32>
    %473 = arith.addf %472, %298 : vector<8x128xf32>
    %474 = arith.mulf %462, %473 : vector<8x128xf32>
    %475 = arith.addf %471, %474 : vector<8x128xf32>
    %476 = math.tanh %475 : vector<8x128xf32>
    %477 = arith.subf %449, %476 : vector<8x128xf32>
    %478 = arith.mulf %470, %477 : vector<8x128xf32>
    %479 = arith.addf %476, %478 : vector<8x128xf32>
    %c6_i32_121 = arith.constant 6 : i32
    %480 = arith.index_cast %c6_i32_121 : i32 to index
    %c0_122 = arith.constant 0 : index
    %c0_123 = arith.constant 0 : index
    %481 = vector.load %arg13[%480, %c0_122, %c0_123] : memref<8x8x384xf32, #tpu.memory_space<vmem>>, vector<1x8x384xf32>
    %482 = vector.shape_cast %481 : vector<1x8x384xf32> to vector<8x384xf32>
    %483 = arith.truncf %479 : vector<8x128xf32> to vector<8x128xbf16>
    %cst_124 = arith.constant dense<0.000000e+00> : vector<8x384xf32>
    %484 = tpu.matmul %483, %295, %cst_124 {dimension_numbers = #tpu.dot_dimension_numbers<[1], [0], [0], [1], [0, 0, 1, 1], [], []>} : vector<8x128xbf16>, vector<128x384xbf16>, vector<8x384xf32> -> vector<8x384xf32>
    %485 = vector.extract_strided_slice %482 {offsets = [0, 0], sizes = [8, 128], strides = [1, 1]} : vector<8x384xf32> to vector<8x128xf32>
    %486 = vector.extract_strided_slice %484 {offsets = [0, 0], sizes = [8, 128], strides = [1, 1]} : vector<8x384xf32> to vector<8x128xf32>
    %487 = arith.addf %485, %486 : vector<8x128xf32>
    %488 = arith.negf %487 : vector<8x128xf32>
    %489 = math.exp %488 : vector<8x128xf32>
    %cst_125 = arith.constant 1.000000e+00 : f32
    %490 = vector.broadcast %cst_125 : f32 to vector<8x128xf32>
    %491 = arith.addf %490, %489 : vector<8x128xf32>
    %492 = arith.divf %490, %491 : vector<8x128xf32>
    %493 = vector.extract_strided_slice %482 {offsets = [0, 128], sizes = [8, 128], strides = [1, 1]} : vector<8x384xf32> to vector<8x128xf32>
    %494 = vector.extract_strided_slice %484 {offsets = [0, 128], sizes = [8, 128], strides = [1, 1]} : vector<8x384xf32> to vector<8x128xf32>
    %495 = arith.addf %493, %494 : vector<8x128xf32>
    %496 = arith.negf %495 : vector<8x128xf32>
    %497 = math.exp %496 : vector<8x128xf32>
    %cst_126 = arith.constant 1.000000e+00 : f32
    %498 = vector.broadcast %cst_126 : f32 to vector<8x128xf32>
    %499 = arith.addf %498, %497 : vector<8x128xf32>
    %500 = arith.divf %498, %499 : vector<8x128xf32>
    %501 = vector.extract_strided_slice %482 {offsets = [0, 256], sizes = [8, 128], strides = [1, 1]} : vector<8x384xf32> to vector<8x128xf32>
    %502 = vector.extract_strided_slice %484 {offsets = [0, 256], sizes = [8, 128], strides = [1, 1]} : vector<8x384xf32> to vector<8x128xf32>
    %503 = arith.addf %502, %298 : vector<8x128xf32>
    %504 = arith.mulf %492, %503 : vector<8x128xf32>
    %505 = arith.addf %501, %504 : vector<8x128xf32>
    %506 = math.tanh %505 : vector<8x128xf32>
    %507 = arith.subf %479, %506 : vector<8x128xf32>
    %508 = arith.mulf %500, %507 : vector<8x128xf32>
    %509 = arith.addf %506, %508 : vector<8x128xf32>
    %c7_i32_127 = arith.constant 7 : i32
    %510 = arith.index_cast %c7_i32_127 : i32 to index
    %c0_128 = arith.constant 0 : index
    %c0_129 = arith.constant 0 : index
    %511 = vector.load %arg13[%510, %c0_128, %c0_129] : memref<8x8x384xf32, #tpu.memory_space<vmem>>, vector<1x8x384xf32>
    %512 = vector.shape_cast %511 : vector<1x8x384xf32> to vector<8x384xf32>
    %513 = arith.truncf %509 : vector<8x128xf32> to vector<8x128xbf16>
    %cst_130 = arith.constant dense<0.000000e+00> : vector<8x384xf32>
    %514 = tpu.matmul %513, %295, %cst_130 {dimension_numbers = #tpu.dot_dimension_numbers<[1], [0], [0], [1], [0, 0, 1, 1], [], []>} : vector<8x128xbf16>, vector<128x384xbf16>, vector<8x384xf32> -> vector<8x384xf32>
    %515 = vector.extract_strided_slice %512 {offsets = [0, 0], sizes = [8, 128], strides = [1, 1]} : vector<8x384xf32> to vector<8x128xf32>
    %516 = vector.extract_strided_slice %514 {offsets = [0, 0], sizes = [8, 128], strides = [1, 1]} : vector<8x384xf32> to vector<8x128xf32>
    %517 = arith.addf %515, %516 : vector<8x128xf32>
    %518 = arith.negf %517 : vector<8x128xf32>
    %519 = math.exp %518 : vector<8x128xf32>
    %cst_131 = arith.constant 1.000000e+00 : f32
    %520 = vector.broadcast %cst_131 : f32 to vector<8x128xf32>
    %521 = arith.addf %520, %519 : vector<8x128xf32>
    %522 = arith.divf %520, %521 : vector<8x128xf32>
    %523 = vector.extract_strided_slice %512 {offsets = [0, 128], sizes = [8, 128], strides = [1, 1]} : vector<8x384xf32> to vector<8x128xf32>
    %524 = vector.extract_strided_slice %514 {offsets = [0, 128], sizes = [8, 128], strides = [1, 1]} : vector<8x384xf32> to vector<8x128xf32>
    %525 = arith.addf %523, %524 : vector<8x128xf32>
    %526 = arith.negf %525 : vector<8x128xf32>
    %527 = math.exp %526 : vector<8x128xf32>
    %cst_132 = arith.constant 1.000000e+00 : f32
    %528 = vector.broadcast %cst_132 : f32 to vector<8x128xf32>
    %529 = arith.addf %528, %527 : vector<8x128xf32>
    %530 = arith.divf %528, %529 : vector<8x128xf32>
    %531 = vector.extract_strided_slice %512 {offsets = [0, 256], sizes = [8, 128], strides = [1, 1]} : vector<8x384xf32> to vector<8x128xf32>
    %532 = vector.extract_strided_slice %514 {offsets = [0, 256], sizes = [8, 128], strides = [1, 1]} : vector<8x384xf32> to vector<8x128xf32>
    %533 = arith.addf %532, %298 : vector<8x128xf32>
    %534 = arith.mulf %522, %533 : vector<8x128xf32>
    %535 = arith.addf %531, %534 : vector<8x128xf32>
    %536 = math.tanh %535 : vector<8x128xf32>
    %537 = arith.subf %509, %536 : vector<8x128xf32>
    %538 = arith.mulf %530, %537 : vector<8x128xf32>
    %539 = arith.addf %536, %538 : vector<8x128xf32>
    %c8_i32_133 = arith.constant 8 : i32
    %540 = arith.truncf %539 : vector<8x128xf32> to vector<8x128xbf16>
    %c0_134 = arith.constant 0 : index
    %c0_135 = arith.constant 0 : index
    %541 = vector.load %arg10[%c0_134, %c0_135] : memref<128x128xbf16, #tpu.memory_space<vmem>>, vector<128x128xbf16>
    %cst_136 = arith.constant dense<0.000000e+00> : vector<8x128xf32>
    %542 = tpu.matmul %540, %541, %cst_136 {dimension_numbers = #tpu.dot_dimension_numbers<[1], [0], [0], [1], [0, 0, 1, 1], [], []>} : vector<8x128xbf16>, vector<128x128xbf16>, vector<8x128xf32> -> vector<8x128xf32>
    %c0_137 = arith.constant 0 : index
    %c0_138 = arith.constant 0 : index
    %543 = vector.load %arg11[%c0_137, %c0_138] : memref<1x128xf32, #tpu.memory_space<vmem>>, vector<1x128xf32>
    %544 = vector.broadcast %543 : vector<1x128xf32> to vector<8x128xf32>
    %545 = arith.addf %542, %544 : vector<8x128xf32>
    %c0_139 = arith.constant 0 : index
    %c0_140 = arith.constant 0 : index
    %546 = vector.load %arg12[%c0_139, %c0_140] : memref<8x128xf32, #tpu.memory_space<vmem>>, vector<8x128xf32>
    tpu.vector_store %arg12[%c0_139, %c0_140], %545 {strides = array<i32>} : memref<8x128xf32, #tpu.memory_space<vmem>>, vector<8x128xf32>,
    return
  }
  func.func @transform_0(%arg0: i32) -> (i32, i32) {
    %c0_i32 = arith.constant 0 : i32
    %c0_i32_0 = arith.constant 0 : i32
    %c0_i32_1 = arith.constant 0 : i32
    return %c0_i32, %c0_i32_0 : i32, i32
  }
  func.func @transform_1(%arg0: i32) -> (i32, i32) {
    %c0_i32 = arith.constant 0 : i32
    %c0_i32_0 = arith.constant 0 : i32
    %c0_i32_1 = arith.constant 0 : i32
    return %c0_i32, %c0_i32_0 : i32, i32
  }
  func.func @transform_2(%arg0: i32) -> (i32, i32) {
    %c0_i32 = arith.constant 0 : i32
    %c0_i32_0 = arith.constant 0 : i32
    %c0_i32_1 = arith.constant 0 : i32
    return %c0_i32, %c0_i32_0 : i32, i32
  }
  func.func @transform_3(%arg0: i32) -> (i32, i32) {
    %c0_i32 = arith.constant 0 : i32
    %c0_i32_0 = arith.constant 0 : i32
    %c0_i32_1 = arith.constant 0 : i32
    return %c0_i32, %c0_i32_0 : i32, i32
  }
  func.func @transform_4(%arg0: i32) -> (i32, i32) {
    %c0_i32 = arith.constant 0 : i32
    %c0_i32_0 = arith.constant 0 : i32
    %c0_i32_1 = arith.constant 0 : i32
    return %c0_i32, %c0_i32_0 : i32, i32
  }
  func.func @transform_5(%arg0: i32) -> (i32, i32) {
    %c0_i32 = arith.constant 0 : i32
    %c0_i32_0 = arith.constant 0 : i32
    %c0_i32_1 = arith.constant 0 : i32
    return %c0_i32, %c0_i32_0 : i32, i32
  }
  func.func @transform_6(%arg0: i32) -> (i32, i32) {
    %c0_i32 = arith.constant 0 : i32
    %c0_i32_0 = arith.constant 0 : i32
    %c0_i32_1 = arith.constant 0 : i32
    return %c0_i32, %c0_i32_0 : i32, i32
  }
  func.func @transform_7(%arg0: i32) -> (i32, i32) {
    %c0_i32 = arith.constant 0 : i32
    %c0_i32_0 = arith.constant 0 : i32
    %c0_i32_1 = arith.constant 0 : i32
    return %c0_i32, %c0_i32_0 : i32, i32
  }
  func.func @transform_8(%arg0: i32) -> (i32, i32) {
    %c0_i32 = arith.constant 0 : i32
    %c0_i32_0 = arith.constant 0 : i32
    %c0_i32_1 = arith.constant 0 : i32
    return %c0_i32, %c0_i32_0 : i32, i32
  }
  func.func @transform_9(%arg0: i32) -> (i32, i32) {
    %c0_i32 = arith.constant 0 : i32
    %c0_i32_0 = arith.constant 0 : i32
    %c0_i32_1 = arith.constant 0 : i32
    return %c0_i32, %c0_i32_0 : i32, i32
  }
  func.func @transform_10(%arg0: i32) -> (i32, i32) {
    %c0_i32 = arith.constant 0 : i32
    %c0_i32_0 = arith.constant 0 : i32
    %c0_i32_1 = arith.constant 0 : i32
    return %c0_i32, %c0_i32_0 : i32, i32
  }
  func.func @transform_11(%arg0: i32) -> (i32, i32) {
    %c0_i32 = arith.constant 0 : i32
    %c0_i32_0 = arith.constant 0 : i32
    %c0_i32_1 = arith.constant 0 : i32
    return %c0_i32, %c0_i32_0 : i32, i32
  }
}

</mosaic_0001>

<llo_original>
// kernel: time_gru_forward.1
$region0: #{time_gru_forward.1}
  #allocation0 [shape = 'u32[]', space=smem, size = 0x4, offset = 0x4, fixed_abs, tag = 'smem constant byte address 0x4 - core index']
  #allocation1 [shape = 'u32[144,128]{1,0:T(1,128)}', space=vmem, size = 0x12000, scoped, tag = 'internal scratch']
  #allocation2 [shape = 'f32[8,8,384]{2,1,0:T(8,128)}', space=vmem, size = 0x18000, scoped, tag = 'scratch operand']
  #allocation3 [shape = 'f32[8,8,128]{2,1,0:T(8,128)}', space=vmem, size = 0x8000, scoped, tag = 'scratch operand']
  %s0 = inlined_call_operand.vmem [shape: bf16[64,4], index: 0, kind: input, shape index: {}]
  %s1 = inlined_call_operand.vmem [shape: bf16[4,384], index: 1, kind: input, shape index: {}]
  %s2 = inlined_call_operand.vmem [shape: bf16[128,384], index: 2, kind: input, shape index: {}]
  %s3 = inlined_call_operand.vmem [shape: f32[1,384], index: 3, kind: input, shape index: {}]
  %s4 = inlined_call_operand.vmem [shape: f32[1,128], index: 4, kind: input, shape index: {}]
  %s5 = inlined_call_operand.vmem [shape: bf16[128,384], index: 5, kind: input, shape index: {}]
  %s6 = inlined_call_operand.vmem [shape: bf16[128,384], index: 6, kind: input, shape index: {}]
  %s7 = inlined_call_operand.vmem [shape: f32[1,384], index: 7, kind: input, shape index: {}]
  %s8 = inlined_call_operand.vmem [shape: f32[1,128], index: 8, kind: input, shape index: {}]
  %s9 = inlined_call_operand.vmem [shape: bf16[128,128], index: 9, kind: input, shape index: {}]
  %s10 = inlined_call_operand.vmem [shape: f32[1,128], index: 10, kind: input, shape index: {}]
  %s11 = inlined_call_operand.vmem [shape: f32[8,128], index: 11, kind: output, shape index: {}]
  %s12 = sld [smem:[#allocation0]]
  $region54: #{time_gru_forward.1} parent=0
    _
  %s14 = ssub.s32 1, %s12
  %s15 = scalar_select 0, %s14, %s12
  // Predicated region
  $region2: #{time_gru_forward.1} parent=0 // pred_check
    _
  $region3: #{time_gru_forward.1} parent=0 // pred_check_branch
    %17 = sbr.rel (0) target = $region5
  $region4: #{time_gru_forward.1} parent=0 // pred_region
    _
  $region5: #{time_gru_forward.1} parent=0 // pred_fallthru
    _
  // Predicated region
  $region6: #{time_gru_forward.1} parent=0 // pred_check
    _
  $region7: #{time_gru_forward.1} parent=0 // pred_check_branch
    %19 = sbr.rel (0) target = $region9
  $region8: #{time_gru_forward.1} parent=0 // pred_region
    _
  $region9: #{time_gru_forward.1} parent=0 // pred_fallthru
    _
  // Predicated region
  $region10: #{time_gru_forward.1} parent=0 // pred_check
    _
  $region11: #{time_gru_forward.1} parent=0 // pred_check_branch
    %21 = sbr.rel (0) target = $region13
  $region12: #{time_gru_forward.1} parent=0 // pred_region
    _
  $region13: #{time_gru_forward.1} parent=0 // pred_fallthru
    _
  // Predicated region
  $region14: #{time_gru_forward.1} parent=0 // pred_check
    _
  $region15: #{time_gru_forward.1} parent=0 // pred_check_branch
    %23 = sbr.rel (0) target = $region17
  $region16: #{time_gru_forward.1} parent=0 // pred_region
    _
  $region17: #{time_gru_forward.1} parent=0 // pred_fallthru
    _
  // Predicated region
  $region18: #{time_gru_forward.1} parent=0 // pred_check
    _
  $region19: #{time_gru_forward.1} parent=0 // pred_check_branch
    %25 = sbr.rel (0) target = $region21
  $region20: #{time_gru_forward.1} parent=0 // pred_region
    _
  $region21: #{time_gru_forward.1} parent=0 // pred_fallthru
    _
  // Predicated region
  $region22: #{time_gru_forward.1} parent=0 // pred_check
    _
  $region23: #{time_gru_forward.1} parent=0 // pred_check_branch
    %27 = sbr.rel (0) target = $region25
  $region24: #{time_gru_forward.1} parent=0 // pred_region
    _
  $region25: #{time_gru_forward.1} parent=0 // pred_fallthru
    _
  // Predicated region
  $region26: #{time_gru_forward.1} parent=0 // pred_check
    _
  $region27: #{time_gru_forward.1} parent=0 // pred_check_branch
    %29 = sbr.rel (0) target = $region29
  $region28: #{time_gru_forward.1} parent=0 // pred_region
    _
  $region29: #{time_gru_forward.1} parent=0 // pred_fallthru
    _
  // Predicated region
  $region30: #{time_gru_forward.1} parent=0 // pred_check
    _
  $region31: #{time_gru_forward.1} parent=0 // pred_check_branch
    %31 = sbr.rel (0) target = $region33
  $region32: #{time_gru_forward.1} parent=0 // pred_region
    _
  $region33: #{time_gru_forward.1} parent=0 // pred_fallthru
    _
  // Predicated region
  $region34: #{time_gru_forward.1} parent=0 // pred_check
    _
  $region35: #{time_gru_forward.1} parent=0 // pred_check_branch
    %33 = sbr.rel (0) target = $region37
  $region36: #{time_gru_forward.1} parent=0 // pred_region
    _
  $region37: #{time_gru_forward.1} parent=0 // pred_fallthru
    _
  // Predicated region
  $region38: #{time_gru_forward.1} parent=0 // pred_check
    _
  $region39: #{time_gru_forward.1} parent=0 // pred_check_branch
    %35 = sbr.rel (0) target = $region41
  $region40: #{time_gru_forward.1} parent=0 // pred_region
    _
  $region41: #{time_gru_forward.1} parent=0 // pred_fallthru
    _
  // Predicated region
  $region42: #{time_gru_forward.1} parent=0 // pred_check
    _
  $region43: #{time_gru_forward.1} parent=0 // pred_check_branch
    %37 = sbr.rel (0) target = $region45
  $region44: #{time_gru_forward.1} parent=0 // pred_region
    _
  $region45: #{time_gru_forward.1} parent=0 // pred_fallthru
    _
  %v39 = vld [vmem:[%s0] sm:$0xf]
  %v40 = vld [vmem:[%s0 + $0x4] sm:$0xf]
  %v41 = vld [vmem:[%s0 + $0x8] sm:$0xf]
  %v42 = vld [vmem:[%s0 + $0xc] sm:$0xf]
  %v43 = vld [vmem:[%s0 + $0x10] sm:$0xf]
  %v44 = vld [vmem:[%s0 + $0x14] sm:$0xf]
  %v45 = vld [vmem:[%s0 + $0x18] sm:$0xf]
  %v46 = vld [vmem:[%s0 + $0x1c] sm:$0xf]
  %v47 = vld [vmem:[%s1] sm:$0x3f]
  %v48 = vld [vmem:[%s3] sm:$0x7]
  %v50 = vlaneseq
  %v51 = vshrl.u32 %v50, 7
  %v52 = vsub.s32 0, %v51
  %v53 = vrot.slane %v48, %v52
  %v54 = vlaneseq
  %v55 = vshrl.u32 %v54, 7
  %v56 = vsub.s32 1, %v55
  %v57 = vrot.slane %v48, %v56
  %v58 = vlaneseq
  %v59 = vshrl.u32 %v58, 7
  %v60 = vsub.s32 2, %v59
  %v61 = vrot.slane %v48, %v60
  %v73 = vunpack.c.l.b16 %v39
  %v74 = vunpack.c.l.b16 %v40
  %v75 = vunpack.c.l.b16 %v41
  %v76 = vunpack.c.l.b16 %v42
  %v77 = vunpack.c.l.b16 %v43
  %v78 = vunpack.c.l.b16 %v44
  %v79 = vunpack.c.l.b16 %v45
  %v80 = vunpack.c.l.b16 %v46
  %v81 = vpack.c.b16 %v74, %v73
  %v82 = vpack.c.b16 %v76, %v75
  %v83 = vpack.c.b16 %v78, %v77
  %v84 = vpack.c.b16 %v80, %v79
  %v86 = vcombine.high %v47, %v47
  %v88 = vunpack.c.l.s4 1983009808
  %v89 = vunpack.c.0.s8 %v88
  %v90 = vlaneseq
  %v91 = vshrl.u32 %v90, 7
  %v92 = vsub.s32 %v89, %v91
  %v93 = vrot.slane %v47, %v92
  %v95 = vunpack.c.l.s4 1983009808
  %v96 = vunpack.c.0.s8 %v95
  %v97 = vlaneseq
  %v98 = vshrl.u32 %v97, 7
  %v99 = vsub.s32 %v96, %v98
  %v100 = vrot.slane %v86, %v99
  %v101 = vcombine.high %v93, %v93
  %vm102 = vcmask 31744
  %v104 = vsel %vm102, %v81, 0
  %v107 = vsel %vm102, %v82, 0
  %v110 = vsel %vm102, %v83, 0
  %v113 = vsel %vm102, %v84, 0
  %vm115 = vcmask 1041408
  %v117 = vsel %vm115, %v93, 0
  %v120 = vsel %vm115, %v101, 0
  %v123 = vsel %vm115, %v100, 0
  %125 = vmatprep.subr.bf16.mxu0 0
  %126 = vmatpush1.bf16.msra.mxu0 0
  %127 = vmatprep.subr.bf16.mxu0 0
  %128 = vmatpush1.bf16.msra.mxu0 0
  %129 = vmatprep.subr.bf16.mxu0 0
  %130 = vmatpush1.bf16.msra.mxu0 0
  %131 = vmatprep.subr.bf16.mxu0 0
  %132 = vmatpush1.bf16.msra.mxu0 0
  %133 = vmatprep.subr.bf16.mxu0 0
  %134 = vmatpush1.bf16.msra.mxu0 0
  %135 = vmatprep.subr.bf16.mxu0 0
  %136 = vmatpush1.bf16.msra.mxu0 0
  %137 = vmatprep.subr.bf16.mxu0 0
  %138 = vmatpush1.bf16.msra.mxu0 0
  %139 = vmatprep.subr.bf16.mxu0 %v120
  %140 = vmatpush1.bf16.msra.mxu0 %v117
  %141 = vmatprep.subr.bf16.mxu0 0
  %142 = vmatpush2.bf16.msra.mxu0 0
  %143 = vmatprep.subr.bf16.mxu0 0
  %144 = vmatpush2.bf16.msra.mxu0 0
  %145 = vmatprep.subr.bf16.mxu0 0
  %146 = vmatpush2.bf16.msra.mxu0 0
  %147 = vmatprep.subr.bf16.mxu0 0
  %148 = vmatpush2.bf16.msra.mxu0 0
  %149 = vmatprep.subr.bf16.mxu0 0
  %150 = vmatpush2.bf16.msra.mxu0 0
  %151 = vmatprep.subr.bf16.mxu0 0
  %152 = vmatpush2.bf16.msra.mxu0 0
  %153 = vmatprep.subr.bf16.mxu0 0
  %154 = vmatpush2.bf16.msra.mxu0 0
  %155 = vmatprep.subr.bf16.mxu0 0
  %156 = vmatpush2.bf16.msra.mxu0 0
  %157 = vmatprep.mubr.bf16.mxu0 0
  %158 = vmatmul.mubr.bf16.gmra.mxu0 %v104
  %v159 = vpop.f32.mrf.mxu0
  %v160 = vadd.f32 %v53, %v159
  %v161 = vpop.f32.mrf.mxu0
  %v162 = vadd.f32 %v57, %v161
  %v163 = vpop.f32.mrf.mxu0
  %v164 = vadd.f32 %v53, %v163
  %v165 = vpop.f32.mrf.mxu0
  %v166 = vadd.f32 %v57, %v165
  %167 = vmatprep.mubr.bf16.mxu0 0
  %168 = vmatmul.mubr.bf16.gmra.mxu0 %v107
  %v169 = vpop.f32.mrf.mxu0
  %v170 = vadd.f32 %v53, %v169
  %v171 = vpop.f32.mrf.mxu0
  %v172 = vadd.f32 %v57, %v171
  %v173 = vpop.f32.mrf.mxu0
  %v174 = vadd.f32 %v53, %v173
  %v175 = vpop.f32.mrf.mxu0
  %v176 = vadd.f32 %v57, %v175
  %177 = vmatprep.mubr.bf16.mxu0 0
  %178 = vmatmul.mubr.bf16.gmra.mxu0 %v110
  %v179 = vpop.f32.mrf.mxu0
  %v180 = vadd.f32 %v53, %v179
  %v181 = vpop.f32.mrf.mxu0
  %v182 = vadd.f32 %v57, %v181
  %v183 = vpop.f32.mrf.mxu0
  %v184 = vadd.f32 %v53, %v183
  %v185 = vpop.f32.mrf.mxu0
  %v186 = vadd.f32 %v57, %v185
  %187 = vmatprep.mubr.bf16.mxu0 0
  %188 = vmatmul.mubr.bf16.gmra.mxu0 %v113
  %v189 = vpop.f32.mrf.mxu0
  %v190 = vadd.f32 %v53, %v189
  %v191 = vpop.f32.mrf.mxu0
  %v192 = vadd.f32 %v57, %v191
  %v193 = vpop.f32.mrf.mxu0
  %v194 = vadd.f32 %v53, %v193
  %v195 = vpop.f32.mrf.mxu0
  %v196 = vadd.f32 %v57, %v195
  %197 = vdwg.mxu0
  %198 = vmatprep.subr.bf16.mxu0 0
  %199 = vmatpush1.bf16.msra.mxu0 0
  %200 = vmatprep.subr.bf16.mxu0 0
  %201 = vmatpush1.bf16.msra.mxu0 0
  %202 = vmatprep.subr.bf16.mxu0 0
  %203 = vmatpush1.bf16.msra.mxu0 0
  %204 = vmatprep.subr.bf16.mxu0 0
  %205 = vmatpush1.bf16.msra.mxu0 0
  %206 = vmatprep.subr.bf16.mxu0 0
  %207 = vmatpush1.bf16.msra.mxu0 0
  %208 = vmatprep.subr.bf16.mxu0 0
  %209 = vmatpush1.bf16.msra.mxu0 0
  %210 = vmatprep.subr.bf16.mxu0 0
  %211 = vmatpush1.bf16.msra.mxu0 0
  %212 = vmatprep.subr.bf16.mxu0 0
  %213 = vmatpush1.bf16.msra.mxu0 %v123
  %214 = vmatprep.subr.bf16.mxu0 0
  %215 = vmatpush2.bf16.msra.mxu0 0
  %216 = vmatprep.subr.bf16.mxu0 0
  %217 = vmatpush2.bf16.msra.mxu0 0
  %218 = vmatprep.subr.bf16.mxu0 0
  %219 = vmatpush2.bf16.msra.mxu0 0
  %220 = vmatprep.subr.bf16.mxu0 0
  %221 = vmatpush2.bf16.msra.mxu0 0
  %222 = vmatprep.subr.bf16.mxu0 0
  %223 = vmatpush2.bf16.msra.mxu0 0
  %224 = vmatprep.subr.bf16.mxu0 0
  %225 = vmatpush2.bf16.msra.mxu0 0
  %226 = vmatprep.subr.bf16.mxu0 0
  %227 = vmatpush2.bf16.msra.mxu0 0
  %228 = vmatprep.subr.bf16.mxu0 0
  %229 = vmatpush2.bf16.msra.mxu0 0
  %230 = vmatprep.mubr.bf16.mxu0 0
  %231 = vmatmul.mubr.bf16.gmra.mxu0 %v104
  %v232 = vpop.f32.mrf.mxu0
  %v233 = vadd.f32 %v61, %v232
  %v234 = vpop.f32.mrf.mxu0
  %v235 = vpop.f32.mrf.mxu0
  %v236 = vadd.f32 %v61, %v235
  %v237 = vpop.f32.mrf.mxu0
  %238 = vmatprep.mubr.bf16.mxu0 0
  %239 = vmatmul.mubr.bf16.gmra.mxu0 %v107
  %v240 = vpop.f32.mrf.mxu0
  %v241 = vadd.f32 %v61, %v240
  %v242 = vpop.f32.mrf.mxu0
  %v243 = vpop.f32.mrf.mxu0
  %v244 = vadd.f32 %v61, %v243
  %v245 = vpop.f32.mrf.mxu0
  %246 = vmatprep.mubr.bf16.mxu0 0
  %247 = vmatmul.mubr.bf16.gmra.mxu0 %v110
  %v248 = vpop.f32.mrf.mxu0
  %v249 = vadd.f32 %v61, %v248
  %v250 = vpop.f32.mrf.mxu0
  %v251 = vpop.f32.mrf.mxu0
  %v252 = vadd.f32 %v61, %v251
  %v253 = vpop.f32.mrf.mxu0
  %254 = vmatprep.mubr.bf16.mxu0 0
  %255 = vmatmul.mubr.bf16.gmra.mxu0 %v113
  %v256 = vpop.f32.mrf.mxu0
  %v257 = vadd.f32 %v61, %v256
  %v258 = vpop.f32.mrf.mxu0
  %v259 = vpop.f32.mrf.mxu0
  %v260 = vadd.f32 %v61, %v259
  %v261 = vpop.f32.mrf.mxu0
  %262 = vdwg.mxu0
  %263 = vst [vmem:[#allocation2] sm:$0xff] %v160
  %264 = vst [vmem:[#allocation2 + $0x8] sm:$0xff] %v162
  %265 = vst [vmem:[#allocation2 + $0x10] sm:$0xff] %v233
  %266 = vst [vmem:[#allocation2 + $0x18] sm:$0xff] %v164
  %267 = vst [vmem:[#allocation2 + $0x20] sm:$0xff] %v166
  %268 = vst [vmem:[#allocation2 + $0x28] sm:$0xff] %v236
  %269 = vst [vmem:[#allocation2 + $0x30] sm:$0xff] %v170
  %270 = vst [vmem:[#allocation2 + $0x38] sm:$0xff] %v172
  %271 = vst [vmem:[#allocation2 + $0x40] sm:$0xff] %v241
  %272 = vst [vmem:[#allocation2 + $0x48] sm:$0xff] %v174
  %273 = vst [vmem:[#allocation2 + $0x50] sm:$0xff] %v176
  %274 = vst [vmem:[#allocation2 + $0x58] sm:$0xff] %v244
  %275 = vst [vmem:[#allocation2 + $0x60] sm:$0xff] %v180
  %276 = vst [vmem:[#allocation2 + $0x68] sm:$0xff] %v182
  %277 = vst [vmem:[#allocation2 + $0x70] sm:$0xff] %v249
  %278 = vst [vmem:[#allocation2 + $0x78] sm:$0xff] %v184
  %279 = vst [vmem:[#allocation2 + $0x80] sm:$0xff] %v186
  %280 = vst [vmem:[#allocation2 + $0x88] sm:$0xff] %v252
  %281 = vst [vmem:[#allocation2 + $0x90] sm:$0xff] %v190
  %282 = vst [vmem:[#allocation2 + $0x98] sm:$0xff] %v192
  %283 = vst [vmem:[#allocation2 + $0xa0] sm:$0xff] %v257
  %284 = vst [vmem:[#allocation2 + $0xa8] sm:$0xff] %v194
  %285 = vst [vmem:[#allocation2 + $0xb0] sm:$0xff] %v196
  %286 = vst [vmem:[#allocation2 + $0xb8] sm:$0xff] %v260
  %v287 = vld [vmem:[%s2] sm:$0xff]
  %v288 = vld [vmem:[%s2 + $0x8] sm:$0xf]
  %v289 = vld [vmem:[%s2 + $0xc] sm:$0xff]
  %v290 = vld [vmem:[%s2 + $0x14] sm:$0xf]
  %v291 = vld [vmem:[%s2 + $0x18] sm:$0xff]
  %v292 = vld [vmem:[%s2 + $0x20] sm:$0xf]
  %v293 = vld [vmem:[%s2 + $0x24] sm:$0xff]
  %v294 = vld [vmem:[%s2 + $0x2c] sm:$0xf]
  %v295 = vld [vmem:[%s2 + $0x30] sm:$0xff]
  %v296 = vld [vmem:[%s2 + $0x38] sm:$0xf]
  %v297 = vld [vmem:[%s2 + $0x3c] sm:$0xff]
  %v298 = vld [vmem:[%s2 + $0x44] sm:$0xf]
  %v299 = vld [vmem:[%s2 + $0x48] sm:$0xff]
  %v300 = vld [vmem:[%s2 + $0x50] sm:$0xf]
  %v301 = vld [vmem:[%s2 + $0x54] sm:$0xff]
  %v302 = vld [vmem:[%s2 + $0x5c] sm:$0xf]
  %v303 = vld [vmem:[%s2 + $0x60] sm:$0xff]
  %v304 = vld [vmem:[%s2 + $0x68] sm:$0xf]
  %v305 = vld [vmem:[%s2 + $0x6c] sm:$0xff]
  %v306 = vld [vmem:[%s2 + $0x74] sm:$0xf]
  %v307 = vld [vmem:[%s2 + $0x78] sm:$0xff]
  %v308 = vld [vmem:[%s2 + $0x80] sm:$0xf]
  %v309 = vld [vmem:[%s2 + $0x84] sm:$0xff]
  %v310 = vld [vmem:[%s2 + $0x8c] sm:$0xf]
  %v311 = vld [vmem:[%s2 + $0x90] sm:$0xff]
  %v312 = vld [vmem:[%s2 + $0x98] sm:$0xf]
  %v313 = vld [vmem:[%s2 + $0x9c] sm:$0xff]
  %v314 = vld [vmem:[%s2 + $0xa4] sm:$0xf]
  %v315 = vld [vmem:[%s2 + $0xa8] sm:$0xff]
  %v316 = vld [vmem:[%s2 + $0xb0] sm:$0xf]
  %v317 = vld [vmem:[%s2 + $0xb4] sm:$0xff]
  %v318 = vld [vmem:[%s2 + $0xbc] sm:$0xf]
  %v319 = vld [vmem:[%s4] sm:$0x1]
  %v321 = vlaneseq
  %v322 = vshrl.u32 %v321, 7
  %v323 = vsub.s32 0, %v322
  %v324 = vrot.slane %v319, %v323
  %v326 = vld [vmem:[#allocation2] sm:$0xff]
  %v327 = vld [vmem:[#allocation2 + $0x8] sm:$0xff]
  %v328 = vld [vmem:[#allocation2 + $0x10] sm:$0xff]
  %v361 = vunpack.c.l.b16 %v287
  %v362 = vunpack.c.h.b16 %v287
  %v363 = vunpack.c.l.b16 %v288
  %v364 = vunpack.c.l.b16 %v289
  %v365 = vunpack.c.h.b16 %v289
  %v366 = vunpack.c.l.b16 %v290
  %v367 = vunpack.c.l.b16 %v291
  %v368 = vunpack.c.h.b16 %v291
  %v369 = vunpack.c.l.b16 %v292
  %v370 = vunpack.c.l.b16 %v293
  %v371 = vunpack.c.h.b16 %v293
  %v372 = vunpack.c.l.b16 %v294
  %v373 = vunpack.c.l.b16 %v295
  %v374 = vunpack.c.h.b16 %v295
  %v375 = vunpack.c.l.b16 %v296
  %v376 = vunpack.c.l.b16 %v297
  %v377 = vunpack.c.h.b16 %v297
  %v378 = vunpack.c.l.b16 %v298
  %v379 = vunpack.c.l.b16 %v299
  %v380 = vunpack.c.h.b16 %v299
  %v381 = vunpack.c.l.b16 %v300
  %v382 = vunpack.c.l.b16 %v301
  %v383 = vunpack.c.h.b16 %v301
  %v384 = vunpack.c.l.b16 %v302
  %v385 = vunpack.c.l.b16 %v303
  %v386 = vunpack.c.h.b16 %v303
  %v387 = vunpack.c.l.b16 %v304
  %v388 = vunpack.c.l.b16 %v305
  %v389 = vunpack.c.h.b16 %v305
  %v390 = vunpack.c.l.b16 %v306
  %v391 = vunpack.c.l.b16 %v307
  %v392 = vunpack.c.h.b16 %v307
  %v393 = vunpack.c.l.b16 %v308
  %v394 = vunpack.c.l.b16 %v309
  %v395 = vunpack.c.h.b16 %v309
  %v396 = vunpack.c.l.b16 %v310
  %v397 = vunpack.c.l.b16 %v311
  %v398 = vunpack.c.h.b16 %v311
  %v399 = vunpack.c.l.b16 %v312
  %v400 = vunpack.c.l.b16 %v313
  %v401 = vunpack.c.h.b16 %v313
  %v402 = vunpack.c.l.b16 %v314
  %v403 = vunpack.c.l.b16 %v315
  %v404 = vunpack.c.h.b16 %v315
  %v405 = vunpack.c.l.b16 %v316
  %v406 = vunpack.c.l.b16 %v317
  %v407 = vunpack.c.h.b16 %v317
  %v408 = vunpack.c.l.b16 %v318
  %v409 = vpack.c.b16 %v364, %v361
  %v410 = vpack.c.b16 %v365, %v362
  %v411 = vpack.c.b16 %v366, %v363
  %v412 = vpack.c.b16 %v370, %v367
  %v413 = vpack.c.b16 %v371, %v368
  %v414 = vpack.c.b16 %v372, %v369
  %v415 = vpack.c.b16 %v376, %v373
  %v416 = vpack.c.b16 %v377, %v374
  %v417 = vpack.c.b16 %v378, %v375
  %v418 = vpack.c.b16 %v382, %v379
  %v419 = vpack.c.b16 %v383, %v380
  %v420 = vpack.c.b16 %v384, %v381
  %v421 = vpack.c.b16 %v388, %v385
  %v422 = vpack.c.b16 %v389, %v386
  %v423 = vpack.c.b16 %v390, %v387
  %v424 = vpack.c.b16 %v394, %v391
  %v425 = vpack.c.b16 %v395, %v392
  %v426 = vpack.c.b16 %v396, %v393
  %v427 = vpack.c.b16 %v400, %v397
  %v428 = vpack.c.b16 %v401, %v398
  %v429 = vpack.c.b16 %v402, %v399
  %v430 = vpack.c.b16 %v406, %v403
  %v431 = vpack.c.b16 %v407, %v404
  %v432 = vpack.c.b16 %v408, %v405
  %457 = vmatprep.subr.bf16.mxu0 %v431
  %458 = vmatpush1.bf16.msra.mxu0 %v430
  %459 = vmatprep.subr.bf16.mxu0 %v428
  %460 = vmatpush1.bf16.msra.mxu0 %v427
  %461 = vmatprep.subr.bf16.mxu0 %v425
  %462 = vmatpush1.bf16.msra.mxu0 %v424
  %463 = vmatprep.subr.bf16.mxu0 %v422
  %464 = vmatpush1.bf16.msra.mxu0 %v421
  %465 = vmatprep.subr.bf16.mxu0 %v419
  %466 = vmatpush1.bf16.msra.mxu0 %v418
  %467 = vmatprep.subr.bf16.mxu0 %v416
  %468 = vmatpush1.bf16.msra.mxu0 %v415
  %469 = vmatprep.subr.bf16.mxu0 %v413
  %470 = vmatpush1.bf16.msra.mxu0 %v412
  %471 = vmatprep.subr.bf16.mxu0 %v410
  %472 = vmatpush1.bf16.msra.mxu0 %v409
  %473 = vmatprep.subr.bf16.mxu0 0
  %474 = vmatpush2.bf16.msra.mxu0 0
  %475 = vmatprep.subr.bf16.mxu0 0
  %476 = vmatpush2.bf16.msra.mxu0 0
  %477 = vmatprep.subr.bf16.mxu0 0
  %478 = vmatpush2.bf16.msra.mxu0 0
  %479 = vmatprep.subr.bf16.mxu0 0
  %480 = vmatpush2.bf16.msra.mxu0 0
  %481 = vmatprep.subr.bf16.mxu0 0
  %482 = vmatpush2.bf16.msra.mxu0 0
  %483 = vmatprep.subr.bf16.mxu0 0
  %484 = vmatpush2.bf16.msra.mxu0 0
  %485 = vmatprep.subr.bf16.mxu0 0
  %486 = vmatpush2.bf16.msra.mxu0 0
  %487 = vmatprep.subr.bf16.mxu0 0
  %488 = vmatpush2.bf16.msra.mxu0 0
  %489 = vmatprep.mubr.bf16.mxu0 0
  %490 = vmatmul.mubr.bf16.gmra.mxu0 0
  %v491 = vpop.f32.mrf.mxu0
  %v492 = vadd.f32 0.0, %v491
  %v493 = vpop.f32.mrf.mxu0
  %v494 = vadd.f32 0.0, %v493
  %v495 = vpop.f32.mrf.mxu0
  %v496 = vpop.f32.mrf.mxu0
  %497 = vdwg.mxu0
  %498 = vmatprep.subr.bf16.mxu0 0
  %499 = vmatpush1.bf16.msra.mxu0 %v432
  %500 = vmatprep.subr.bf16.mxu0 0
  %501 = vmatpush1.bf16.msra.mxu0 %v429
  %502 = vmatprep.subr.bf16.mxu0 0
  %503 = vmatpush1.bf16.msra.mxu0 %v426
  %504 = vmatprep.subr.bf16.mxu0 0
  %505 = vmatpush1.bf16.msra.mxu0 %v423
  %506 = vmatprep.subr.bf16.mxu0 0
  %507 = vmatpush1.bf16.msra.mxu0 %v420
  %508 = vmatprep.subr.bf16.mxu0 0
  %509 = vmatpush1.bf16.msra.mxu0 %v417
  %510 = vmatprep.subr.bf16.mxu0 0
  %511 = vmatpush1.bf16.msra.mxu0 %v414
  %512 = vmatprep.subr.bf16.mxu0 0
  %513 = vmatpush1.bf16.msra.mxu0 %v411
  %514 = vmatprep.subr.bf16.mxu0 0
  %515 = vmatpush2.bf16.msra.mxu0 0
  %516 = vmatprep.subr.bf16.mxu0 0
  %517 = vmatpush2.bf16.msra.mxu0 0
  %518 = vmatprep.subr.bf16.mxu0 0
  %519 = vmatpush2.bf16.msra.mxu0 0
  %520 = vmatprep.subr.bf16.mxu0 0
  %521 = vmatpush2.bf16.msra.mxu0 0
  %522 = vmatprep.subr.bf16.mxu0 0
  %523 = vmatpush2.bf16.msra.mxu0 0
  %524 = vmatprep.subr.bf16.mxu0 0
  %525 = vmatpush2.bf16.msra.mxu0 0
  %526 = vmatprep.subr.bf16.mxu0 0
  %527 = vmatpush2.bf16.msra.mxu0 0
  %528 = vmatprep.subr.bf16.mxu0 0
  %529 = vmatpush2.bf16.msra.mxu0 0
  %530 = vmatprep.mubr.bf16.mxu0 0
  %531 = vmatmul.mubr.bf16.gmra.mxu0 0
  %v532 = vpop.f32.mrf.mxu0
  %v533 = vadd.f32 0.0, %v532
  %v534 = vpop.f32.mrf.mxu0
  %v535 = vpop.f32.mrf.mxu0
  %v536 = vpop.f32.mrf.mxu0
  %537 = vdwg.mxu0
  %v538 = vadd.f32 %v326, %v492
  %v539 = vxor.u32 %v538, 2147483648
  %v540 = vmul.f32 %v539, 1.442695
  %v541 = vpow.pop %v540
  %v542 = vadd.f32 %v541, 1.0
  %v543 = vrcp.pop %v542
  %v544 = vmul.f32 1.0, %v543
  %v545 = vadd.f32 %v327, %v494
  %v546 = vxor.u32 %v545, 2147483648
  %v547 = vmul.f32 %v546, 1.442695
  %v548 = vpow.pop %v547
  %v549 = vadd.f32 %v548, 1.0
  %v550 = vrcp.pop %v549
  %v551 = vmul.f32 1.0, %v550
  %v552 = vadd.f32 %v533, %v324
  %v553 = vmul.f32 %v544, %v552
  %v554 = vadd.f32 %v328, %v553
  %v555 = vtanh.pop %v554
  %v556 = vsub.f32 0.0, %v555
  %v557 = vmul.f32 %v551, %v556
  %v558 = vadd.f32 %v555, %v557
  %559 = vst [vmem:[#allocation3] sm:$0xff] %v558
  %s560 = scalar_lea.vmem [#allocation2], 24
  %v561 = vld [vmem:[%s560] sm:$0xff]
  %v562 = vld [vmem:[%s560 + $0x8] sm:$0xff]
  %v563 = vld [vmem:[%s560 + $0x10] sm:$0xff]
  %v564 = vpack.c.bf16 %v558, %v558
  %565 = vmatprep.subr.bf16.mxu0 %v431
  %566 = vmatpush1.bf16.msra.mxu0 %v430
  %567 = vmatprep.subr.bf16.mxu0 %v428
  %568 = vmatpush1.bf16.msra.mxu0 %v427
  %569 = vmatprep.subr.bf16.mxu0 %v425
  %570 = vmatpush1.bf16.msra.mxu0 %v424
  %571 = vmatprep.subr.bf16.mxu0 %v422
  %572 = vmatpush1.bf16.msra.mxu0 %v421
  %573 = vmatprep.subr.bf16.mxu0 %v419
  %574 = vmatpush1.bf16.msra.mxu0 %v418
  %575 = vmatprep.subr.bf16.mxu0 %v416
  %576 = vmatpush1.bf16.msra.mxu0 %v415
  %577 = vmatprep.subr.bf16.mxu0 %v413
  %578 = vmatpush1.bf16.msra.mxu0 %v412
  %579 = vmatprep.subr.bf16.mxu0 %v410
  %580 = vmatpush1.bf16.msra.mxu0 %v409
  %581 = vmatprep.subr.bf16.mxu0 0
  %582 = vmatpush2.bf16.msra.mxu0 0
  %583 = vmatprep.subr.bf16.mxu0 0
  %584 = vmatpush2.bf16.msra.mxu0 0
  %585 = vmatprep.subr.bf16.mxu0 0
  %586 = vmatpush2.bf16.msra.mxu0 0
  %587 = vmatprep.subr.bf16.mxu0 0
  %588 = vmatpush2.bf16.msra.mxu0 0
  %589 = vmatprep.subr.bf16.mxu0 0
  %590 = vmatpush2.bf16.msra.mxu0 0
  %591 = vmatprep.subr.bf16.mxu0 0
  %592 = vmatpush2.bf16.msra.mxu0 0
  %593 = vmatprep.subr.bf16.mxu0 0
  %594 = vmatpush2.bf16.msra.mxu0 0
  %595 = vmatprep.subr.bf16.mxu0 0
  %596 = vmatpush2.bf16.msra.mxu0 0
  %597 = vmatprep.mubr.bf16.mxu0 0
  %598 = vmatmul.mubr.bf16.gmra.mxu0 %v564
  %v599 = vpop.f32.mrf.mxu0
  %v600 = vadd.f32 0.0, %v599
  %v601 = vpop.f32.mrf.mxu0
  %v602 = vadd.f32 0.0, %v601
  %v603 = vpop.f32.mrf.mxu0
  %v604 = vpop.f32.mrf.mxu0
  %605 = vdwg.mxu0
  %606 = vmatprep.subr.bf16.mxu0 0
  %607 = vmatpush1.bf16.msra.mxu0 %v432
  %608 = vmatprep.subr.bf16.mxu0 0
  %609 = vmatpush1.bf16.msra.mxu0 %v429
  %610 = vmatprep.subr.bf16.mxu0 0
  %611 = vmatpush1.bf16.msra.mxu0 %v426
  %612 = vmatprep.subr.bf16.mxu0 0
  %613 = vmatpush1.bf16.msra.mxu0 %v423
  %614 = vmatprep.subr.bf16.mxu0 0
  %615 = vmatpush1.bf16.msra.mxu0 %v420
  %616 = vmatprep.subr.bf16.mxu0 0
  %617 = vmatpush1.bf16.msra.mxu0 %v417
  %618 = vmatprep.subr.bf16.mxu0 0
  %619 = vmatpush1.bf16.msra.mxu0 %v414
  %620 = vmatprep.subr.bf16.mxu0 0
  %621 = vmatpush1.bf16.msra.mxu0 %v411
  %622 = vmatprep.subr.bf16.mxu0 0
  %623 = vmatpush2.bf16.msra.mxu0 0
  %624 = vmatprep.subr.bf16.mxu0 0
  %625 = vmatpush2.bf16.msra.mxu0 0
  %626 = vmatprep.subr.bf16.mxu0 0
  %627 = vmatpush2.bf16.msra.mxu0 0
  %628 = vmatprep.subr.bf16.mxu0 0
  %629 = vmatpush2.bf16.msra.mxu0 0
  %630 = vmatprep.subr.bf16.mxu0 0
  %631 = vmatpush2.bf16.msra.mxu0 0
  %632 = vmatprep.subr.bf16.mxu0 0
  %633 = vmatpush2.bf16.msra.mxu0 0
  %634 = vmatprep.subr.bf16.mxu0 0
  %635 = vmatpush2.bf16.msra.mxu0 0
  %636 = vmatprep.subr.bf16.mxu0 0
  %637 = vmatpush2.bf16.msra.mxu0 0
  %638 = vmatprep.mubr.bf16.mxu0 0
  %639 = vmatmul.mubr.bf16.gmra.mxu0 %v564
  %v640 = vpop.f32.mrf.mxu0
  %v641 = vadd.f32 0.0, %v640
  %v642 = vpop.f32.mrf.mxu0
  %v643 = vpop.f32.mrf.mxu0
  %v644 = vpop.f32.mrf.mxu0
  %645 = vdwg.mxu0
  %v646 = vadd.f32 %v561, %v600
  %v647 = vxor.u32 %v646, 2147483648
  %v648 = vmul.f32 %v647, 1.442695
  %v649 = vpow.pop %v648
  %v650 = vadd.f32 %v649, 1.0
  %v651 = vrcp.pop %v650
  %v652 = vmul.f32 1.0, %v651
  %v653 = vadd.f32 %v562, %v602
  %v654 = vxor.u32 %v653, 2147483648
  %v655 = vmul.f32 %v654, 1.442695
  %v656 = vpow.pop %v655
  %v657 = vadd.f32 %v656, 1.0
  %v658 = vrcp.pop %v657
  %v659 = vmul.f32 1.0, %v658
  %v660 = vadd.f32 %v641, %v324
  %v661 = vmul.f32 %v652, %v660
  %v662 = vadd.f32 %v563, %v661
  %v663 = vtanh.pop %v662
  %v664 = vsub.f32 %v558, %v663
  %v665 = vmul.f32 %v659, %v664
  %v666 = vadd.f32 %v663, %v665
  %s667 = scalar_lea.vmem [#allocation3], 8
  %668 = vst [vmem:[%s667] sm:$0xff] %v666
  %s669 = scalar_lea.vmem [#allocation2], 48
  %v670 = vld [vmem:[%s669] sm:$0xff]
  %v671 = vld [vmem:[%s669 + $0x8] sm:$0xff]
  %v672 = vld [vmem:[%s669 + $0x10] sm:$0xff]
  %v673 = vpack.c.bf16 %v666, %v666
  %674 = vmatprep.subr.bf16.mxu0 %v431
  %675 = vmatpush1.bf16.msra.mxu0 %v430
  %676 = vmatprep.subr.bf16.mxu0 %v428
  %677 = vmatpush1.bf16.msra.mxu0 %v427
  %678 = vmatprep.subr.bf16.mxu0 %v425
  %679 = vmatpush1.bf16.msra.mxu0 %v424
  %680 = vmatprep.subr.bf16.mxu0 %v422
  %681 = vmatpush1.bf16.msra.mxu0 %v421
  %682 = vmatprep.subr.bf16.mxu0 %v419
  %683 = vmatpush1.bf16.msra.mxu0 %v418
  %684 = vmatprep.subr.bf16.mxu0 %v416
  %685 = vmatpush1.bf16.msra.mxu0 %v415
  %686 = vmatprep.subr.bf16.mxu0 %v413
  %687 = vmatpush1.bf16.msra.mxu0 %v412
  %688 = vmatprep.subr.bf16.mxu0 %v410
  %689 = vmatpush1.bf16.msra.mxu0 %v409
  %690 = vmatprep.subr.bf16.mxu0 0
  %691 = vmatpush2.bf16.msra.mxu0 0
  %692 = vmatprep.subr.bf16.mxu0 0
  %693 = vmatpush2.bf16.msra.mxu0 0
  %694 = vmatprep.subr.bf16.mxu0 0
  %695 = vmatpush2.bf16.msra.mxu0 0
  %696 = vmatprep.subr.bf16.mxu0 0
  %697 = vmatpush2.bf16.msra.mxu0 0
  %698 = vmatprep.subr.bf16.mxu0 0
  %699 = vmatpush2.bf16.msra.mxu0 0
  %700 = vmatprep.subr.bf16.mxu0 0
  %701 = vmatpush2.bf16.msra.mxu0 0
  %702 = vmatprep.subr.bf16.mxu0 0
  %703 = vmatpush2.bf16.msra.mxu0 0
  %704 = vmatprep.subr.bf16.mxu0 0
  %705 = vmatpush2.bf16.msra.mxu0 0
  %706 = vmatprep.mubr.bf16.mxu0 0
  %707 = vmatmul.mubr.bf16.gmra.mxu0 %v673
  %v708 = vpop.f32.mrf.mxu0
  %v709 = vadd.f32 0.0, %v708
  %v710 = vpop.f32.mrf.mxu0
  %v711 = vadd.f32 0.0, %v710
  %v712 = vpop.f32.mrf.mxu0
  %v713 = vpop.f32.mrf.mxu0
  %714 = vdwg.mxu0
  %715 = vmatprep.subr.bf16.mxu0 0
  %716 = vmatpush1.bf16.msra.mxu0 %v432
  %717 = vmatprep.subr.bf16.mxu0 0
  %718 = vmatpush1.bf16.msra.mxu0 %v429
  %719 = vmatprep.subr.bf16.mxu0 0
  %720 = vmatpush1.bf16.msra.mxu0 %v426
  %721 = vmatprep.subr.bf16.mxu0 0
  %722 = vmatpush1.bf16.msra.mxu0 %v423
  %723 = vmatprep.subr.bf16.mxu0 0
  %724 = vmatpush1.bf16.msra.mxu0 %v420
  %725 = vmatprep.subr.bf16.mxu0 0
  %726 = vmatpush1.bf16.msra.mxu0 %v417
  %727 = vmatprep.subr.bf16.mxu0 0
  %728 = vmatpush1.bf16.msra.mxu0 %v414
  %729 = vmatprep.subr.bf16.mxu0 0
  %730 = vmatpush1.bf16.msra.mxu0 %v411
  %731 = vmatprep.subr.bf16.mxu0 0
  %732 = vmatpush2.bf16.msra.mxu0 0
  %733 = vmatprep.subr.bf16.mxu0 0
  %734 = vmatpush2.bf16.msra.mxu0 0
  %735 = vmatprep.subr.bf16.mxu0 0
  %736 = vmatpush2.bf16.msra.mxu0 0
  %737 = vmatprep.subr.bf16.mxu0 0
  %738 = vmatpush2.bf16.msra.mxu0 0
  %739 = vmatprep.subr.bf16.mxu0 0
  %740 = vmatpush2.bf16.msra.mxu0 0
  %741 = vmatprep.subr.bf16.mxu0 0
  %742 = vmatpush2.bf16.msra.mxu0 0
  %743 = vmatprep.subr.bf16.mxu0 0
  %744 = vmatpush2.bf16.msra.mxu0 0
  %745 = vmatprep.subr.bf16.mxu0 0
  %746 = vmatpush2.bf16.msra.mxu0 0
  %747 = vmatprep.mubr.bf16.mxu0 0
  %748 = vmatmul.mubr.bf16.gmra.mxu0 %v673
  %v749 = vpop.f32.mrf.mxu0
  %v750 = vadd.f32 0.0, %v749
  %v751 = vpop.f32.mrf.mxu0
  %v752 = vpop.f32.mrf.mxu0
  %v753 = vpop.f32.mrf.mxu0
  %754 = vdwg.mxu0
  %v755 = vadd.f32 %v670, %v709
  %v756 = vxor.u32 %v755, 2147483648
  %v757 = vmul.f32 %v756, 1.442695
  %v758 = vpow.pop %v757
  %v759 = vadd.f32 %v758, 1.0
  %v760 = vrcp.pop %v759
  %v761 = vmul.f32 1.0, %v760
  %v762 = vadd.f32 %v671, %v711
  %v763 = vxor.u32 %v762, 2147483648
  %v764 = vmul.f32 %v763, 1.442695
  %v765 = vpow.pop %v764
  %v766 = vadd.f32 %v765, 1.0
  %v767 = vrcp.pop %v766
  %v768 = vmul.f32 1.0, %v767
  %v769 = vadd.f32 %v750, %v324
  %v770 = vmul.f32 %v761, %v769
  %v771 = vadd.f32 %v672, %v770
  %v772 = vtanh.pop %v771
  %v773 = vsub.f32 %v666, %v772
  %v774 = vmul.f32 %v768, %v773
  %v775 = vadd.f32 %v772, %v774
  %s776 = scalar_lea.vmem [#allocation3], 16
  %777 = vst [vmem:[%s776] sm:$0xff] %v775
  %s778 = scalar_lea.vmem [#allocation2], 72
  %v779 = vld [vmem:[%s778] sm:$0xff]
  %v780 = vld [vmem:[%s778 + $0x8] sm:$0xff]
  %v781 = vld [vmem:[%s778 + $0x10] sm:$0xff]
  %v782 = vpack.c.bf16 %v775, %v775
  %783 = vmatprep.subr.bf16.mxu0 %v431
  %784 = vmatpush1.bf16.msra.mxu0 %v430
  %785 = vmatprep.subr.bf16.mxu0 %v428
  %786 = vmatpush1.bf16.msra.mxu0 %v427
  %787 = vmatprep.subr.bf16.mxu0 %v425
  %788 = vmatpush1.bf16.msra.mxu0 %v424
  %789 = vmatprep.subr.bf16.mxu0 %v422
  %790 = vmatpush1.bf16.msra.mxu0 %v421
  %791 = vmatprep.subr.bf16.mxu0 %v419
  %792 = vmatpush1.bf16.msra.mxu0 %v418
  %793 = vmatprep.subr.bf16.mxu0 %v416
  %794 = vmatpush1.bf16.msra.mxu0 %v415
  %795 = vmatprep.subr.bf16.mxu0 %v413
  %796 = vmatpush1.bf16.msra.mxu0 %v412
  %797 = vmatprep.subr.bf16.mxu0 %v410
  %798 = vmatpush1.bf16.msra.mxu0 %v409
  %799 = vmatprep.subr.bf16.mxu0 0
  %800 = vmatpush2.bf16.msra.mxu0 0
  %801 = vmatprep.subr.bf16.mxu0 0
  %802 = vmatpush2.bf16.msra.mxu0 0
  %803 = vmatprep.subr.bf16.mxu0 0
  %804 = vmatpush2.bf16.msra.mxu0 0
  %805 = vmatprep.subr.bf16.mxu0 0
  %806 = vmatpush2.bf16.msra.mxu0 0
  %807 = vmatprep.subr.bf16.mxu0 0
  %808 = vmatpush2.bf16.msra.mxu0 0
  %809 = vmatprep.subr.bf16.mxu0 0
  %810 = vmatpush2.bf16.msra.mxu0 0
  %811 = vmatprep.subr.bf16.mxu0 0
  %812 = vmatpush2.bf16.msra.mxu0 0
  %813 = vmatprep.subr.bf16.mxu0 0
  %814 = vmatpush2.bf16.msra.mxu0 0
  %815 = vmatprep.mubr.bf16.mxu0 0
  %816 = vmatmul.mubr.bf16.gmra.mxu0 %v782
  %v817 = vpop.f32.mrf.mxu0
  %v818 = vadd.f32 0.0, %v817
  %v819 = vpop.f32.mrf.mxu0
  %v820 = vadd.f32 0.0, %v819
  %v821 = vpop.f32.mrf.mxu0
  %v822 = vpop.f32.mrf.mxu0
  %823 = vdwg.mxu0
  %824 = vmatprep.subr.bf16.mxu0 0
  %825 = vmatpush1.bf16.msra.mxu0 %v432
  %826 = vmatprep.subr.bf16.mxu0 0
  %827 = vmatpush1.bf16.msra.mxu0 %v429
  %828 = vmatprep.subr.bf16.mxu0 0
  %829 = vmatpush1.bf16.msra.mxu0 %v426
  %830 = vmatprep.subr.bf16.mxu0 0
  %831 = vmatpush1.bf16.msra.mxu0 %v423
  %832 = vmatprep.subr.bf16.mxu0 0
  %833 = vmatpush1.bf16.msra.mxu0 %v420
  %834 = vmatprep.subr.bf16.mxu0 0
  %835 = vmatpush1.bf16.msra.mxu0 %v417
  %836 = vmatprep.subr.bf16.mxu0 0
  %837 = vmatpush1.bf16.msra.mxu0 %v414
  %838 = vmatprep.subr.bf16.mxu0 0
  %839 = vmatpush1.bf16.msra.mxu0 %v411
  %840 = vmatprep.subr.bf16.mxu0 0
  %841 = vmatpush2.bf16.msra.mxu0 0
  %842 = vmatprep.subr.bf16.mxu0 0
  %843 = vmatpush2.bf16.msra.mxu0 0
  %844 = vmatprep.subr.bf16.mxu0 0
  %845 = vmatpush2.bf16.msra.mxu0 0
  %846 = vmatprep.subr.bf16.mxu0 0
  %847 = vmatpush2.bf16.msra.mxu0 0
  %848 = vmatprep.subr.bf16.mxu0 0
  %849 = vmatpush2.bf16.msra.mxu0 0
  %850 = vmatprep.subr.bf16.mxu0 0
  %851 = vmatpush2.bf16.msra.mxu0 0
  %852 = vmatprep.subr.bf16.mxu0 0
  %853 = vmatpush2.bf16.msra.mxu0 0
  %854 = vmatprep.subr.bf16.mxu0 0
  %855 = vmatpush2.bf16.msra.mxu0 0
  %856 = vmatprep.mubr.bf16.mxu0 0
  %857 = vmatmul.mubr.bf16.gmra.mxu0 %v782
  %v858 = vpop.f32.mrf.mxu0
  %v859 = vadd.f32 0.0, %v858
  %v860 = vpop.f32.mrf.mxu0
  %v861 = vpop.f32.mrf.mxu0
  %v862 = vpop.f32.mrf.mxu0
  %863 = vdwg.mxu0
  %v864 = vadd.f32 %v779, %v818
  %v865 = vxor.u32 %v864, 2147483648
  %v866 = vmul.f32 %v865, 1.442695
  %v867 = vpow.pop %v866
  %v868 = vadd.f32 %v867, 1.0
  %v869 = vrcp.pop %v868
  %v870 = vmul.f32 1.0, %v869
  %v871 = vadd.f32 %v780, %v820
  %v872 = vxor.u32 %v871, 2147483648
  %v873 = vmul.f32 %v872, 1.442695
  %v874 = vpow.pop %v873
  %v875 = vadd.f32 %v874, 1.0
  %v876 = vrcp.pop %v875
  %v877 = vmul.f32 1.0, %v876
  %v878 = vadd.f32 %v859, %v324
  %v879 = vmul.f32 %v870, %v878
  %v880 = vadd.f32 %v781, %v879
  %v881 = vtanh.pop %v880
  %v882 = vsub.f32 %v775, %v881
  %v883 = vmul.f32 %v877, %v882
  %v884 = vadd.f32 %v881, %v883
  %s885 = scalar_lea.vmem [#allocation3], 24
  %886 = vst [vmem:[%s885] sm:$0xff] %v884
  %s887 = scalar_lea.vmem [#allocation2], 96
  %v888 = vld [vmem:[%s887] sm:$0xff]
  %v889 = vld [vmem:[%s887 + $0x8] sm:$0xff]
  %v890 = vld [vmem:[%s887 + $0x10] sm:$0xff]
  %v891 = vpack.c.bf16 %v884, %v884
  %892 = vmatprep.subr.bf16.mxu0 %v431
  %893 = vmatpush1.bf16.msra.mxu0 %v430
  %894 = vmatprep.subr.bf16.mxu0 %v428
  %895 = vmatpush1.bf16.msra.mxu0 %v427
  %896 = vmatprep.subr.bf16.mxu0 %v425
  %897 = vmatpush1.bf16.msra.mxu0 %v424
  %898 = vmatprep.subr.bf16.mxu0 %v422
  %899 = vmatpush1.bf16.msra.mxu0 %v421
  %900 = vmatprep.subr.bf16.mxu0 %v419
  %901 = vmatpush1.bf16.msra.mxu0 %v418
  %902 = vmatprep.subr.bf16.mxu0 %v416
  %903 = vmatpush1.bf16.msra.mxu0 %v415
  %904 = vmatprep.subr.bf16.mxu0 %v413
  %905 = vmatpush1.bf16.msra.mxu0 %v412
  %906 = vmatprep.subr.bf16.mxu0 %v410
  %907 = vmatpush1.bf16.msra.mxu0 %v409
  %908 = vmatprep.subr.bf16.mxu0 0
  %909 = vmatpush2.bf16.msra.mxu0 0
  %910 = vmatprep.subr.bf16.mxu0 0
  %911 = vmatpush2.bf16.msra.mxu0 0
  %912 = vmatprep.subr.bf16.mxu0 0
  %913 = vmatpush2.bf16.msra.mxu0 0
  %914 = vmatprep.subr.bf16.mxu0 0
  %915 = vmatpush2.bf16.msra.mxu0 0
  %916 = vmatprep.subr.bf16.mxu0 0
  %917 = vmatpush2.bf16.msra.mxu0 0
  %918 = vmatprep.subr.bf16.mxu0 0
  %919 = vmatpush2.bf16.msra.mxu0 0
  %920 = vmatprep.subr.bf16.mxu0 0
  %921 = vmatpush2.bf16.msra.mxu0 0
  %922 = vmatprep.subr.bf16.mxu0 0
  %923 = vmatpush2.bf16.msra.mxu0 0
  %924 = vmatprep.mubr.bf16.mxu0 0
  %925 = vmatmul.mubr.bf16.gmra.mxu0 %v891
  %v926 = vpop.f32.mrf.mxu0
  %v927 = vadd.f32 0.0, %v926
  %v928 = vpop.f32.mrf.mxu0
  %v929 = vadd.f32 0.0, %v928
  %v930 = vpop.f32.mrf.mxu0
  %v931 = vpop.f32.mrf.mxu0
  %932 = vdwg.mxu0
  %933 = vmatprep.subr.bf16.mxu0 0
  %934 = vmatpush1.bf16.msra.mxu0 %v432
  %935 = vmatprep.subr.bf16.mxu0 0
  %936 = vmatpush1.bf16.msra.mxu0 %v429
  %937 = vmatprep.subr.bf16.mxu0 0
  %938 = vmatpush1.bf16.msra.mxu0 %v426
  %939 = vmatprep.subr.bf16.mxu0 0
  %940 = vmatpush1.bf16.msra.mxu0 %v423
  %941 = vmatprep.subr.bf16.mxu0 0
  %942 = vmatpush1.bf16.msra.mxu0 %v420
  %943 = vmatprep.subr.bf16.mxu0 0
  %944 = vmatpush1.bf16.msra.mxu0 %v417
  %945 = vmatprep.subr.bf16.mxu0 0
  %946 = vmatpush1.bf16.msra.mxu0 %v414
  %947 = vmatprep.subr.bf16.mxu0 0
  %948 = vmatpush1.bf16.msra.mxu0 %v411
  %949 = vmatprep.subr.bf16.mxu0 0
  %950 = vmatpush2.bf16.msra.mxu0 0
  %951 = vmatprep.subr.bf16.mxu0 0
  %952 = vmatpush2.bf16.msra.mxu0 0
  %953 = vmatprep.subr.bf16.mxu0 0
  %954 = vmatpush2.bf16.msra.mxu0 0
  %955 = vmatprep.subr.bf16.mxu0 0
  %956 = vmatpush2.bf16.msra.mxu0 0
  %957 = vmatprep.subr.bf16.mxu0 0
  %958 = vmatpush2.bf16.msra.mxu0 0
  %959 = vmatprep.subr.bf16.mxu0 0
  %960 = vmatpush2.bf16.msra.mxu0 0
  %961 = vmatprep.subr.bf16.mxu0 0
  %962 = vmatpush2.bf16.msra.mxu0 0
  %963 = vmatprep.subr.bf16.mxu0 0
  %964 = vmatpush2.bf16.msra.mxu0 0
  %965 = vmatprep.mubr.bf16.mxu0 0
  %966 = vmatmul.mubr.bf16.gmra.mxu0 %v891
  %v967 = vpop.f32.mrf.mxu0
  %v968 = vadd.f32 0.0, %v967
  %v969 = vpop.f32.mrf.mxu0
  %v970 = vpop.f32.mrf.mxu0
  %v971 = vpop.f32.mrf.mxu0
  %972 = vdwg.mxu0
  %v973 = vadd.f32 %v888, %v927
  %v974 = vxor.u32 %v973, 2147483648
  %v975 = vmul.f32 %v974, 1.442695
  %v976 = vpow.pop %v975
  %v977 = vadd.f32 %v976, 1.0
  %v978 = vrcp.pop %v977
  %v979 = vmul.f32 1.0, %v978
  %v980 = vadd.f32 %v889, %v929
  %v981 = vxor.u32 %v980, 2147483648
  %v982 = vmul.f32 %v981, 1.442695
  %v983 = vpow.pop %v982
  %v984 = vadd.f32 %v983, 1.0
  %v985 = vrcp.pop %v984
  %v986 = vmul.f32 1.0, %v985
  %v987 = vadd.f32 %v968, %v324
  %v988 = vmul.f32 %v979, %v987
  %v989 = vadd.f32 %v890, %v988
  %v990 = vtanh.pop %v989
  %v991 = vsub.f32 %v884, %v990
  %v992 = vmul.f32 %v986, %v991
  %v993 = vadd.f32 %v990, %v992
  %s994 = scalar_lea.vmem [#allocation3], 32
  %995 = vst [vmem:[%s994] sm:$0xff] %v993
  %s996 = scalar_lea.vmem [#allocation2], 120
  %v997 = vld [vmem:[%s996] sm:$0xff]
  %v998 = vld [vmem:[%s996 + $0x8] sm:$0xff]
  %v999 = vld [vmem:[%s996 + $0x10] sm:$0xff]
  %v1000 = vpack.c.bf16 %v993, %v993
  %1001 = vmatprep.subr.bf16.mxu0 %v431
  %1002 = vmatpush1.bf16.msra.mxu0 %v430
  %1003 = vmatprep.subr.bf16.mxu0 %v428
  %1004 = vmatpush1.bf16.msra.mxu0 %v427
  %1005 = vmatprep.subr.bf16.mxu0 %v425
  %1006 = vmatpush1.bf16.msra.mxu0 %v424
  %1007 = vmatprep.subr.bf16.mxu0 %v422
  %1008 = vmatpush1.bf16.msra.mxu0 %v421
  %1009 = vmatprep.subr.bf16.mxu0 %v419
  %1010 = vmatpush1.bf16.msra.mxu0 %v418
  %1011 = vmatprep.subr.bf16.mxu0 %v416
  %1012 = vmatpush1.bf16.msra.mxu0 %v415
  %1013 = vmatprep.subr.bf16.mxu0 %v413
  %1014 = vmatpush1.bf16.msra.mxu0 %v412
  %1015 = vmatprep.subr.bf16.mxu0 %v410
  %1016 = vmatpush1.bf16.msra.mxu0 %v409
  %1017 = vmatprep.subr.bf16.mxu0 0
  %1018 = vmatpush2.bf16.msra.mxu0 0
  %1019 = vmatprep.subr.bf16.mxu0 0
  %1020 = vmatpush2.bf16.msra.mxu0 0
  %1021 = vmatprep.subr.bf16.mxu0 0
  %1022 = vmatpush2.bf16.msra.mxu0 0
  %1023 = vmatprep.subr.bf16.mxu0 0
  %1024 = vmatpush2.bf16.msra.mxu0 0
  %1025 = vmatprep.subr.bf16.mxu0 0
  %1026 = vmatpush2.bf16.msra.mxu0 0
  %1027 = vmatprep.subr.bf16.mxu0 0
  %1028 = vmatpush2.bf16.msra.mxu0 0
  %1029 = vmatprep.subr.bf16.mxu0 0
  %1030 = vmatpush2.bf16.msra.mxu0 0
  %1031 = vmatprep.subr.bf16.mxu0 0
  %1032 = vmatpush2.bf16.msra.mxu0 0
  %1033 = vmatprep.mubr.bf16.mxu0 0
  %1034 = vmatmul.mubr.bf16.gmra.mxu0 %v1000
  %v1035 = vpop.f32.mrf.mxu0
  %v1036 = vadd.f32 0.0, %v1035
  %v1037 = vpop.f32.mrf.mxu0
  %v1038 = vadd.f32 0.0, %v1037
  %v1039 = vpop.f32.mrf.mxu0
  %v1040 = vpop.f32.mrf.mxu0
  %1041 = vdwg.mxu0
  %1042 = vmatprep.subr.bf16.mxu0 0
  %1043 = vmatpush1.bf16.msra.mxu0 %v432
  %1044 = vmatprep.subr.bf16.mxu0 0
  %1045 = vmatpush1.bf16.msra.mxu0 %v429
  %1046 = vmatprep.subr.bf16.mxu0 0
  %1047 = vmatpush1.bf16.msra.mxu0 %v426
  %1048 = vmatprep.subr.bf16.mxu0 0
  %1049 = vmatpush1.bf16.msra.mxu0 %v423
  %1050 = vmatprep.subr.bf16.mxu0 0
  %1051 = vmatpush1.bf16.msra.mxu0 %v420
  %1052 = vmatprep.subr.bf16.mxu0 0
  %1053 = vmatpush1.bf16.msra.mxu0 %v417
  %1054 = vmatprep.subr.bf16.mxu0 0
  %1055 = vmatpush1.bf16.msra.mxu0 %v414
  %1056 = vmatprep.subr.bf16.mxu0 0
  %1057 = vmatpush1.bf16.msra.mxu0 %v411
  %1058 = vmatprep.subr.bf16.mxu0 0
  %1059 = vmatpush2.bf16.msra.mxu0 0
  %1060 = vmatprep.subr.bf16.mxu0 0
  %1061 = vmatpush2.bf16.msra.mxu0 0
  %1062 = vmatprep.subr.bf16.mxu0 0
  %1063 = vmatpush2.bf16.msra.mxu0 0
  %1064 = vmatprep.subr.bf16.mxu0 0
  %1065 = vmatpush2.bf16.msra.mxu0 0
  %1066 = vmatprep.subr.bf16.mxu0 0
  %1067 = vmatpush2.bf16.msra.mxu0 0
  %1068 = vmatprep.subr.bf16.mxu0 0
  %1069 = vmatpush2.bf16.msra.mxu0 0
  %1070 = vmatprep.subr.bf16.mxu0 0
  %1071 = vmatpush2.bf16.msra.mxu0 0
  %1072 = vmatprep.subr.bf16.mxu0 0
  %1073 = vmatpush2.bf16.msra.mxu0 0
  %1074 = vmatprep.mubr.bf16.mxu0 0
  %1075 = vmatmul.mubr.bf16.gmra.mxu0 %v1000
  %v1076 = vpop.f32.mrf.mxu0
  %v1077 = vadd.f32 0.0, %v1076
  %v1078 = vpop.f32.mrf.mxu0
  %v1079 = vpop.f32.mrf.mxu0
  %v1080 = vpop.f32.mrf.mxu0
  %1081 = vdwg.mxu0
  %v1082 = vadd.f32 %v997, %v1036
  %v1083 = vxor.u32 %v1082, 2147483648
  %v1084 = vmul.f32 %v1083, 1.442695
  %v1085 = vpow.pop %v1084
  %v1086 = vadd.f32 %v1085, 1.0
  %v1087 = vrcp.pop %v1086
  %v1088 = vmul.f32 1.0, %v1087
  %v1089 = vadd.f32 %v998, %v1038
  %v1090 = vxor.u32 %v1089, 2147483648
  %v1091 = vmul.f32 %v1090, 1.442695
  %v1092 = vpow.pop %v1091
  %v1093 = vadd.f32 %v1092, 1.0
  %v1094 = vrcp.pop %v1093
  %v1095 = vmul.f32 1.0, %v1094
  %v1096 = vadd.f32 %v1077, %v324
  %v1097 = vmul.f32 %v1088, %v1096
  %v1098 = vadd.f32 %v999, %v1097
  %v1099 = vtanh.pop %v1098
  %v1100 = vsub.f32 %v993, %v1099
  %v1101 = vmul.f32 %v1095, %v1100
  %v1102 = vadd.f32 %v1099, %v1101
  %s1103 = scalar_lea.vmem [#allocation3], 40
  %1104 = vst [vmem:[%s1103] sm:$0xff] %v1102
  %s1105 = scalar_lea.vmem [#allocation2], 144
  %v1106 = vld [vmem:[%s1105] sm:$0xff]
  %v1107 = vld [vmem:[%s1105 + $0x8] sm:$0xff]
  %v1108 = vld [vmem:[%s1105 + $0x10] sm:$0xff]
  %v1109 = vpack.c.bf16 %v1102, %v1102
  %1110 = vmatprep.subr.bf16.mxu0 %v431
  %1111 = vmatpush1.bf16.msra.mxu0 %v430
  %1112 = vmatprep.subr.bf16.mxu0 %v428
  %1113 = vmatpush1.bf16.msra.mxu0 %v427
  %1114 = vmatprep.subr.bf16.mxu0 %v425
  %1115 = vmatpush1.bf16.msra.mxu0 %v424
  %1116 = vmatprep.subr.bf16.mxu0 %v422
  %1117 = vmatpush1.bf16.msra.mxu0 %v421
  %1118 = vmatprep.subr.bf16.mxu0 %v419
  %1119 = vmatpush1.bf16.msra.mxu0 %v418
  %1120 = vmatprep.subr.bf16.mxu0 %v416
  %1121 = vmatpush1.bf16.msra.mxu0 %v415
  %1122 = vmatprep.subr.bf16.mxu0 %v413
  %1123 = vmatpush1.bf16.msra.mxu0 %v412
  %1124 = vmatprep.subr.bf16.mxu0 %v410
  %1125 = vmatpush1.bf16.msra.mxu0 %v409
  %1126 = vmatprep.subr.bf16.mxu0 0
  %1127 = vmatpush2.bf16.msra.mxu0 0
  %1128 = vmatprep.subr.bf16.mxu0 0
  %1129 = vmatpush2.bf16.msra.mxu0 0
  %1130 = vmatprep.subr.bf16.mxu0 0
  %1131 = vmatpush2.bf16.msra.mxu0 0
  %1132 = vmatprep.subr.bf16.mxu0 0
  %1133 = vmatpush2.bf16.msra.mxu0 0
  %1134 = vmatprep.subr.bf16.mxu0 0
  %1135 = vmatpush2.bf16.msra.mxu0 0
  %1136 = vmatprep.subr.bf16.mxu0 0
  %1137 = vmatpush2.bf16.msra.mxu0 0
  %1138 = vmatprep.subr.bf16.mxu0 0
  %1139 = vmatpush2.bf16.msra.mxu0 0
  %1140 = vmatprep.subr.bf16.mxu0 0
  %1141 = vmatpush2.bf16.msra.mxu0 0
  %1142 = vmatprep.mubr.bf16.mxu0 0
  %1143 = vmatmul.mubr.bf16.gmra.mxu0 %v1109
  %v1144 = vpop.f32.mrf.mxu0
  %v1145 = vadd.f32 0.0, %v1144
  %v1146 = vpop.f32.mrf.mxu0
  %v1147 = vadd.f32 0.0, %v1146
  %v1148 = vpop.f32.mrf.mxu0
  %v1149 = vpop.f32.mrf.mxu0
  %1150 = vdwg.mxu0
  %1151 = vmatprep.subr.bf16.mxu0 0
  %1152 = vmatpush1.bf16.msra.mxu0 %v432
  %1153 = vmatprep.subr.bf16.mxu0 0
  %1154 = vmatpush1.bf16.msra.mxu0 %v429
  %1155 = vmatprep.subr.bf16.mxu0 0
  %1156 = vmatpush1.bf16.msra.mxu0 %v426
  %1157 = vmatprep.subr.bf16.mxu0 0
  %1158 = vmatpush1.bf16.msra.mxu0 %v423
  %1159 = vmatprep.subr.bf16.mxu0 0
  %1160 = vmatpush1.bf16.msra.mxu0 %v420
  %1161 = vmatprep.subr.bf16.mxu0 0
  %1162 = vmatpush1.bf16.msra.mxu0 %v417
  %1163 = vmatprep.subr.bf16.mxu0 0
  %1164 = vmatpush1.bf16.msra.mxu0 %v414
  %1165 = vmatprep.subr.bf16.mxu0 0
  %1166 = vmatpush1.bf16.msra.mxu0 %v411
  %1167 = vmatprep.subr.bf16.mxu0 0
  %1168 = vmatpush2.bf16.msra.mxu0 0
  %1169 = vmatprep.subr.bf16.mxu0 0
  %1170 = vmatpush2.bf16.msra.mxu0 0
  %1171 = vmatprep.subr.bf16.mxu0 0
  %1172 = vmatpush2.bf16.msra.mxu0 0
  %1173 = vmatprep.subr.bf16.mxu0 0
  %1174 = vmatpush2.bf16.msra.mxu0 0
  %1175 = vmatprep.subr.bf16.mxu0 0
  %1176 = vmatpush2.bf16.msra.mxu0 0
  %1177 = vmatprep.subr.bf16.mxu0 0
  %1178 = vmatpush2.bf16.msra.mxu0 0
  %1179 = vmatprep.subr.bf16.mxu0 0
  %1180 = vmatpush2.bf16.msra.mxu0 0
  %1181 = vmatprep.subr.bf16.mxu0 0
  %1182 = vmatpush2.bf16.msra.mxu0 0
  %1183 = vmatprep.mubr.bf16.mxu0 0
  %1184 = vmatmul.mubr.bf16.gmra.mxu0 %v1109
  %v1185 = vpop.f32.mrf.mxu0
  %v1186 = vadd.f32 0.0, %v1185
  %v1187 = vpop.f32.mrf.mxu0
  %v1188 = vpop.f32.mrf.mxu0
  %v1189 = vpop.f32.mrf.mxu0
  %1190 = vdwg.mxu0
  %v1191 = vadd.f32 %v1106, %v1145
  %v1192 = vxor.u32 %v1191, 2147483648
  %v1193 = vmul.f32 %v1192, 1.442695
  %v1194 = vpow.pop %v1193
  %v1195 = vadd.f32 %v1194, 1.0
  %v1196 = vrcp.pop %v1195
  %v1197 = vmul.f32 1.0, %v1196
  %v1198 = vadd.f32 %v1107, %v1147
  %v1199 = vxor.u32 %v1198, 2147483648
  %v1200 = vmul.f32 %v1199, 1.442695
  %v1201 = vpow.pop %v1200
  %v1202 = vadd.f32 %v1201, 1.0
  %v1203 = vrcp.pop %v1202
  %v1204 = vmul.f32 1.0, %v1203
  %v1205 = vadd.f32 %v1186, %v324
  %v1206 = vmul.f32 %v1197, %v1205
  %v1207 = vadd.f32 %v1108, %v1206
  %v1208 = vtanh.pop %v1207
  %v1209 = vsub.f32 %v1102, %v1208
  %v1210 = vmul.f32 %v1204, %v1209
  %v1211 = vadd.f32 %v1208, %v1210
  %s1212 = scalar_lea.vmem [#allocation3], 48
  %1213 = vst [vmem:[%s1212] sm:$0xff] %v1211
  %s1214 = scalar_lea.vmem [#allocation2], 168
  %v1215 = vld [vmem:[%s1214] sm:$0xff]
  %v1216 = vld [vmem:[%s1214 + $0x8] sm:$0xff]
  %v1217 = vld [vmem:[%s1214 + $0x10] sm:$0xff]
  %v1218 = vpack.c.bf16 %v1211, %v1211
  %1219 = vmatprep.subr.bf16.mxu0 %v431
  %1220 = vmatpush1.bf16.msra.mxu0 %v430
  %1221 = vmatprep.subr.bf16.mxu0 %v428
  %1222 = vmatpush1.bf16.msra.mxu0 %v427
  %1223 = vmatprep.subr.bf16.mxu0 %v425
  %1224 = vmatpush1.bf16.msra.mxu0 %v424
  %1225 = vmatprep.subr.bf16.mxu0 %v422
  %1226 = vmatpush1.bf16.msra.mxu0 %v421
  %1227 = vmatprep.subr.bf16.mxu0 %v419
  %1228 = vmatpush1.bf16.msra.mxu0 %v418
  %1229 = vmatprep.subr.bf16.mxu0 %v416
  %1230 = vmatpush1.bf16.msra.mxu0 %v415
  %1231 = vmatprep.subr.bf16.mxu0 %v413
  %1232 = vmatpush1.bf16.msra.mxu0 %v412
  %1233 = vmatprep.subr.bf16.mxu0 %v410
  %1234 = vmatpush1.bf16.msra.mxu0 %v409
  %1235 = vmatprep.subr.bf16.mxu0 0
  %1236 = vmatpush2.bf16.msra.mxu0 0
  %1237 = vmatprep.subr.bf16.mxu0 0
  %1238 = vmatpush2.bf16.msra.mxu0 0
  %1239 = vmatprep.subr.bf16.mxu0 0
  %1240 = vmatpush2.bf16.msra.mxu0 0
  %1241 = vmatprep.subr.bf16.mxu0 0
  %1242 = vmatpush2.bf16.msra.mxu0 0
  %1243 = vmatprep.subr.bf16.mxu0 0
  %1244 = vmatpush2.bf16.msra.mxu0 0
  %1245 = vmatprep.subr.bf16.mxu0 0
  %1246 = vmatpush2.bf16.msra.mxu0 0
  %1247 = vmatprep.subr.bf16.mxu0 0
  %1248 = vmatpush2.bf16.msra.mxu0 0
  %1249 = vmatprep.subr.bf16.mxu0 0
  %1250 = vmatpush2.bf16.msra.mxu0 0
  %1251 = vmatprep.mubr.bf16.mxu0 0
  %1252 = vmatmul.mubr.bf16.gmra.mxu0 %v1218
  %v1253 = vpop.f32.mrf.mxu0
  %v1254 = vadd.f32 0.0, %v1253
  %v1255 = vpop.f32.mrf.mxu0
  %v1256 = vadd.f32 0.0, %v1255
  %v1257 = vpop.f32.mrf.mxu0
  %v1258 = vpop.f32.mrf.mxu0
  %1259 = vdwg.mxu0
  %1260 = vmatprep.subr.bf16.mxu0 0
  %1261 = vmatpush1.bf16.msra.mxu0 %v432
  %1262 = vmatprep.subr.bf16.mxu0 0
  %1263 = vmatpush1.bf16.msra.mxu0 %v429
  %1264 = vmatprep.subr.bf16.mxu0 0
  %1265 = vmatpush1.bf16.msra.mxu0 %v426
  %1266 = vmatprep.subr.bf16.mxu0 0
  %1267 = vmatpush1.bf16.msra.mxu0 %v423
  %1268 = vmatprep.subr.bf16.mxu0 0
  %1269 = vmatpush1.bf16.msra.mxu0 %v420
  %1270 = vmatprep.subr.bf16.mxu0 0
  %1271 = vmatpush1.bf16.msra.mxu0 %v417
  %1272 = vmatprep.subr.bf16.mxu0 0
  %1273 = vmatpush1.bf16.msra.mxu0 %v414
  %1274 = vmatprep.subr.bf16.mxu0 0
  %1275 = vmatpush1.bf16.msra.mxu0 %v411
  %1276 = vmatprep.subr.bf16.mxu0 0
  %1277 = vmatpush2.bf16.msra.mxu0 0
  %1278 = vmatprep.subr.bf16.mxu0 0
  %1279 = vmatpush2.bf16.msra.mxu0 0
  %1280 = vmatprep.subr.bf16.mxu0 0
  %1281 = vmatpush2.bf16.msra.mxu0 0
  %1282 = vmatprep.subr.bf16.mxu0 0
  %1283 = vmatpush2.bf16.msra.mxu0 0
  %1284 = vmatprep.subr.bf16.mxu0 0
  %1285 = vmatpush2.bf16.msra.mxu0 0
  %1286 = vmatprep.subr.bf16.mxu0 0
  %1287 = vmatpush2.bf16.msra.mxu0 0
  %1288 = vmatprep.subr.bf16.mxu0 0
  %1289 = vmatpush2.bf16.msra.mxu0 0
  %1290 = vmatprep.subr.bf16.mxu0 0
  %1291 = vmatpush2.bf16.msra.mxu0 0
  %1292 = vmatprep.mubr.bf16.mxu0 0
  %1293 = vmatmul.mubr.bf16.gmra.mxu0 %v1218
  %v1294 = vpop.f32.mrf.mxu0
  %v1295 = vadd.f32 0.0, %v1294
  %v1296 = vpop.f32.mrf.mxu0
  %v1297 = vpop.f32.mrf.mxu0
  %v1298 = vpop.f32.mrf.mxu0
  %1299 = vdwg.mxu0
  %v1300 = vadd.f32 %v1215, %v1254
  %v1301 = vxor.u32 %v1300, 2147483648
  %v1302 = vmul.f32 %v1301, 1.442695
  %v1303 = vpow.pop %v1302
  %v1304 = vadd.f32 %v1303, 1.0
  %v1305 = vrcp.pop %v1304
  %v1306 = vmul.f32 1.0, %v1305
  %v1307 = vadd.f32 %v1216, %v1256
  %v1308 = vxor.u32 %v1307, 2147483648
  %v1309 = vmul.f32 %v1308, 1.442695
  %v1310 = vpow.pop %v1309
  %v1311 = vadd.f32 %v1310, 1.0
  %v1312 = vrcp.pop %v1311
  %v1313 = vmul.f32 1.0, %v1312
  %v1314 = vadd.f32 %v1295, %v324
  %v1315 = vmul.f32 %v1306, %v1314
  %v1316 = vadd.f32 %v1217, %v1315
  %v1317 = vtanh.pop %v1316
  %v1318 = vsub.f32 %v1211, %v1317
  %v1319 = vmul.f32 %v1313, %v1318
  %v1320 = vadd.f32 %v1317, %v1319
  %s1321 = scalar_lea.vmem [#allocation3], 56
  %1322 = vst [vmem:[%s1321] sm:$0xff] %v1320
  %v1323 = vld [vmem:[#allocation3] sm:$0xff]
  %v1324 = vld [vmem:[#allocation3 + $0x8] sm:$0xff]
  %v1325 = vld [vmem:[#allocation3 + $0x10] sm:$0xff]
  %v1326 = vld [vmem:[#allocation3 + $0x18] sm:$0xff]
  %v1327 = vld [vmem:[#allocation3 + $0x20] sm:$0xff]
  %v1328 = vld [vmem:[#allocation3 + $0x28] sm:$0xff]
  %v1329 = vld [vmem:[#allocation3 + $0x30] sm:$0xff]
  %v1330 = vld [vmem:[#allocation3 + $0x38] sm:$0xff]
  %v1331 = vpack.c.bf16 %v1324, %v1323
  %v1332 = vpack.c.bf16 %v1326, %v1325
  %v1333 = vpack.c.bf16 %v1328, %v1327
  %v1334 = vpack.c.bf16 %v1330, %v1329
  %v1335 = vld [vmem:[%s5] sm:$0xff]
  %v1336 = vld [vmem:[%s5 + $0x8] sm:$0xf]
  %v1337 = vld [vmem:[%s5 + $0xc] sm:$0xff]
  %v1338 = vld [vmem:[%s5 + $0x14] sm:$0xf]
  %v1339 = vld [vmem:[%s5 + $0x18] sm:$0xff]
  %v1340 = vld [vmem:[%s5 + $0x20] sm:$0xf]
  %v1341 = vld [vmem:[%s5 + $0x24] sm:$0xff]
  %v1342 = vld [vmem:[%s5 + $0x2c] sm:$0xf]
  %v1343 = vld [vmem:[%s5 + $0x30] sm:$0xff]
  %v1344 = vld [vmem:[%s5 + $0x38] sm:$0xf]
  %v1345 = vld [vmem:[%s5 + $0x3c] sm:$0xff]
  %v1346 = vld [vmem:[%s5 + $0x44] sm:$0xf]
  %v1347 = vld [vmem:[%s5 + $0x48] sm:$0xff]
  %v1348 = vld [vmem:[%s5 + $0x50] sm:$0xf]
  %v1349 = vld [vmem:[%s5 + $0x54] sm:$0xff]
  %v1350 = vld [vmem:[%s5 + $0x5c] sm:$0xf]
  %v1351 = vld [vmem:[%s5 + $0x60] sm:$0xff]
  %v1352 = vld [vmem:[%s5 + $0x68] sm:$0xf]
  %v1353 = vld [vmem:[%s5 + $0x6c] sm:$0xff]
  %v1354 = vld [vmem:[%s5 + $0x74] sm:$0xf]
  %v1355 = vld [vmem:[%s5 + $0x78] sm:$0xff]
  %v1356 = vld [vmem:[%s5 + $0x80] sm:$0xf]
  %v1357 = vld [vmem:[%s5 + $0x84] sm:$0xff]
  %v1358 = vld [vmem:[%s5 + $0x8c] sm:$0xf]
  %v1359 = vld [vmem:[%s5 + $0x90] sm:$0xff]
  %v1360 = vld [vmem:[%s5 + $0x98] sm:$0xf]
  %v1361 = vld [vmem:[%s5 + $0x9c] sm:$0xff]
  %v1362 = vld [vmem:[%s5 + $0xa4] sm:$0xf]
  %v1363 = vld [vmem:[%s5 + $0xa8] sm:$0xff]
  %v1364 = vld [vmem:[%s5 + $0xb0] sm:$0xf]
  %v1365 = vld [vmem:[%s5 + $0xb4] sm:$0xff]
  %v1366 = vld [vmem:[%s5 + $0xbc] sm:$0xf]
  %v1367 = vld [vmem:[%s7] sm:$0x7]
  %v1369 = vlaneseq
  %v1370 = vshrl.u32 %v1369, 7
  %v1371 = vsub.s32 0, %v1370
  %v1372 = vrot.slane %v1367, %v1371
  %v1373 = vlaneseq
  %v1374 = vshrl.u32 %v1373, 7
  %v1375 = vsub.s32 1, %v1374
  %v1376 = vrot.slane %v1367, %v1375
  %v1377 = vlaneseq
  %v1378 = vshrl.u32 %v1377, 7
  %v1379 = vsub.s32 2, %v1378
  %v1380 = vrot.slane %v1367, %v1379
  %v1416 = vunpack.c.l.b16 %v1335
  %v1417 = vunpack.c.h.b16 %v1335
  %v1418 = vunpack.c.l.b16 %v1336
  %v1419 = vunpack.c.l.b16 %v1337
  %v1420 = vunpack.c.h.b16 %v1337
  %v1421 = vunpack.c.l.b16 %v1338
  %v1422 = vunpack.c.l.b16 %v1339
  %v1423 = vunpack.c.h.b16 %v1339
  %v1424 = vunpack.c.l.b16 %v1340
  %v1425 = vunpack.c.l.b16 %v1341
  %v1426 = vunpack.c.h.b16 %v1341
  %v1427 = vunpack.c.l.b16 %v1342
  %v1428 = vunpack.c.l.b16 %v1343
  %v1429 = vunpack.c.h.b16 %v1343
  %v1430 = vunpack.c.l.b16 %v1344
  %v1431 = vunpack.c.l.b16 %v1345
  %v1432 = vunpack.c.h.b16 %v1345
  %v1433 = vunpack.c.l.b16 %v1346
  %v1434 = vunpack.c.l.b16 %v1347
  %v1435 = vunpack.c.h.b16 %v1347
  %v1436 = vunpack.c.l.b16 %v1348
  %v1437 = vunpack.c.l.b16 %v1349
  %v1438 = vunpack.c.h.b16 %v1349
  %v1439 = vunpack.c.l.b16 %v1350
  %v1440 = vunpack.c.l.b16 %v1351
  %v1441 = vunpack.c.h.b16 %v1351
  %v1442 = vunpack.c.l.b16 %v1352
  %v1443 = vunpack.c.l.b16 %v1353
  %v1444 = vunpack.c.h.b16 %v1353
  %v1445 = vunpack.c.l.b16 %v1354
  %v1446 = vunpack.c.l.b16 %v1355
  %v1447 = vunpack.c.h.b16 %v1355
  %v1448 = vunpack.c.l.b16 %v1356
  %v1449 = vunpack.c.l.b16 %v1357
  %v1450 = vunpack.c.h.b16 %v1357
  %v1451 = vunpack.c.l.b16 %v1358
  %v1452 = vunpack.c.l.b16 %v1359
  %v1453 = vunpack.c.h.b16 %v1359
  %v1454 = vunpack.c.l.b16 %v1360
  %v1455 = vunpack.c.l.b16 %v1361
  %v1456 = vunpack.c.h.b16 %v1361
  %v1457 = vunpack.c.l.b16 %v1362
  %v1458 = vunpack.c.l.b16 %v1363
  %v1459 = vunpack.c.h.b16 %v1363
  %v1460 = vunpack.c.l.b16 %v1364
  %v1461 = vunpack.c.l.b16 %v1365
  %v1462 = vunpack.c.h.b16 %v1365
  %v1463 = vunpack.c.l.b16 %v1366
  %v1464 = vpack.c.b16 %v1419, %v1416
  %v1465 = vpack.c.b16 %v1420, %v1417
  %v1466 = vpack.c.b16 %v1421, %v1418
  %v1467 = vpack.c.b16 %v1425, %v1422
  %v1468 = vpack.c.b16 %v1426, %v1423
  %v1469 = vpack.c.b16 %v1427, %v1424
  %v1470 = vpack.c.b16 %v1431, %v1428
  %v1471 = vpack.c.b16 %v1432, %v1429
  %v1472 = vpack.c.b16 %v1433, %v1430
  %v1473 = vpack.c.b16 %v1437, %v1434
  %v1474 = vpack.c.b16 %v1438, %v1435
  %v1475 = vpack.c.b16 %v1439, %v1436
  %v1476 = vpack.c.b16 %v1443, %v1440
  %v1477 = vpack.c.b16 %v1444, %v1441
  %v1478 = vpack.c.b16 %v1445, %v1442
  %v1479 = vpack.c.b16 %v1449, %v1446
  %v1480 = vpack.c.b16 %v1450, %v1447
  %v1481 = vpack.c.b16 %v1451, %v1448
  %v1482 = vpack.c.b16 %v1455, %v1452
  %v1483 = vpack.c.b16 %v1456, %v1453
  %v1484 = vpack.c.b16 %v1457, %v1454
  %v1485 = vpack.c.b16 %v1461, %v1458
  %v1486 = vpack.c.b16 %v1462, %v1459
  %v1487 = vpack.c.b16 %v1463, %v1460
  %1512 = vmatprep.subr.bf16.mxu0 %v1486
  %1513 = vmatpush1.bf16.msra.mxu0 %v1485
  %1514 = vmatprep.subr.bf16.mxu0 %v1483
  %1515 = vmatpush1.bf16.msra.mxu0 %v1482
  %1516 = vmatprep.subr.bf16.mxu0 %v1480
  %1517 = vmatpush1.bf16.msra.mxu0 %v1479
  %1518 = vmatprep.subr.bf16.mxu0 %v1477
  %1519 = vmatpush1.bf16.msra.mxu0 %v1476
  %1520 = vmatprep.subr.bf16.mxu0 %v1474
  %1521 = vmatpush1.bf16.msra.mxu0 %v1473
  %1522 = vmatprep.subr.bf16.mxu0 %v1471
  %1523 = vmatpush1.bf16.msra.mxu0 %v1470
  %1524 = vmatprep.subr.bf16.mxu0 %v1468
  %1525 = vmatpush1.bf16.msra.mxu0 %v1467
  %1526 = vmatprep.subr.bf16.mxu0 %v1465
  %1527 = vmatpush1.bf16.msra.mxu0 %v1464
  %1528 = vmatprep.subr.bf16.mxu0 0
  %1529 = vmatpush2.bf16.msra.mxu0 0
  %1530 = vmatprep.subr.bf16.mxu0 0
  %1531 = vmatpush2.bf16.msra.mxu0 0
  %1532 = vmatprep.subr.bf16.mxu0 0
  %1533 = vmatpush2.bf16.msra.mxu0 0
  %1534 = vmatprep.subr.bf16.mxu0 0
  %1535 = vmatpush2.bf16.msra.mxu0 0
  %1536 = vmatprep.subr.bf16.mxu0 0
  %1537 = vmatpush2.bf16.msra.mxu0 0
  %1538 = vmatprep.subr.bf16.mxu0 0
  %1539 = vmatpush2.bf16.msra.mxu0 0
  %1540 = vmatprep.subr.bf16.mxu0 0
  %1541 = vmatpush2.bf16.msra.mxu0 0
  %1542 = vmatprep.subr.bf16.mxu0 0
  %1543 = vmatpush2.bf16.msra.mxu0 0
  %1544 = vmatprep.mubr.bf16.mxu0 0
  %1545 = vmatmul.mubr.bf16.gmra.mxu0 %v1331
  %v1546 = vpop.f32.mrf.mxu0
  %v1547 = vadd.f32 %v1372, %v1546
  %v1548 = vpop.f32.mrf.mxu0
  %v1549 = vadd.f32 %v1376, %v1548
  %v1550 = vpop.f32.mrf.mxu0
  %v1551 = vadd.f32 %v1372, %v1550
  %v1552 = vpop.f32.mrf.mxu0
  %v1553 = vadd.f32 %v1376, %v1552
  %1554 = vmatprep.mubr.bf16.mxu0 0
  %1555 = vmatmul.mubr.bf16.gmra.mxu0 %v1332
  %v1556 = vpop.f32.mrf.mxu0
  %v1557 = vadd.f32 %v1372, %v1556
  %v1558 = vpop.f32.mrf.mxu0
  %v1559 = vadd.f32 %v1376, %v1558
  %v1560 = vpop.f32.mrf.mxu0
  %v1561 = vadd.f32 %v1372, %v1560
  %v1562 = vpop.f32.mrf.mxu0
  %v1563 = vadd.f32 %v1376, %v1562
  %1564 = vmatprep.mubr.bf16.mxu0 0
  %1565 = vmatmul.mubr.bf16.gmra.mxu0 %v1333
  %v1566 = vpop.f32.mrf.mxu0
  %v1567 = vadd.f32 %v1372, %v1566
  %v1568 = vpop.f32.mrf.mxu0
  %v1569 = vadd.f32 %v1376, %v1568
  %v1570 = vpop.f32.mrf.mxu0
  %v1571 = vadd.f32 %v1372, %v1570
  %v1572 = vpop.f32.mrf.mxu0
  %v1573 = vadd.f32 %v1376, %v1572
  %1574 = vmatprep.mubr.bf16.mxu0 0
  %1575 = vmatmul.mubr.bf16.gmra.mxu0 %v1334
  %v1576 = vpop.f32.mrf.mxu0
  %v1577 = vadd.f32 %v1372, %v1576
  %v1578 = vpop.f32.mrf.mxu0
  %v1579 = vadd.f32 %v1376, %v1578
  %v1580 = vpop.f32.mrf.mxu0
  %v1581 = vadd.f32 %v1372, %v1580
  %v1582 = vpop.f32.mrf.mxu0
  %v1583 = vadd.f32 %v1376, %v1582
  %1584 = vdwg.mxu0
  %1585 = vmatprep.subr.bf16.mxu0 0
  %1586 = vmatpush1.bf16.msra.mxu0 %v1487
  %1587 = vmatprep.subr.bf16.mxu0 0
  %1588 = vmatpush1.bf16.msra.mxu0 %v1484
  %1589 = vmatprep.subr.bf16.mxu0 0
  %1590 = vmatpush1.bf16.msra.mxu0 %v1481
  %1591 = vmatprep.subr.bf16.mxu0 0
  %1592 = vmatpush1.bf16.msra.mxu0 %v1478
  %1593 = vmatprep.subr.bf16.mxu0 0
  %1594 = vmatpush1.bf16.msra.mxu0 %v1475
  %1595 = vmatprep.subr.bf16.mxu0 0
  %1596 = vmatpush1.bf16.msra.mxu0 %v1472
  %1597 = vmatprep.subr.bf16.mxu0 0
  %1598 = vmatpush1.bf16.msra.mxu0 %v1469
  %1599 = vmatprep.subr.bf16.mxu0 0
  %1600 = vmatpush1.bf16.msra.mxu0 %v1466
  %1601 = vmatprep.subr.bf16.mxu0 0
  %1602 = vmatpush2.bf16.msra.mxu0 0
  %1603 = vmatprep.subr.bf16.mxu0 0
  %1604 = vmatpush2.bf16.msra.mxu0 0
  %1605 = vmatprep.subr.bf16.mxu0 0
  %1606 = vmatpush2.bf16.msra.mxu0 0
  %1607 = vmatprep.subr.bf16.mxu0 0
  %1608 = vmatpush2.bf16.msra.mxu0 0
  %1609 = vmatprep.subr.bf16.mxu0 0
  %1610 = vmatpush2.bf16.msra.mxu0 0
  %1611 = vmatprep.subr.bf16.mxu0 0
  %1612 = vmatpush2.bf16.msra.mxu0 0
  %1613 = vmatprep.subr.bf16.mxu0 0
  %1614 = vmatpush2.bf16.msra.mxu0 0
  %1615 = vmatprep.subr.bf16.mxu0 0
  %1616 = vmatpush2.bf16.msra.mxu0 0
  %1617 = vmatprep.mubr.bf16.mxu0 0
  %1618 = vmatmul.mubr.bf16.gmra.mxu0 %v1331
  %v1619 = vpop.f32.mrf.mxu0
  %v1620 = vadd.f32 %v1380, %v1619
  %v1621 = vpop.f32.mrf.mxu0
  %v1622 = vpop.f32.mrf.mxu0
  %v1623 = vadd.f32 %v1380, %v1622
  %v1624 = vpop.f32.mrf.mxu0
  %1625 = vmatprep.mubr.bf16.mxu0 0
  %1626 = vmatmul.mubr.bf16.gmra.mxu0 %v1332
  %v1627 = vpop.f32.mrf.mxu0
  %v1628 = vadd.f32 %v1380, %v1627
  %v1629 = vpop.f32.mrf.mxu0
  %v1630 = vpop.f32.mrf.mxu0
  %v1631 = vadd.f32 %v1380, %v1630
  %v1632 = vpop.f32.mrf.mxu0
  %1633 = vmatprep.mubr.bf16.mxu0 0
  %1634 = vmatmul.mubr.bf16.gmra.mxu0 %v1333
  %v1635 = vpop.f32.mrf.mxu0
  %v1636 = vadd.f32 %v1380, %v1635
  %v1637 = vpop.f32.mrf.mxu0
  %v1638 = vpop.f32.mrf.mxu0
  %v1639 = vadd.f32 %v1380, %v1638
  %v1640 = vpop.f32.mrf.mxu0
  %1641 = vmatprep.mubr.bf16.mxu0 0
  %1642 = vmatmul.mubr.bf16.gmra.mxu0 %v1334
  %v1643 = vpop.f32.mrf.mxu0
  %v1644 = vadd.f32 %v1380, %v1643
  %v1645 = vpop.f32.mrf.mxu0
  %v1646 = vpop.f32.mrf.mxu0
  %v1647 = vadd.f32 %v1380, %v1646
  %v1648 = vpop.f32.mrf.mxu0
  %1649 = vdwg.mxu0
  %1650 = vst [vmem:[#allocation2] sm:$0xff] %v1547
  %1651 = vst [vmem:[#allocation2 + $0x8] sm:$0xff] %v1549
  %1652 = vst [vmem:[#allocation2 + $0x10] sm:$0xff] %v1620
  %1653 = vst [vmem:[#allocation2 + $0x18] sm:$0xff] %v1551
  %1654 = vst [vmem:[#allocation2 + $0x20] sm:$0xff] %v1553
  %1655 = vst [vmem:[#allocation2 + $0x28] sm:$0xff] %v1623
  %1656 = vst [vmem:[#allocation2 + $0x30] sm:$0xff] %v1557
  %1657 = vst [vmem:[#allocation2 + $0x38] sm:$0xff] %v1559
  %1658 = vst [vmem:[#allocation2 + $0x40] sm:$0xff] %v1628
  %1659 = vst [vmem:[#allocation2 + $0x48] sm:$0xff] %v1561
  %1660 = vst [vmem:[#allocation2 + $0x50] sm:$0xff] %v1563
  %1661 = vst [vmem:[#allocation2 + $0x58] sm:$0xff] %v1631
  %1662 = vst [vmem:[#allocation2 + $0x60] sm:$0xff] %v1567
  %1663 = vst [vmem:[#allocation2 + $0x68] sm:$0xff] %v1569
  %1664 = vst [vmem:[#allocation2 + $0x70] sm:$0xff] %v1636
  %1665 = vst [vmem:[#allocation2 + $0x78] sm:$0xff] %v1571
  %1666 = vst [vmem:[#allocation2 + $0x80] sm:$0xff] %v1573
  %1667 = vst [vmem:[#allocation2 + $0x88] sm:$0xff] %v1639
  %1668 = vst [vmem:[#allocation2 + $0x90] sm:$0xff] %v1577
  %1669 = vst [vmem:[#allocation2 + $0x98] sm:$0xff] %v1579
  %1670 = vst [vmem:[#allocation2 + $0xa0] sm:$0xff] %v1644
  %1671 = vst [vmem:[#allocation2 + $0xa8] sm:$0xff] %v1581
  %1672 = vst [vmem:[#allocation2 + $0xb0] sm:$0xff] %v1583
  %1673 = vst [vmem:[#allocation2 + $0xb8] sm:$0xff] %v1647
  %v1674 = vld [vmem:[%s6] sm:$0xff]
  %v1675 = vld [vmem:[%s6 + $0x8] sm:$0xf]
  %v1676 = vld [vmem:[%s6 + $0xc] sm:$0xff]
  %v1677 = vld [vmem:[%s6 + $0x14] sm:$0xf]
  %v1678 = vld [vmem:[%s6 + $0x18] sm:$0xff]
  %v1679 = vld [vmem:[%s6 + $0x20] sm:$0xf]
  %v1680 = vld [vmem:[%s6 + $0x24] sm:$0xff]
  %v1681 = vld [vmem:[%s6 + $0x2c] sm:$0xf]
  %v1682 = vld [vmem:[%s6 + $0x30] sm:$0xff]
  %v1683 = vld [vmem:[%s6 + $0x38] sm:$0xf]
  %v1684 = vld [vmem:[%s6 + $0x3c] sm:$0xff]
  %v1685 = vld [vmem:[%s6 + $0x44] sm:$0xf]
  %v1686 = vld [vmem:[%s6 + $0x48] sm:$0xff]
  %v1687 = vld [vmem:[%s6 + $0x50] sm:$0xf]
  %v1688 = vld [vmem:[%s6 + $0x54] sm:$0xff]
  %v1689 = vld [vmem:[%s6 + $0x5c] sm:$0xf]
  %v1690 = vld [vmem:[%s6 + $0x60] sm:$0xff]
  %v1691 = vld [vmem:[%s6 + $0x68] sm:$0xf]
  %v1692 = vld [vmem:[%s6 + $0x6c] sm:$0xff]
  %v1693 = vld [vmem:[%s6 + $0x74] sm:$0xf]
  %v1694 = vld [vmem:[%s6 + $0x78] sm:$0xff]
  %v1695 = vld [vmem:[%s6 + $0x80] sm:$0xf]
  %v1696 = vld [vmem:[%s6 + $0x84] sm:$0xff]
  %v1697 = vld [vmem:[%s6 + $0x8c] sm:$0xf]
  %v1698 = vld [vmem:[%s6 + $0x90] sm:$0xff]
  %v1699 = vld [vmem:[%s6 + $0x98] sm:$0xf]
  %v1700 = vld [vmem:[%s6 + $0x9c] sm:$0xff]
  %v1701 = vld [vmem:[%s6 + $0xa4] sm:$0xf]
  %v1702 = vld [vmem:[%s6 + $0xa8] sm:$0xff]
  %v1703 = vld [vmem:[%s6 + $0xb0] sm:$0xf]
  %v1704 = vld [vmem:[%s6 + $0xb4] sm:$0xff]
  %v1705 = vld [vmem:[%s6 + $0xbc] sm:$0xf]
  %v1706 = vld [vmem:[%s8] sm:$0x1]
  %v1708 = vlaneseq
  %v1709 = vshrl.u32 %v1708, 7
  %v1710 = vsub.s32 0, %v1709
  %v1711 = vrot.slane %v1706, %v1710
  %v1713 = vld [vmem:[#allocation2] sm:$0xff]
  %v1714 = vld [vmem:[#allocation2 + $0x8] sm:$0xff]
  %v1715 = vld [vmem:[#allocation2 + $0x10] sm:$0xff]
  %v1748 = vunpack.c.l.b16 %v1674
  %v1749 = vunpack.c.h.b16 %v1674
  %v1750 = vunpack.c.l.b16 %v1675
  %v1751 = vunpack.c.l.b16 %v1676
  %v1752 = vunpack.c.h.b16 %v1676
  %v1753 = vunpack.c.l.b16 %v1677
  %v1754 = vunpack.c.l.b16 %v1678
  %v1755 = vunpack.c.h.b16 %v1678
  %v1756 = vunpack.c.l.b16 %v1679
  %v1757 = vunpack.c.l.b16 %v1680
  %v1758 = vunpack.c.h.b16 %v1680
  %v1759 = vunpack.c.l.b16 %v1681
  %v1760 = vunpack.c.l.b16 %v1682
  %v1761 = vunpack.c.h.b16 %v1682
  %v1762 = vunpack.c.l.b16 %v1683
  %v1763 = vunpack.c.l.b16 %v1684
  %v1764 = vunpack.c.h.b16 %v1684
  %v1765 = vunpack.c.l.b16 %v1685
  %v1766 = vunpack.c.l.b16 %v1686
  %v1767 = vunpack.c.h.b16 %v1686
  %v1768 = vunpack.c.l.b16 %v1687
  %v1769 = vunpack.c.l.b16 %v1688
  %v1770 = vunpack.c.h.b16 %v1688
  %v1771 = vunpack.c.l.b16 %v1689
  %v1772 = vunpack.c.l.b16 %v1690
  %v1773 = vunpack.c.h.b16 %v1690
  %v1774 = vunpack.c.l.b16 %v1691
  %v1775 = vunpack.c.l.b16 %v1692
  %v1776 = vunpack.c.h.b16 %v1692
  %v1777 = vunpack.c.l.b16 %v1693
  %v1778 = vunpack.c.l.b16 %v1694
  %v1779 = vunpack.c.h.b16 %v1694
  %v1780 = vunpack.c.l.b16 %v1695
  %v1781 = vunpack.c.l.b16 %v1696
  %v1782 = vunpack.c.h.b16 %v1696
  %v1783 = vunpack.c.l.b16 %v1697
  %v1784 = vunpack.c.l.b16 %v1698
  %v1785 = vunpack.c.h.b16 %v1698
  %v1786 = vunpack.c.l.b16 %v1699
  %v1787 = vunpack.c.l.b16 %v1700
  %v1788 = vunpack.c.h.b16 %v1700
  %v1789 = vunpack.c.l.b16 %v1701
  %v1790 = vunpack.c.l.b16 %v1702
  %v1791 = vunpack.c.h.b16 %v1702
  %v1792 = vunpack.c.l.b16 %v1703
  %v1793 = vunpack.c.l.b16 %v1704
  %v1794 = vunpack.c.h.b16 %v1704
  %v1795 = vunpack.c.l.b16 %v1705
  %v1796 = vpack.c.b16 %v1751, %v1748
  %v1797 = vpack.c.b16 %v1752, %v1749
  %v1798 = vpack.c.b16 %v1753, %v1750
  %v1799 = vpack.c.b16 %v1757, %v1754
  %v1800 = vpack.c.b16 %v1758, %v1755
  %v1801 = vpack.c.b16 %v1759, %v1756
  %v1802 = vpack.c.b16 %v1763, %v1760
  %v1803 = vpack.c.b16 %v1764, %v1761
  %v1804 = vpack.c.b16 %v1765, %v1762
  %v1805 = vpack.c.b16 %v1769, %v1766
  %v1806 = vpack.c.b16 %v1770, %v1767
  %v1807 = vpack.c.b16 %v1771, %v1768
  %v1808 = vpack.c.b16 %v1775, %v1772
  %v1809 = vpack.c.b16 %v1776, %v1773
  %v1810 = vpack.c.b16 %v1777, %v1774
  %v1811 = vpack.c.b16 %v1781, %v1778
  %v1812 = vpack.c.b16 %v1782, %v1779
  %v1813 = vpack.c.b16 %v1783, %v1780
  %v1814 = vpack.c.b16 %v1787, %v1784
  %v1815 = vpack.c.b16 %v1788, %v1785
  %v1816 = vpack.c.b16 %v1789, %v1786
  %v1817 = vpack.c.b16 %v1793, %v1790
  %v1818 = vpack.c.b16 %v1794, %v1791
  %v1819 = vpack.c.b16 %v1795, %v1792
  %1844 = vmatprep.subr.bf16.mxu0 %v1818
  %1845 = vmatpush1.bf16.msra.mxu0 %v1817
  %1846 = vmatprep.subr.bf16.mxu0 %v1815
  %1847 = vmatpush1.bf16.msra.mxu0 %v1814
  %1848 = vmatprep.subr.bf16.mxu0 %v1812
  %1849 = vmatpush1.bf16.msra.mxu0 %v1811
  %1850 = vmatprep.subr.bf16.mxu0 %v1809
  %1851 = vmatpush1.bf16.msra.mxu0 %v1808
  %1852 = vmatprep.subr.bf16.mxu0 %v1806
  %1853 = vmatpush1.bf16.msra.mxu0 %v1805
  %1854 = vmatprep.subr.bf16.mxu0 %v1803
  %1855 = vmatpush1.bf16.msra.mxu0 %v1802
  %1856 = vmatprep.subr.bf16.mxu0 %v1800
  %1857 = vmatpush1.bf16.msra.mxu0 %v1799
  %1858 = vmatprep.subr.bf16.mxu0 %v1797
  %1859 = vmatpush1.bf16.msra.mxu0 %v1796
  %1860 = vmatprep.subr.bf16.mxu0 0
  %1861 = vmatpush2.bf16.msra.mxu0 0
  %1862 = vmatprep.subr.bf16.mxu0 0
  %1863 = vmatpush2.bf16.msra.mxu0 0
  %1864 = vmatprep.subr.bf16.mxu0 0
  %1865 = vmatpush2.bf16.msra.mxu0 0
  %1866 = vmatprep.subr.bf16.mxu0 0
  %1867 = vmatpush2.bf16.msra.mxu0 0
  %1868 = vmatprep.subr.bf16.mxu0 0
  %1869 = vmatpush2.bf16.msra.mxu0 0
  %1870 = vmatprep.subr.bf16.mxu0 0
  %1871 = vmatpush2.bf16.msra.mxu0 0
  %1872 = vmatprep.subr.bf16.mxu0 0
  %1873 = vmatpush2.bf16.msra.mxu0 0
  %1874 = vmatprep.subr.bf16.mxu0 0
  %1875 = vmatpush2.bf16.msra.mxu0 0
  %1876 = vmatprep.mubr.bf16.mxu0 0
  %1877 = vmatmul.mubr.bf16.gmra.mxu0 0
  %v1878 = vpop.f32.mrf.mxu0
  %v1879 = vadd.f32 0.0, %v1878
  %v1880 = vpop.f32.mrf.mxu0
  %v1881 = vadd.f32 0.0, %v1880
  %v1882 = vpop.f32.mrf.mxu0
  %v1883 = vpop.f32.mrf.mxu0
  %1884 = vdwg.mxu0
  %1885 = vmatprep.subr.bf16.mxu0 0
  %1886 = vmatpush1.bf16.msra.mxu0 %v1819
  %1887 = vmatprep.subr.bf16.mxu0 0
  %1888 = vmatpush1.bf16.msra.mxu0 %v1816
  %1889 = vmatprep.subr.bf16.mxu0 0
  %1890 = vmatpush1.bf16.msra.mxu0 %v1813
  %1891 = vmatprep.subr.bf16.mxu0 0
  %1892 = vmatpush1.bf16.msra.mxu0 %v1810
  %1893 = vmatprep.subr.bf16.mxu0 0
  %1894 = vmatpush1.bf16.msra.mxu0 %v1807
  %1895 = vmatprep.subr.bf16.mxu0 0
  %1896 = vmatpush1.bf16.msra.mxu0 %v1804
  %1897 = vmatprep.subr.bf16.mxu0 0
  %1898 = vmatpush1.bf16.msra.mxu0 %v1801
  %1899 = vmatprep.subr.bf16.mxu0 0
  %1900 = vmatpush1.bf16.msra.mxu0 %v1798
  %1901 = vmatprep.subr.bf16.mxu0 0
  %1902 = vmatpush2.bf16.msra.mxu0 0
  %1903 = vmatprep.subr.bf16.mxu0 0
  %1904 = vmatpush2.bf16.msra.mxu0 0
  %1905 = vmatprep.subr.bf16.mxu0 0
  %1906 = vmatpush2.bf16.msra.mxu0 0
  %1907 = vmatprep.subr.bf16.mxu0 0
  %1908 = vmatpush2.bf16.msra.mxu0 0
  %1909 = vmatprep.subr.bf16.mxu0 0
  %1910 = vmatpush2.bf16.msra.mxu0 0
  %1911 = vmatprep.subr.bf16.mxu0 0
  %1912 = vmatpush2.bf16.msra.mxu0 0
  %1913 = vmatprep.subr.bf16.mxu0 0
  %1914 = vmatpush2.bf16.msra.mxu0 0
  %1915 = vmatprep.subr.bf16.mxu0 0
  %1916 = vmatpush2.bf16.msra.mxu0 0
  %1917 = vmatprep.mubr.bf16.mxu0 0
  %1918 = vmatmul.mubr.bf16.gmra.mxu0 0
  %v1919 = vpop.f32.mrf.mxu0
  %v1920 = vadd.f32 0.0, %v1919
  %v1921 = vpop.f32.mrf.mxu0
  %v1922 = vpop.f32.mrf.mxu0
  %v1923 = vpop.f32.mrf.mxu0
  %1924 = vdwg.mxu0
  %v1925 = vadd.f32 %v1713, %v1879
  %v1926 = vxor.u32 %v1925, 2147483648
  %v1927 = vmul.f32 %v1926, 1.442695
  %v1928 = vpow.pop %v1927
  %v1929 = vadd.f32 %v1928, 1.0
  %v1930 = vrcp.pop %v1929
  %v1931 = vmul.f32 1.0, %v1930
  %v1932 = vadd.f32 %v1714, %v1881
  %v1933 = vxor.u32 %v1932, 2147483648
  %v1934 = vmul.f32 %v1933, 1.442695
  %v1935 = vpow.pop %v1934
  %v1936 = vadd.f32 %v1935, 1.0
  %v1937 = vrcp.pop %v1936
  %v1938 = vmul.f32 1.0, %v1937
  %v1939 = vadd.f32 %v1920, %v1711
  %v1940 = vmul.f32 %v1931, %v1939
  %v1941 = vadd.f32 %v1715, %v1940
  %v1942 = vtanh.pop %v1941
  %v1943 = vsub.f32 0.0, %v1942
  %v1944 = vmul.f32 %v1938, %v1943
  %v1945 = vadd.f32 %v1942, %v1944
  %v1946 = vld [vmem:[%s560] sm:$0xff]
  %v1947 = vld [vmem:[%s560 + $0x8] sm:$0xff]
  %v1948 = vld [vmem:[%s560 + $0x10] sm:$0xff]
  %v1949 = vpack.c.bf16 %v1945, %v1945
  %1950 = vmatprep.subr.bf16.mxu0 %v1818
  %1951 = vmatpush1.bf16.msra.mxu0 %v1817
  %1952 = vmatprep.subr.bf16.mxu0 %v1815
  %1953 = vmatpush1.bf16.msra.mxu0 %v1814
  %1954 = vmatprep.subr.bf16.mxu0 %v1812
  %1955 = vmatpush1.bf16.msra.mxu0 %v1811
  %1956 = vmatprep.subr.bf16.mxu0 %v1809
  %1957 = vmatpush1.bf16.msra.mxu0 %v1808
  %1958 = vmatprep.subr.bf16.mxu0 %v1806
  %1959 = vmatpush1.bf16.msra.mxu0 %v1805
  %1960 = vmatprep.subr.bf16.mxu0 %v1803
  %1961 = vmatpush1.bf16.msra.mxu0 %v1802
  %1962 = vmatprep.subr.bf16.mxu0 %v1800
  %1963 = vmatpush1.bf16.msra.mxu0 %v1799
  %1964 = vmatprep.subr.bf16.mxu0 %v1797
  %1965 = vmatpush1.bf16.msra.mxu0 %v1796
  %1966 = vmatprep.subr.bf16.mxu0 0
  %1967 = vmatpush2.bf16.msra.mxu0 0
  %1968 = vmatprep.subr.bf16.mxu0 0
  %1969 = vmatpush2.bf16.msra.mxu0 0
  %1970 = vmatprep.subr.bf16.mxu0 0
  %1971 = vmatpush2.bf16.msra.mxu0 0
  %1972 = vmatprep.subr.bf16.mxu0 0
  %1973 = vmatpush2.bf16.msra.mxu0 0
  %1974 = vmatprep.subr.bf16.mxu0 0
  %1975 = vmatpush2.bf16.msra.mxu0 0
  %1976 = vmatprep.subr.bf16.mxu0 0
  %1977 = vmatpush2.bf16.msra.mxu0 0
  %1978 = vmatprep.subr.bf16.mxu0 0
  %1979 = vmatpush2.bf16.msra.mxu0 0
  %1980 = vmatprep.subr.bf16.mxu0 0
  %1981 = vmatpush2.bf16.msra.mxu0 0
  %1982 = vmatprep.mubr.bf16.mxu0 0
  %1983 = vmatmul.mubr.bf16.gmra.mxu0 %v1949
  %v1984 = vpop.f32.mrf.mxu0
  %v1985 = vadd.f32 0.0, %v1984
  %v1986 = vpop.f32.mrf.mxu0
  %v1987 = vadd.f32 0.0, %v1986
  %v1988 = vpop.f32.mrf.mxu0
  %v1989 = vpop.f32.mrf.mxu0
  %1990 = vdwg.mxu0
  %1991 = vmatprep.subr.bf16.mxu0 0
  %1992 = vmatpush1.bf16.msra.mxu0 %v1819
  %1993 = vmatprep.subr.bf16.mxu0 0
  %1994 = vmatpush1.bf16.msra.mxu0 %v1816
  %1995 = vmatprep.subr.bf16.mxu0 0
  %1996 = vmatpush1.bf16.msra.mxu0 %v1813
  %1997 = vmatprep.subr.bf16.mxu0 0
  %1998 = vmatpush1.bf16.msra.mxu0 %v1810
  %1999 = vmatprep.subr.bf16.mxu0 0
  %2000 = vmatpush1.bf16.msra.mxu0 %v1807
  %2001 = vmatprep.subr.bf16.mxu0 0
  %2002 = vmatpush1.bf16.msra.mxu0 %v1804
  %2003 = vmatprep.subr.bf16.mxu0 0
  %2004 = vmatpush1.bf16.msra.mxu0 %v1801
  %2005 = vmatprep.subr.bf16.mxu0 0
  %2006 = vmatpush1.bf16.msra.mxu0 %v1798
  %2007 = vmatprep.subr.bf16.mxu0 0
  %2008 = vmatpush2.bf16.msra.mxu0 0
  %2009 = vmatprep.subr.bf16.mxu0 0
  %2010 = vmatpush2.bf16.msra.mxu0 0
  %2011 = vmatprep.subr.bf16.mxu0 0
  %2012 = vmatpush2.bf16.msra.mxu0 0
  %2013 = vmatprep.subr.bf16.mxu0 0
  %2014 = vmatpush2.bf16.msra.mxu0 0
  %2015 = vmatprep.subr.bf16.mxu0 0
  %2016 = vmatpush2.bf16.msra.mxu0 0
  %2017 = vmatprep.subr.bf16.mxu0 0
  %2018 = vmatpush2.bf16.msra.mxu0 0
  %2019 = vmatprep.subr.bf16.mxu0 0
  %2020 = vmatpush2.bf16.msra.mxu0 0
  %2021 = vmatprep.subr.bf16.mxu0 0
  %2022 = vmatpush2.bf16.msra.mxu0 0
  %2023 = vmatprep.mubr.bf16.mxu0 0
  %2024 = vmatmul.mubr.bf16.gmra.mxu0 %v1949
  %v2025 = vpop.f32.mrf.mxu0
  %v2026 = vadd.f32 0.0, %v2025
  %v2027 = vpop.f32.mrf.mxu0
  %v2028 = vpop.f32.mrf.mxu0
  %v2029 = vpop.f32.mrf.mxu0
  %2030 = vdwg.mxu0
  %v2031 = vadd.f32 %v1946, %v1985
  %v2032 = vxor.u32 %v2031, 2147483648
  %v2033 = vmul.f32 %v2032, 1.442695
  %v2034 = vpow.pop %v2033
  %v2035 = vadd.f32 %v2034, 1.0
  %v2036 = vrcp.pop %v2035
  %v2037 = vmul.f32 1.0, %v2036
  %v2038 = vadd.f32 %v1947, %v1987
  %v2039 = vxor.u32 %v2038, 2147483648
  %v2040 = vmul.f32 %v2039, 1.442695
  %v2041 = vpow.pop %v2040
  %v2042 = vadd.f32 %v2041, 1.0
  %v2043 = vrcp.pop %v2042
  %v2044 = vmul.f32 1.0, %v2043
  %v2045 = vadd.f32 %v2026, %v1711
  %v2046 = vmul.f32 %v2037, %v2045
  %v2047 = vadd.f32 %v1948, %v2046
  %v2048 = vtanh.pop %v2047
  %v2049 = vsub.f32 %v1945, %v2048
  %v2050 = vmul.f32 %v2044, %v2049
  %v2051 = vadd.f32 %v2048, %v2050
  %v2052 = vld [vmem:[%s669] sm:$0xff]
  %v2053 = vld [vmem:[%s669 + $0x8] sm:$0xff]
  %v2054 = vld [vmem:[%s669 + $0x10] sm:$0xff]
  %v2055 = vpack.c.bf16 %v2051, %v2051
  %2056 = vmatprep.subr.bf16.mxu0 %v1818
  %2057 = vmatpush1.bf16.msra.mxu0 %v1817
  %2058 = vmatprep.subr.bf16.mxu0 %v1815
  %2059 = vmatpush1.bf16.msra.mxu0 %v1814
  %2060 = vmatprep.subr.bf16.mxu0 %v1812
  %2061 = vmatpush1.bf16.msra.mxu0 %v1811
  %2062 = vmatprep.subr.bf16.mxu0 %v1809
  %2063 = vmatpush1.bf16.msra.mxu0 %v1808
  %2064 = vmatprep.subr.bf16.mxu0 %v1806
  %2065 = vmatpush1.bf16.msra.mxu0 %v1805
  %2066 = vmatprep.subr.bf16.mxu0 %v1803
  %2067 = vmatpush1.bf16.msra.mxu0 %v1802
  %2068 = vmatprep.subr.bf16.mxu0 %v1800
  %2069 = vmatpush1.bf16.msra.mxu0 %v1799
  %2070 = vmatprep.subr.bf16.mxu0 %v1797
  %2071 = vmatpush1.bf16.msra.mxu0 %v1796
  %2072 = vmatprep.subr.bf16.mxu0 0
  %2073 = vmatpush2.bf16.msra.mxu0 0
  %2074 = vmatprep.subr.bf16.mxu0 0
  %2075 = vmatpush2.bf16.msra.mxu0 0
  %2076 = vmatprep.subr.bf16.mxu0 0
  %2077 = vmatpush2.bf16.msra.mxu0 0
  %2078 = vmatprep.subr.bf16.mxu0 0
  %2079 = vmatpush2.bf16.msra.mxu0 0
  %2080 = vmatprep.subr.bf16.mxu0 0
  %2081 = vmatpush2.bf16.msra.mxu0 0
  %2082 = vmatprep.subr.bf16.mxu0 0
  %2083 = vmatpush2.bf16.msra.mxu0 0
  %2084 = vmatprep.subr.bf16.mxu0 0
  %2085 = vmatpush2.bf16.msra.mxu0 0
  %2086 = vmatprep.subr.bf16.mxu0 0
  %2087 = vmatpush2.bf16.msra.mxu0 0
  %2088 = vmatprep.mubr.bf16.mxu0 0
  %2089 = vmatmul.mubr.bf16.gmra.mxu0 %v2055
  %v2090 = vpop.f32.mrf.mxu0
  %v2091 = vadd.f32 0.0, %v2090
  %v2092 = vpop.f32.mrf.mxu0
  %v2093 = vadd.f32 0.0, %v2092
  %v2094 = vpop.f32.mrf.mxu0
  %v2095 = vpop.f32.mrf.mxu0
  %2096 = vdwg.mxu0
  %2097 = vmatprep.subr.bf16.mxu0 0
  %2098 = vmatpush1.bf16.msra.mxu0 %v1819
  %2099 = vmatprep.subr.bf16.mxu0 0
  %2100 = vmatpush1.bf16.msra.mxu0 %v1816
  %2101 = vmatprep.subr.bf16.mxu0 0
  %2102 = vmatpush1.bf16.msra.mxu0 %v1813
  %2103 = vmatprep.subr.bf16.mxu0 0
  %2104 = vmatpush1.bf16.msra.mxu0 %v1810
  %2105 = vmatprep.subr.bf16.mxu0 0
  %2106 = vmatpush1.bf16.msra.mxu0 %v1807
  %2107 = vmatprep.subr.bf16.mxu0 0
  %2108 = vmatpush1.bf16.msra.mxu0 %v1804
  %2109 = vmatprep.subr.bf16.mxu0 0
  %2110 = vmatpush1.bf16.msra.mxu0 %v1801
  %2111 = vmatprep.subr.bf16.mxu0 0
  %2112 = vmatpush1.bf16.msra.mxu0 %v1798
  %2113 = vmatprep.subr.bf16.mxu0 0
  %2114 = vmatpush2.bf16.msra.mxu0 0
  %2115 = vmatprep.subr.bf16.mxu0 0
  %2116 = vmatpush2.bf16.msra.mxu0 0
  %2117 = vmatprep.subr.bf16.mxu0 0
  %2118 = vmatpush2.bf16.msra.mxu0 0
  %2119 = vmatprep.subr.bf16.mxu0 0
  %2120 = vmatpush2.bf16.msra.mxu0 0
  %2121 = vmatprep.subr.bf16.mxu0 0
  %2122 = vmatpush2.bf16.msra.mxu0 0
  %2123 = vmatprep.subr.bf16.mxu0 0
  %2124 = vmatpush2.bf16.msra.mxu0 0
  %2125 = vmatprep.subr.bf16.mxu0 0
  %2126 = vmatpush2.bf16.msra.mxu0 0
  %2127 = vmatprep.subr.bf16.mxu0 0
  %2128 = vmatpush2.bf16.msra.mxu0 0
  %2129 = vmatprep.mubr.bf16.mxu0 0
  %2130 = vmatmul.mubr.bf16.gmra.mxu0 %v2055
  %v2131 = vpop.f32.mrf.mxu0
  %v2132 = vadd.f32 0.0, %v2131
  %v2133 = vpop.f32.mrf.mxu0
  %v2134 = vpop.f32.mrf.mxu0
  %v2135 = vpop.f32.mrf.mxu0
  %2136 = vdwg.mxu0
  %v2137 = vadd.f32 %v2052, %v2091
  %v2138 = vxor.u32 %v2137, 2147483648
  %v2139 = vmul.f32 %v2138, 1.442695
  %v2140 = vpow.pop %v2139
  %v2141 = vadd.f32 %v2140, 1.0
  %v2142 = vrcp.pop %v2141
  %v2143 = vmul.f32 1.0, %v2142
  %v2144 = vadd.f32 %v2053, %v2093
  %v2145 = vxor.u32 %v2144, 2147483648
  %v2146 = vmul.f32 %v2145, 1.442695
  %v2147 = vpow.pop %v2146
  %v2148 = vadd.f32 %v2147, 1.0
  %v2149 = vrcp.pop %v2148
  %v2150 = vmul.f32 1.0, %v2149
  %v2151 = vadd.f32 %v2132, %v1711
  %v2152 = vmul.f32 %v2143, %v2151
  %v2153 = vadd.f32 %v2054, %v2152
  %v2154 = vtanh.pop %v2153
  %v2155 = vsub.f32 %v2051, %v2154
  %v2156 = vmul.f32 %v2150, %v2155
  %v2157 = vadd.f32 %v2154, %v2156
  %v2158 = vld [vmem:[%s778] sm:$0xff]
  %v2159 = vld [vmem:[%s778 + $0x8] sm:$0xff]
  %v2160 = vld [vmem:[%s778 + $0x10] sm:$0xff]
  %v2161 = vpack.c.bf16 %v2157, %v2157
  %2162 = vmatprep.subr.bf16.mxu0 %v1818
  %2163 = vmatpush1.bf16.msra.mxu0 %v1817
  %2164 = vmatprep.subr.bf16.mxu0 %v1815
  %2165 = vmatpush1.bf16.msra.mxu0 %v1814
  %2166 = vmatprep.subr.bf16.mxu0 %v1812
  %2167 = vmatpush1.bf16.msra.mxu0 %v1811
  %2168 = vmatprep.subr.bf16.mxu0 %v1809
  %2169 = vmatpush1.bf16.msra.mxu0 %v1808
  %2170 = vmatprep.subr.bf16.mxu0 %v1806
  %2171 = vmatpush1.bf16.msra.mxu0 %v1805
  %2172 = vmatprep.subr.bf16.mxu0 %v1803
  %2173 = vmatpush1.bf16.msra.mxu0 %v1802
  %2174 = vmatprep.subr.bf16.mxu0 %v1800
  %2175 = vmatpush1.bf16.msra.mxu0 %v1799
  %2176 = vmatprep.subr.bf16.mxu0 %v1797
  %2177 = vmatpush1.bf16.msra.mxu0 %v1796
  %2178 = vmatprep.subr.bf16.mxu0 0
  %2179 = vmatpush2.bf16.msra.mxu0 0
  %2180 = vmatprep.subr.bf16.mxu0 0
  %2181 = vmatpush2.bf16.msra.mxu0 0
  %2182 = vmatprep.subr.bf16.mxu0 0
  %2183 = vmatpush2.bf16.msra.mxu0 0
  %2184 = vmatprep.subr.bf16.mxu0 0
  %2185 = vmatpush2.bf16.msra.mxu0 0
  %2186 = vmatprep.subr.bf16.mxu0 0
  %2187 = vmatpush2.bf16.msra.mxu0 0
  %2188 = vmatprep.subr.bf16.mxu0 0
  %2189 = vmatpush2.bf16.msra.mxu0 0
  %2190 = vmatprep.subr.bf16.mxu0 0
  %2191 = vmatpush2.bf16.msra.mxu0 0
  %2192 = vmatprep.subr.bf16.mxu0 0
  %2193 = vmatpush2.bf16.msra.mxu0 0
  %2194 = vmatprep.mubr.bf16.mxu0 0
  %2195 = vmatmul.mubr.bf16.gmra.mxu0 %v2161
  %v2196 = vpop.f32.mrf.mxu0
  %v2197 = vadd.f32 0.0, %v2196
  %v2198 = vpop.f32.mrf.mxu0
  %v2199 = vadd.f32 0.0, %v2198
  %v2200 = vpop.f32.mrf.mxu0
  %v2201 = vpop.f32.mrf.mxu0
  %2202 = vdwg.mxu0
  %2203 = vmatprep.subr.bf16.mxu0 0
  %2204 = vmatpush1.bf16.msra.mxu0 %v1819
  %2205 = vmatprep.subr.bf16.mxu0 0
  %2206 = vmatpush1.bf16.msra.mxu0 %v1816
  %2207 = vmatprep.subr.bf16.mxu0 0
  %2208 = vmatpush1.bf16.msra.mxu0 %v1813
  %2209 = vmatprep.subr.bf16.mxu0 0
  %2210 = vmatpush1.bf16.msra.mxu0 %v1810
  %2211 = vmatprep.subr.bf16.mxu0 0
  %2212 = vmatpush1.bf16.msra.mxu0 %v1807
  %2213 = vmatprep.subr.bf16.mxu0 0
  %2214 = vmatpush1.bf16.msra.mxu0 %v1804
  %2215 = vmatprep.subr.bf16.mxu0 0
  %2216 = vmatpush1.bf16.msra.mxu0 %v1801
  %2217 = vmatprep.subr.bf16.mxu0 0
  %2218 = vmatpush1.bf16.msra.mxu0 %v1798
  %2219 = vmatprep.subr.bf16.mxu0 0
  %2220 = vmatpush2.bf16.msra.mxu0 0
  %2221 = vmatprep.subr.bf16.mxu0 0
  %2222 = vmatpush2.bf16.msra.mxu0 0
  %2223 = vmatprep.subr.bf16.mxu0 0
  %2224 = vmatpush2.bf16.msra.mxu0 0
  %2225 = vmatprep.subr.bf16.mxu0 0
  %2226 = vmatpush2.bf16.msra.mxu0 0
  %2227 = vmatprep.subr.bf16.mxu0 0
  %2228 = vmatpush2.bf16.msra.mxu0 0
  %2229 = vmatprep.subr.bf16.mxu0 0
  %2230 = vmatpush2.bf16.msra.mxu0 0
  %2231 = vmatprep.subr.bf16.mxu0 0
  %2232 = vmatpush2.bf16.msra.mxu0 0
  %2233 = vmatprep.subr.bf16.mxu0 0
  %2234 = vmatpush2.bf16.msra.mxu0 0
  %2235 = vmatprep.mubr.bf16.mxu0 0
  %2236 = vmatmul.mubr.bf16.gmra.mxu0 %v2161
  %v2237 = vpop.f32.mrf.mxu0
  %v2238 = vadd.f32 0.0, %v2237
  %v2239 = vpop.f32.mrf.mxu0
  %v2240 = vpop.f32.mrf.mxu0
  %v2241 = vpop.f32.mrf.mxu0
  %2242 = vdwg.mxu0
  %v2243 = vadd.f32 %v2158, %v2197
  %v2244 = vxor.u32 %v2243, 2147483648
  %v2245 = vmul.f32 %v2244, 1.442695
  %v2246 = vpow.pop %v2245
  %v2247 = vadd.f32 %v2246, 1.0
  %v2248 = vrcp.pop %v2247
  %v2249 = vmul.f32 1.0, %v2248
  %v2250 = vadd.f32 %v2159, %v2199
  %v2251 = vxor.u32 %v2250, 2147483648
  %v2252 = vmul.f32 %v2251, 1.442695
  %v2253 = vpow.pop %v2252
  %v2254 = vadd.f32 %v2253, 1.0
  %v2255 = vrcp.pop %v2254
  %v2256 = vmul.f32 1.0, %v2255
  %v2257 = vadd.f32 %v2238, %v1711
  %v2258 = vmul.f32 %v2249, %v2257
  %v2259 = vadd.f32 %v2160, %v2258
  %v2260 = vtanh.pop %v2259
  %v2261 = vsub.f32 %v2157, %v2260
  %v2262 = vmul.f32 %v2256, %v2261
  %v2263 = vadd.f32 %v2260, %v2262
  %v2264 = vld [vmem:[%s887] sm:$0xff]
  %v2265 = vld [vmem:[%s887 + $0x8] sm:$0xff]
  %v2266 = vld [vmem:[%s887 + $0x10] sm:$0xff]
  %v2267 = vpack.c.bf16 %v2263, %v2263
  %2268 = vmatprep.subr.bf16.mxu0 %v1818
  %2269 = vmatpush1.bf16.msra.mxu0 %v1817
  %2270 = vmatprep.subr.bf16.mxu0 %v1815
  %2271 = vmatpush1.bf16.msra.mxu0 %v1814
  %2272 = vmatprep.subr.bf16.mxu0 %v1812
  %2273 = vmatpush1.bf16.msra.mxu0 %v1811
  %2274 = vmatprep.subr.bf16.mxu0 %v1809
  %2275 = vmatpush1.bf16.msra.mxu0 %v1808
  %2276 = vmatprep.subr.bf16.mxu0 %v1806
  %2277 = vmatpush1.bf16.msra.mxu0 %v1805
  %2278 = vmatprep.subr.bf16.mxu0 %v1803
  %2279 = vmatpush1.bf16.msra.mxu0 %v1802
  %2280 = vmatprep.subr.bf16.mxu0 %v1800
  %2281 = vmatpush1.bf16.msra.mxu0 %v1799
  %2282 = vmatprep.subr.bf16.mxu0 %v1797
  %2283 = vmatpush1.bf16.msra.mxu0 %v1796
  %2284 = vmatprep.subr.bf16.mxu0 0
  %2285 = vmatpush2.bf16.msra.mxu0 0
  %2286 = vmatprep.subr.bf16.mxu0 0
  %2287 = vmatpush2.bf16.msra.mxu0 0
  %2288 = vmatprep.subr.bf16.mxu0 0
  %2289 = vmatpush2.bf16.msra.mxu0 0
  %2290 = vmatprep.subr.bf16.mxu0 0
  %2291 = vmatpush2.bf16.msra.mxu0 0
  %2292 = vmatprep.subr.bf16.mxu0 0
  %2293 = vmatpush2.bf16.msra.mxu0 0
  %2294 = vmatprep.subr.bf16.mxu0 0
  %2295 = vmatpush2.bf16.msra.mxu0 0
  %2296 = vmatprep.subr.bf16.mxu0 0
  %2297 = vmatpush2.bf16.msra.mxu0 0
  %2298 = vmatprep.subr.bf16.mxu0 0
  %2299 = vmatpush2.bf16.msra.mxu0 0
  %2300 = vmatprep.mubr.bf16.mxu0 0
  %2301 = vmatmul.mubr.bf16.gmra.mxu0 %v2267
  %v2302 = vpop.f32.mrf.mxu0
  %v2303 = vadd.f32 0.0, %v2302
  %v2304 = vpop.f32.mrf.mxu0
  %v2305 = vadd.f32 0.0, %v2304
  %v2306 = vpop.f32.mrf.mxu0
  %v2307 = vpop.f32.mrf.mxu0
  %2308 = vdwg.mxu0
  %2309 = vmatprep.subr.bf16.mxu0 0
  %2310 = vmatpush1.bf16.msra.mxu0 %v1819
  %2311 = vmatprep.subr.bf16.mxu0 0
  %2312 = vmatpush1.bf16.msra.mxu0 %v1816
  %2313 = vmatprep.subr.bf16.mxu0 0
  %2314 = vmatpush1.bf16.msra.mxu0 %v1813
  %2315 = vmatprep.subr.bf16.mxu0 0
  %2316 = vmatpush1.bf16.msra.mxu0 %v1810
  %2317 = vmatprep.subr.bf16.mxu0 0
  %2318 = vmatpush1.bf16.msra.mxu0 %v1807
  %2319 = vmatprep.subr.bf16.mxu0 0
  %2320 = vmatpush1.bf16.msra.mxu0 %v1804
  %2321 = vmatprep.subr.bf16.mxu0 0
  %2322 = vmatpush1.bf16.msra.mxu0 %v1801
  %2323 = vmatprep.subr.bf16.mxu0 0
  %2324 = vmatpush1.bf16.msra.mxu0 %v1798
  %2325 = vmatprep.subr.bf16.mxu0 0
  %2326 = vmatpush2.bf16.msra.mxu0 0
  %2327 = vmatprep.subr.bf16.mxu0 0
  %2328 = vmatpush2.bf16.msra.mxu0 0
  %2329 = vmatprep.subr.bf16.mxu0 0
  %2330 = vmatpush2.bf16.msra.mxu0 0
  %2331 = vmatprep.subr.bf16.mxu0 0
  %2332 = vmatpush2.bf16.msra.mxu0 0
  %2333 = vmatprep.subr.bf16.mxu0 0
  %2334 = vmatpush2.bf16.msra.mxu0 0
  %2335 = vmatprep.subr.bf16.mxu0 0
  %2336 = vmatpush2.bf16.msra.mxu0 0
  %2337 = vmatprep.subr.bf16.mxu0 0
  %2338 = vmatpush2.bf16.msra.mxu0 0
  %2339 = vmatprep.subr.bf16.mxu0 0
  %2340 = vmatpush2.bf16.msra.mxu0 0
  %2341 = vmatprep.mubr.bf16.mxu0 0
  %2342 = vmatmul.mubr.bf16.gmra.mxu0 %v2267
  %v2343 = vpop.f32.mrf.mxu0
  %v2344 = vadd.f32 0.0, %v2343
  %v2345 = vpop.f32.mrf.mxu0
  %v2346 = vpop.f32.mrf.mxu0
  %v2347 = vpop.f32.mrf.mxu0
  %2348 = vdwg.mxu0
  %v2349 = vadd.f32 %v2264, %v2303
  %v2350 = vxor.u32 %v2349, 2147483648
  %v2351 = vmul.f32 %v2350, 1.442695
  %v2352 = vpow.pop %v2351
  %v2353 = vadd.f32 %v2352, 1.0
  %v2354 = vrcp.pop %v2353
  %v2355 = vmul.f32 1.0, %v2354
  %v2356 = vadd.f32 %v2265, %v2305
  %v2357 = vxor.u32 %v2356, 2147483648
  %v2358 = vmul.f32 %v2357, 1.442695
  %v2359 = vpow.pop %v2358
  %v2360 = vadd.f32 %v2359, 1.0
  %v2361 = vrcp.pop %v2360
  %v2362 = vmul.f32 1.0, %v2361
  %v2363 = vadd.f32 %v2344, %v1711
  %v2364 = vmul.f32 %v2355, %v2363
  %v2365 = vadd.f32 %v2266, %v2364
  %v2366 = vtanh.pop %v2365
  %v2367 = vsub.f32 %v2263, %v2366
  %v2368 = vmul.f32 %v2362, %v2367
  %v2369 = vadd.f32 %v2366, %v2368
  %v2370 = vld [vmem:[%s996] sm:$0xff]
  %v2371 = vld [vmem:[%s996 + $0x8] sm:$0xff]
  %v2372 = vld [vmem:[%s996 + $0x10] sm:$0xff]
  %v2373 = vpack.c.bf16 %v2369, %v2369
  %2374 = vmatprep.subr.bf16.mxu0 %v1818
  %2375 = vmatpush1.bf16.msra.mxu0 %v1817
  %2376 = vmatprep.subr.bf16.mxu0 %v1815
  %2377 = vmatpush1.bf16.msra.mxu0 %v1814
  %2378 = vmatprep.subr.bf16.mxu0 %v1812
  %2379 = vmatpush1.bf16.msra.mxu0 %v1811
  %2380 = vmatprep.subr.bf16.mxu0 %v1809
  %2381 = vmatpush1.bf16.msra.mxu0 %v1808
  %2382 = vmatprep.subr.bf16.mxu0 %v1806
  %2383 = vmatpush1.bf16.msra.mxu0 %v1805
  %2384 = vmatprep.subr.bf16.mxu0 %v1803
  %2385 = vmatpush1.bf16.msra.mxu0 %v1802
  %2386 = vmatprep.subr.bf16.mxu0 %v1800
  %2387 = vmatpush1.bf16.msra.mxu0 %v1799
  %2388 = vmatprep.subr.bf16.mxu0 %v1797
  %2389 = vmatpush1.bf16.msra.mxu0 %v1796
  %2390 = vmatprep.subr.bf16.mxu0 0
  %2391 = vmatpush2.bf16.msra.mxu0 0
  %2392 = vmatprep.subr.bf16.mxu0 0
  %2393 = vmatpush2.bf16.msra.mxu0 0
  %2394 = vmatprep.subr.bf16.mxu0 0
  %2395 = vmatpush2.bf16.msra.mxu0 0
  %2396 = vmatprep.subr.bf16.mxu0 0
  %2397 = vmatpush2.bf16.msra.mxu0 0
  %2398 = vmatprep.subr.bf16.mxu0 0
  %2399 = vmatpush2.bf16.msra.mxu0 0
  %2400 = vmatprep.subr.bf16.mxu0 0
  %2401 = vmatpush2.bf16.msra.mxu0 0
  %2402 = vmatprep.subr.bf16.mxu0 0
  %2403 = vmatpush2.bf16.msra.mxu0 0
  %2404 = vmatprep.subr.bf16.mxu0 0
  %2405 = vmatpush2.bf16.msra.mxu0 0
  %2406 = vmatprep.mubr.bf16.mxu0 0
  %2407 = vmatmul.mubr.bf16.gmra.mxu0 %v2373
  %v2408 = vpop.f32.mrf.mxu0
  %v2409 = vadd.f32 0.0, %v2408
  %v2410 = vpop.f32.mrf.mxu0
  %v2411 = vadd.f32 0.0, %v2410
  %v2412 = vpop.f32.mrf.mxu0
  %v2413 = vpop.f32.mrf.mxu0
  %2414 = vdwg.mxu0
  %2415 = vmatprep.subr.bf16.mxu0 0
  %2416 = vmatpush1.bf16.msra.mxu0 %v1819
  %2417 = vmatprep.subr.bf16.mxu0 0
  %2418 = vmatpush1.bf16.msra.mxu0 %v1816
  %2419 = vmatprep.subr.bf16.mxu0 0
  %2420 = vmatpush1.bf16.msra.mxu0 %v1813
  %2421 = vmatprep.subr.bf16.mxu0 0
  %2422 = vmatpush1.bf16.msra.mxu0 %v1810
  %2423 = vmatprep.subr.bf16.mxu0 0
  %2424 = vmatpush1.bf16.msra.mxu0 %v1807
  %2425 = vmatprep.subr.bf16.mxu0 0
  %2426 = vmatpush1.bf16.msra.mxu0 %v1804
  %2427 = vmatprep.subr.bf16.mxu0 0
  %2428 = vmatpush1.bf16.msra.mxu0 %v1801
  %2429 = vmatprep.subr.bf16.mxu0 0
  %2430 = vmatpush1.bf16.msra.mxu0 %v1798
  %2431 = vmatprep.subr.bf16.mxu0 0
  %2432 = vmatpush2.bf16.msra.mxu0 0
  %2433 = vmatprep.subr.bf16.mxu0 0
  %2434 = vmatpush2.bf16.msra.mxu0 0
  %2435 = vmatprep.subr.bf16.mxu0 0
  %2436 = vmatpush2.bf16.msra.mxu0 0
  %2437 = vmatprep.subr.bf16.mxu0 0
  %2438 = vmatpush2.bf16.msra.mxu0 0
  %2439 = vmatprep.subr.bf16.mxu0 0
  %2440 = vmatpush2.bf16.msra.mxu0 0
  %2441 = vmatprep.subr.bf16.mxu0 0
  %2442 = vmatpush2.bf16.msra.mxu0 0
  %2443 = vmatprep.subr.bf16.mxu0 0
  %2444 = vmatpush2.bf16.msra.mxu0 0
  %2445 = vmatprep.subr.bf16.mxu0 0
  %2446 = vmatpush2.bf16.msra.mxu0 0
  %2447 = vmatprep.mubr.bf16.mxu0 0
  %2448 = vmatmul.mubr.bf16.gmra.mxu0 %v2373
  %v2449 = vpop.f32.mrf.mxu0
  %v2450 = vadd.f32 0.0, %v2449
  %v2451 = vpop.f32.mrf.mxu0
  %v2452 = vpop.f32.mrf.mxu0
  %v2453 = vpop.f32.mrf.mxu0
  %2454 = vdwg.mxu0
  %v2455 = vadd.f32 %v2370, %v2409
  %v2456 = vxor.u32 %v2455, 2147483648
  %v2457 = vmul.f32 %v2456, 1.442695
  %v2458 = vpow.pop %v2457
  %v2459 = vadd.f32 %v2458, 1.0
  %v2460 = vrcp.pop %v2459
  %v2461 = vmul.f32 1.0, %v2460
  %v2462 = vadd.f32 %v2371, %v2411
  %v2463 = vxor.u32 %v2462, 2147483648
  %v2464 = vmul.f32 %v2463, 1.442695
  %v2465 = vpow.pop %v2464
  %v2466 = vadd.f32 %v2465, 1.0
  %v2467 = vrcp.pop %v2466
  %v2468 = vmul.f32 1.0, %v2467
  %v2469 = vadd.f32 %v2450, %v1711
  %v2470 = vmul.f32 %v2461, %v2469
  %v2471 = vadd.f32 %v2372, %v2470
  %v2472 = vtanh.pop %v2471
  %v2473 = vsub.f32 %v2369, %v2472
  %v2474 = vmul.f32 %v2468, %v2473
  %v2475 = vadd.f32 %v2472, %v2474
  %v2476 = vld [vmem:[%s1105] sm:$0xff]
  %v2477 = vld [vmem:[%s1105 + $0x8] sm:$0xff]
  %v2478 = vld [vmem:[%s1105 + $0x10] sm:$0xff]
  %v2479 = vpack.c.bf16 %v2475, %v2475
  %2480 = vmatprep.subr.bf16.mxu0 %v1818
  %2481 = vmatpush1.bf16.msra.mxu0 %v1817
  %2482 = vmatprep.subr.bf16.mxu0 %v1815
  %2483 = vmatpush1.bf16.msra.mxu0 %v1814
  %2484 = vmatprep.subr.bf16.mxu0 %v1812
  %2485 = vmatpush1.bf16.msra.mxu0 %v1811
  %2486 = vmatprep.subr.bf16.mxu0 %v1809
  %2487 = vmatpush1.bf16.msra.mxu0 %v1808
  %2488 = vmatprep.subr.bf16.mxu0 %v1806
  %2489 = vmatpush1.bf16.msra.mxu0 %v1805
  %2490 = vmatprep.subr.bf16.mxu0 %v1803
  %2491 = vmatpush1.bf16.msra.mxu0 %v1802
  %2492 = vmatprep.subr.bf16.mxu0 %v1800
  %2493 = vmatpush1.bf16.msra.mxu0 %v1799
  %2494 = vmatprep.subr.bf16.mxu0 %v1797
  %2495 = vmatpush1.bf16.msra.mxu0 %v1796
  %2496 = vmatprep.subr.bf16.mxu0 0
  %2497 = vmatpush2.bf16.msra.mxu0 0
  %2498 = vmatprep.subr.bf16.mxu0 0
  %2499 = vmatpush2.bf16.msra.mxu0 0
  %2500 = vmatprep.subr.bf16.mxu0 0
  %2501 = vmatpush2.bf16.msra.mxu0 0
  %2502 = vmatprep.subr.bf16.mxu0 0
  %2503 = vmatpush2.bf16.msra.mxu0 0
  %2504 = vmatprep.subr.bf16.mxu0 0
  %2505 = vmatpush2.bf16.msra.mxu0 0
  %2506 = vmatprep.subr.bf16.mxu0 0
  %2507 = vmatpush2.bf16.msra.mxu0 0
  %2508 = vmatprep.subr.bf16.mxu0 0
  %2509 = vmatpush2.bf16.msra.mxu0 0
  %2510 = vmatprep.subr.bf16.mxu0 0
  %2511 = vmatpush2.bf16.msra.mxu0 0
  %2512 = vmatprep.mubr.bf16.mxu0 0
  %2513 = vmatmul.mubr.bf16.gmra.mxu0 %v2479
  %v2514 = vpop.f32.mrf.mxu0
  %v2515 = vadd.f32 0.0, %v2514
  %v2516 = vpop.f32.mrf.mxu0
  %v2517 = vadd.f32 0.0, %v2516
  %v2518 = vpop.f32.mrf.mxu0
  %v2519 = vpop.f32.mrf.mxu0
  %2520 = vdwg.mxu0
  %2521 = vmatprep.subr.bf16.mxu0 0
  %2522 = vmatpush1.bf16.msra.mxu0 %v1819
  %2523 = vmatprep.subr.bf16.mxu0 0
  %2524 = vmatpush1.bf16.msra.mxu0 %v1816
  %2525 = vmatprep.subr.bf16.mxu0 0
  %2526 = vmatpush1.bf16.msra.mxu0 %v1813
  %2527 = vmatprep.subr.bf16.mxu0 0
  %2528 = vmatpush1.bf16.msra.mxu0 %v1810
  %2529 = vmatprep.subr.bf16.mxu0 0
  %2530 = vmatpush1.bf16.msra.mxu0 %v1807
  %2531 = vmatprep.subr.bf16.mxu0 0
  %2532 = vmatpush1.bf16.msra.mxu0 %v1804
  %2533 = vmatprep.subr.bf16.mxu0 0
  %2534 = vmatpush1.bf16.msra.mxu0 %v1801
  %2535 = vmatprep.subr.bf16.mxu0 0
  %2536 = vmatpush1.bf16.msra.mxu0 %v1798
  %2537 = vmatprep.subr.bf16.mxu0 0
  %2538 = vmatpush2.bf16.msra.mxu0 0
  %2539 = vmatprep.subr.bf16.mxu0 0
  %2540 = vmatpush2.bf16.msra.mxu0 0
  %2541 = vmatprep.subr.bf16.mxu0 0
  %2542 = vmatpush2.bf16.msra.mxu0 0
  %2543 = vmatprep.subr.bf16.mxu0 0
  %2544 = vmatpush2.bf16.msra.mxu0 0
  %2545 = vmatprep.subr.bf16.mxu0 0
  %2546 = vmatpush2.bf16.msra.mxu0 0
  %2547 = vmatprep.subr.bf16.mxu0 0
  %2548 = vmatpush2.bf16.msra.mxu0 0
  %2549 = vmatprep.subr.bf16.mxu0 0
  %2550 = vmatpush2.bf16.msra.mxu0 0
  %2551 = vmatprep.subr.bf16.mxu0 0
  %2552 = vmatpush2.bf16.msra.mxu0 0
  %2553 = vmatprep.mubr.bf16.mxu0 0
  %2554 = vmatmul.mubr.bf16.gmra.mxu0 %v2479
  %v2555 = vpop.f32.mrf.mxu0
  %v2556 = vadd.f32 0.0, %v2555
  %v2557 = vpop.f32.mrf.mxu0
  %v2558 = vpop.f32.mrf.mxu0
  %v2559 = vpop.f32.mrf.mxu0
  %2560 = vdwg.mxu0
  %v2561 = vadd.f32 %v2476, %v2515
  %v2562 = vxor.u32 %v2561, 2147483648
  %v2563 = vmul.f32 %v2562, 1.442695
  %v2564 = vpow.pop %v2563
  %v2565 = vadd.f32 %v2564, 1.0
  %v2566 = vrcp.pop %v2565
  %v2567 = vmul.f32 1.0, %v2566
  %v2568 = vadd.f32 %v2477, %v2517
  %v2569 = vxor.u32 %v2568, 2147483648
  %v2570 = vmul.f32 %v2569, 1.442695
  %v2571 = vpow.pop %v2570
  %v2572 = vadd.f32 %v2571, 1.0
  %v2573 = vrcp.pop %v2572
  %v2574 = vmul.f32 1.0, %v2573
  %v2575 = vadd.f32 %v2556, %v1711
  %v2576 = vmul.f32 %v2567, %v2575
  %v2577 = vadd.f32 %v2478, %v2576
  %v2578 = vtanh.pop %v2577
  %v2579 = vsub.f32 %v2475, %v2578
  %v2580 = vmul.f32 %v2574, %v2579
  %v2581 = vadd.f32 %v2578, %v2580
  %v2582 = vld [vmem:[%s1214] sm:$0xff]
  %v2583 = vld [vmem:[%s1214 + $0x8] sm:$0xff]
  %v2584 = vld [vmem:[%s1214 + $0x10] sm:$0xff]
  %v2585 = vpack.c.bf16 %v2581, %v2581
  %2586 = vmatprep.subr.bf16.mxu0 %v1818
  %2587 = vmatpush1.bf16.msra.mxu0 %v1817
  %2588 = vmatprep.subr.bf16.mxu0 %v1815
  %2589 = vmatpush1.bf16.msra.mxu0 %v1814
  %2590 = vmatprep.subr.bf16.mxu0 %v1812
  %2591 = vmatpush1.bf16.msra.mxu0 %v1811
  %2592 = vmatprep.subr.bf16.mxu0 %v1809
  %2593 = vmatpush1.bf16.msra.mxu0 %v1808
  %2594 = vmatprep.subr.bf16.mxu0 %v1806
  %2595 = vmatpush1.bf16.msra.mxu0 %v1805
  %2596 = vmatprep.subr.bf16.mxu0 %v1803
  %2597 = vmatpush1.bf16.msra.mxu0 %v1802
  %2598 = vmatprep.subr.bf16.mxu0 %v1800
  %2599 = vmatpush1.bf16.msra.mxu0 %v1799
  %2600 = vmatprep.subr.bf16.mxu0 %v1797
  %2601 = vmatpush1.bf16.msra.mxu0 %v1796
  %2602 = vmatprep.subr.bf16.mxu0 0
  %2603 = vmatpush2.bf16.msra.mxu0 0
  %2604 = vmatprep.subr.bf16.mxu0 0
  %2605 = vmatpush2.bf16.msra.mxu0 0
  %2606 = vmatprep.subr.bf16.mxu0 0
  %2607 = vmatpush2.bf16.msra.mxu0 0
  %2608 = vmatprep.subr.bf16.mxu0 0
  %2609 = vmatpush2.bf16.msra.mxu0 0
  %2610 = vmatprep.subr.bf16.mxu0 0
  %2611 = vmatpush2.bf16.msra.mxu0 0
  %2612 = vmatprep.subr.bf16.mxu0 0
  %2613 = vmatpush2.bf16.msra.mxu0 0
  %2614 = vmatprep.subr.bf16.mxu0 0
  %2615 = vmatpush2.bf16.msra.mxu0 0
  %2616 = vmatprep.subr.bf16.mxu0 0
  %2617 = vmatpush2.bf16.msra.mxu0 0
  %2618 = vmatprep.mubr.bf16.mxu0 0
  %2619 = vmatmul.mubr.bf16.gmra.mxu0 %v2585
  %v2620 = vpop.f32.mrf.mxu0
  %v2621 = vadd.f32 0.0, %v2620
  %v2622 = vpop.f32.mrf.mxu0
  %v2623 = vadd.f32 0.0, %v2622
  %v2624 = vpop.f32.mrf.mxu0
  %v2625 = vpop.f32.mrf.mxu0
  %2626 = vdwg.mxu0
  %2627 = vmatprep.subr.bf16.mxu0 0
  %2628 = vmatpush1.bf16.msra.mxu0 %v1819
  %2629 = vmatprep.subr.bf16.mxu0 0
  %2630 = vmatpush1.bf16.msra.mxu0 %v1816
  %2631 = vmatprep.subr.bf16.mxu0 0
  %2632 = vmatpush1.bf16.msra.mxu0 %v1813
  %2633 = vmatprep.subr.bf16.mxu0 0
  %2634 = vmatpush1.bf16.msra.mxu0 %v1810
  %2635 = vmatprep.subr.bf16.mxu0 0
  %2636 = vmatpush1.bf16.msra.mxu0 %v1807
  %2637 = vmatprep.subr.bf16.mxu0 0
  %2638 = vmatpush1.bf16.msra.mxu0 %v1804
  %2639 = vmatprep.subr.bf16.mxu0 0
  %2640 = vmatpush1.bf16.msra.mxu0 %v1801
  %2641 = vmatprep.subr.bf16.mxu0 0
  %2642 = vmatpush1.bf16.msra.mxu0 %v1798
  %2643 = vmatprep.subr.bf16.mxu0 0
  %2644 = vmatpush2.bf16.msra.mxu0 0
  %2645 = vmatprep.subr.bf16.mxu0 0
  %2646 = vmatpush2.bf16.msra.mxu0 0
  %2647 = vmatprep.subr.bf16.mxu0 0
  %2648 = vmatpush2.bf16.msra.mxu0 0
  %2649 = vmatprep.subr.bf16.mxu0 0
  %2650 = vmatpush2.bf16.msra.mxu0 0
  %2651 = vmatprep.subr.bf16.mxu0 0
  %2652 = vmatpush2.bf16.msra.mxu0 0
  %2653 = vmatprep.subr.bf16.mxu0 0
  %2654 = vmatpush2.bf16.msra.mxu0 0
  %2655 = vmatprep.subr.bf16.mxu0 0
  %2656 = vmatpush2.bf16.msra.mxu0 0
  %2657 = vmatprep.subr.bf16.mxu0 0
  %2658 = vmatpush2.bf16.msra.mxu0 0
  %2659 = vmatprep.mubr.bf16.mxu0 0
  %2660 = vmatmul.mubr.bf16.gmra.mxu0 %v2585
  %v2661 = vpop.f32.mrf.mxu0
  %v2662 = vadd.f32 0.0, %v2661
  %v2663 = vpop.f32.mrf.mxu0
  %v2664 = vpop.f32.mrf.mxu0
  %v2665 = vpop.f32.mrf.mxu0
  %2666 = vdwg.mxu0
  %v2667 = vadd.f32 %v2582, %v2621
  %v2668 = vxor.u32 %v2667, 2147483648
  %v2669 = vmul.f32 %v2668, 1.442695
  %v2670 = vpow.pop %v2669
  %v2671 = vadd.f32 %v2670, 1.0
  %v2672 = vrcp.pop %v2671
  %v2673 = vmul.f32 1.0, %v2672
  %v2674 = vadd.f32 %v2583, %v2623
  %v2675 = vxor.u32 %v2674, 2147483648
  %v2676 = vmul.f32 %v2675, 1.442695
  %v2677 = vpow.pop %v2676
  %v2678 = vadd.f32 %v2677, 1.0
  %v2679 = vrcp.pop %v2678
  %v2680 = vmul.f32 1.0, %v2679
  %v2681 = vadd.f32 %v2662, %v1711
  %v2682 = vmul.f32 %v2673, %v2681
  %v2683 = vadd.f32 %v2584, %v2682
  %v2684 = vtanh.pop %v2683
  %v2685 = vsub.f32 %v2581, %v2684
  %v2686 = vmul.f32 %v2680, %v2685
  %v2687 = vadd.f32 %v2684, %v2686
  %v2688 = vpack.c.bf16 %v2687, %v2687
  %v2689 = vld [vmem:[%s9] sm:$0xf]
  %v2690 = vld [vmem:[%s9 + $0x4] sm:$0xf]
  %v2691 = vld [vmem:[%s9 + $0x8] sm:$0xf]
  %v2692 = vld [vmem:[%s9 + $0xc] sm:$0xf]
  %v2693 = vld [vmem:[%s9 + $0x10] sm:$0xf]
  %v2694 = vld [vmem:[%s9 + $0x14] sm:$0xf]
  %v2695 = vld [vmem:[%s9 + $0x18] sm:$0xf]
  %v2696 = vld [vmem:[%s9 + $0x1c] sm:$0xf]
  %v2697 = vld [vmem:[%s9 + $0x20] sm:$0xf]
  %v2698 = vld [vmem:[%s9 + $0x24] sm:$0xf]
  %v2699 = vld [vmem:[%s9 + $0x28] sm:$0xf]
  %v2700 = vld [vmem:[%s9 + $0x2c] sm:$0xf]
  %v2701 = vld [vmem:[%s9 + $0x30] sm:$0xf]
  %v2702 = vld [vmem:[%s9 + $0x34] sm:$0xf]
  %v2703 = vld [vmem:[%s9 + $0x38] sm:$0xf]
  %v2704 = vld [vmem:[%s9 + $0x3c] sm:$0xf]
  %v2705 = vld [vmem:[%s10] sm:$0x1]
  %v2707 = vlaneseq
  %v2708 = vshrl.u32 %v2707, 7
  %v2709 = vsub.s32 0, %v2708
  %v2710 = vrot.slane %v2705, %v2709
  %v2728 = vunpack.c.l.b16 %v2689
  %v2729 = vunpack.c.l.b16 %v2690
  %v2730 = vunpack.c.l.b16 %v2691
  %v2731 = vunpack.c.l.b16 %v2692
  %v2732 = vunpack.c.l.b16 %v2693
  %v2733 = vunpack.c.l.b16 %v2694
  %v2734 = vunpack.c.l.b16 %v2695
  %v2735 = vunpack.c.l.b16 %v2696
  %v2736 = vunpack.c.l.b16 %v2697
  %v2737 = vunpack.c.l.b16 %v2698
  %v2738 = vunpack.c.l.b16 %v2699
  %v2739 = vunpack.c.l.b16 %v2700
  %v2740 = vunpack.c.l.b16 %v2701
  %v2741 = vunpack.c.l.b16 %v2702
  %v2742 = vunpack.c.l.b16 %v2703
  %v2743 = vunpack.c.l.b16 %v2704
  %v2744 = vpack.c.b16 %v2729, %v2728
  %v2745 = vpack.c.b16 %v2731, %v2730
  %v2746 = vpack.c.b16 %v2733, %v2732
  %v2747 = vpack.c.b16 %v2735, %v2734
  %v2748 = vpack.c.b16 %v2737, %v2736
  %v2749 = vpack.c.b16 %v2739, %v2738
  %v2750 = vpack.c.b16 %v2741, %v2740
  %v2751 = vpack.c.b16 %v2743, %v2742
  %2760 = vmatprep.subr.bf16.mxu0 0
  %2761 = vmatpush1.bf16.msra.mxu0 %v2751
  %2762 = vmatprep.subr.bf16.mxu0 0
  %2763 = vmatpush1.bf16.msra.mxu0 %v2750
  %2764 = vmatprep.subr.bf16.mxu0 0
  %2765 = vmatpush1.bf16.msra.mxu0 %v2749
  %2766 = vmatprep.subr.bf16.mxu0 0
  %2767 = vmatpush1.bf16.msra.mxu0 %v2748
  %2768 = vmatprep.subr.bf16.mxu0 0
  %2769 = vmatpush1.bf16.msra.mxu0 %v2747
  %2770 = vmatprep.subr.bf16.mxu0 0
  %2771 = vmatpush1.bf16.msra.mxu0 %v2746
  %2772 = vmatprep.subr.bf16.mxu0 0
  %2773 = vmatpush1.bf16.msra.mxu0 %v2745
  %2774 = vmatprep.subr.bf16.mxu0 0
  %2775 = vmatpush1.bf16.msra.mxu0 %v2744
  %2776 = vmatprep.subr.bf16.mxu0 0
  %2777 = vmatpush2.bf16.msra.mxu0 0
  %2778 = vmatprep.subr.bf16.mxu0 0
  %2779 = vmatpush2.bf16.msra.mxu0 0
  %2780 = vmatprep.subr.bf16.mxu0 0
  %2781 = vmatpush2.bf16.msra.mxu0 0
  %2782 = vmatprep.subr.bf16.mxu0 0
  %2783 = vmatpush2.bf16.msra.mxu0 0
  %2784 = vmatprep.subr.bf16.mxu0 0
  %2785 = vmatpush2.bf16.msra.mxu0 0
  %2786 = vmatprep.subr.bf16.mxu0 0
  %2787 = vmatpush2.bf16.msra.mxu0 0
  %2788 = vmatprep.subr.bf16.mxu0 0
  %2789 = vmatpush2.bf16.msra.mxu0 0
  %2790 = vmatprep.subr.bf16.mxu0 0
  %2791 = vmatpush2.bf16.msra.mxu0 0
  %2792 = vmatprep.mubr.bf16.mxu0 0
  %2793 = vmatmul.mubr.bf16.gmra.mxu0 %v2688
  %v2794 = vpop.f32.mrf.mxu0
  %v2795 = vadd.f32 %v2710, %v2794
  %v2796 = vpop.f32.mrf.mxu0
  %v2797 = vpop.f32.mrf.mxu0
  %v2798 = vpop.f32.mrf.mxu0
  %2799 = vdwg.mxu0
  %2800 = vst [vmem:[%s11] sm:$0xff] %v2795
  // Predicated region
  $region46: #{time_gru_forward.1} parent=0 // pred_check
    _
  $region47: #{time_gru_forward.1} parent=0 // pred_check_branch
    %2802 = sbr.rel (0) target = $region49
  $region48: #{time_gru_forward.1} parent=0 // pred_region
    _
  $region49: #{time_gru_forward.1} parent=0 // pred_fallthru
    _
  // Predicated region
  $region50: #{time_gru_forward.1} parent=0 // pred_check
    _
  $region51: #{time_gru_forward.1} parent=0 // pred_check_branch
    %2804 = sbr.rel (0) target = $region53
  $region52: #{time_gru_forward.1} parent=0 // pred_region
    _
  $region53: #{time_gru_forward.1} parent=0 // pred_fallthru
    _

</llo_original>
